<compile_context>
chip_gen: v7x
topology: tpu7x:2x2x1
jax: 0.10.0
libtpu: 0.0.40
codegen_flags: <defaults>
</compile_context>

<pallas_src>
import numpy as np
import jax
import jax.numpy as jnp
from jax import lax
from jax.experimental import pallas as pl
from jax.experimental.pallas import tpu as pltpu

# ---- scaled-down ViT-B/16 config (same structure; real values in comments) --
IMG_IN = 32            # CIFAR-10 spatial size
IMG_OUT = 64           # stand-in for the fixed 224x224 bilinear upsample
PATCH = 16
HIDDEN = 64            # real: 768
HEADS = 4              # real: 12
HEAD_DIM = HIDDEN // HEADS
LAYERS = 2             # real: 12
MLP_DIM = 128          # real: 3072
NUM_CLASSES = 10
HEAD_PAD = 128         # lane-dense padded width for the classification head
LN_EPS = 1e-6          # torchvision ViT LayerNorm eps
N_PATCH = IMG_OUT // PATCH
NP2 = N_PATCH * N_PATCH
SEQ = NP2 + 1          # 17 (real: 197)
SEQ_PAD = 24           # sublane-aligned token count (real: pad 197 -> 200/208)
KDIM = 3 * PATCH * PATCH
ATTN_SCALE = float(1.0 / np.sqrt(HEAD_DIM))
SQRT1_2 = float(1.0 / np.sqrt(2.0))
NEG_INF = -1e30


# --------------------------- in-kernel helpers -------------------------------
def _ln(x, g, b):
    mu = jnp.mean(x, axis=-1, keepdims=True)
    var = jnp.mean(jnp.square(x - mu), axis=-1, keepdims=True)
    return (x - mu) * lax.rsqrt(var + LN_EPS) * g + b


def _gelu(x):
    # exact (erf) GELU, matching torch.nn.GELU() default
    return 0.5 * x * (1.0 + lax.erf(x * SQRT1_2))


# --------------------------- Pallas kernels ----------------------------------
def bilinear_resize(x, ah, aw):
    """Fused bilinear resize of all planes in ONE grid step.

    x: (BC, Hin, Win) f32 -> (BC, Hout, Wout) bf16, out = Ah @ X_p @ Aw^T.
    Horizontal pass is a single tall matmul (rows = BC*Hin); vertical pass is a
    batched matmul over planes.  All MXU operands are bf16.
    """
    BC = x.shape[0]

    def kernel(x_ref, ah_ref, aw_ref, o_ref):
        xt = x_ref[...].reshape(BC * IMG_IN, IMG_IN).astype(jnp.bfloat16)
        # horizontal: (BC*Hin, Win) @ Aw^T  (contract last dims, no transpose)
        y = lax.dot_general(xt, aw_ref[...], (((1,), (1,)), ((), ())),
                            preferred_element_type=jnp.float32)
        y3 = y.reshape(BC, IMG_IN, IMG_OUT).astype(jnp.bfloat16)
        # vertical: batched Ah @ Y_p
        ah_b = jnp.broadcast_to(ah_ref[...], (BC, IMG_OUT, IMG_IN))
        o = jnp.einsum('phk,pkw->phw', ah_b, y3,
                       preferred_element_type=jnp.float32)
        o_ref[...] = o.astype(o_ref.dtype)

    return pl.pallas_call(
        kernel,
        out_shape=jax.ShapeDtypeStruct((BC, IMG_OUT, IMG_OUT), jnp.bfloat16),
        grid=(1,),
        in_specs=[
            pl.BlockSpec((BC, IMG_IN, IMG_IN), lambda i: (0, 0, 0)),
            pl.BlockSpec((IMG_OUT, IMG_IN), lambda i: (0, 0)),
            pl.BlockSpec((IMG_OUT, IMG_IN), lambda i: (0, 0)),
        ],
        out_specs=pl.BlockSpec((BC, IMG_OUT, IMG_OUT), lambda i: (0, 0, 0)),
    )(x, ah, aw)


def patch_embed(patches, w, b, pos_patches):
    """conv_proj-as-matmul for the whole batch at once (+bias, +pos).

    patches: (B*NP2, KDIM) bf16 -> (B, NP2, HIDDEN) f32.
    """
    M = patches.shape[0]
    B = M // NP2

    def kernel(p_ref, w_ref, b_ref, pos_ref, o_ref):
        emb = jnp.dot(p_ref[...], w_ref[...],
                      preferred_element_type=jnp.float32) + b_ref[...]
        o_ref[...] = emb.reshape(B, NP2, HIDDEN) + pos_ref[...][None]

    return pl.pallas_call(
        kernel,
        out_shape=jax.ShapeDtypeStruct((B, NP2, HIDDEN), jnp.float32),
        grid=(1,),
        in_specs=[
            pl.BlockSpec((M, KDIM), lambda i: (0, 0)),
            pl.BlockSpec((KDIM, HIDDEN), lambda i: (0, 0)),
            pl.BlockSpec((1, HIDDEN), lambda i: (0, 0)),
            pl.BlockSpec((NP2, HIDDEN), lambda i: (0, 0)),
        ],
        out_specs=pl.BlockSpec((B, NP2, HIDDEN), lambda i: (0, 0, 0)),
    )(patches, w, b, pos_patches)


def encoder_layer(h, lw, key_bias):
    """One full pre-LN transformer encoder layer for a batch block."""
    B = h.shape[0]
    # Whole batch per grid step at demo size.
    # TODO(synk): at real ViT-B size (HIDDEN=768, SEQ_PAD=200, B large) pick
    # B_BLK so B_BLK*SEQ_PAD >= 256 rows (fills the v6e/v7x MXU) while weights +
    # activations fit VMEM, keep grid >= 2 and even for v7x's two TensorCores,
    # mark the constant-index weight specs pipeline_mode=pl.Buffered(1) and set
    # vmem_limit_bytes explicitly (v7x has 64 MiB physical / 32 MiB default).
    B_BLK = B
    M = B_BLK * SEQ_PAD

    def kernel(h_ref, mask_ref, ln1g_ref, ln1b_ref, inw_ref, inb_ref,
               outw_ref, outb_ref, ln2g_ref, ln2b_ref,
               fc1w_ref, fc1b_ref, fc2w_ref, fc2b_ref, o_ref, attn_sc):
        x = h_ref[...].reshape(M, HIDDEN)                       # (M, H) f32 slab

        # ---- attention: LN1 + fused QKV + per-head SDPA + ONE out-proj -------
        y = _ln(x, ln1g_ref[...], ln1b_ref[...])
        qkv = jnp.dot(y.astype(jnp.bfloat16), inw_ref[...],
                      preferred_element_type=jnp.float32) + inb_ref[...]
        qkv3 = qkv.reshape(B_BLK, SEQ_PAD, 3 * HIDDEN)
        kbias = mask_ref[...].reshape(1, 1, SEQ_PAD)            # -inf on pad keys

        # TODO(synk): at real HEADS=12 use lax.fori_loop (bounded live ranges)
        # and lane-align head columns (two 64-wide heads per 128-lane group).
        for hd in range(HEADS):
            lo = hd * HEAD_DIM
            hi = lo + HEAD_DIM
            q = qkv3[:, :, lo:hi].astype(jnp.bfloat16)
            k = qkv3[:, :, HIDDEN + lo:HIDDEN + hi].astype(jnp.bfloat16)
            v = qkv3[:, :, 2 * HIDDEN + lo:2 * HIDDEN + hi].astype(jnp.bfloat16)
            s = jnp.einsum('bqd,bkd->bqk', q, k,
                           preferred_element_type=jnp.float32) * ATTN_SCALE
            s = s + kbias
            s = s - jnp.max(s, axis=-1, keepdims=True)
            p = jnp.exp(s)
            p = p * pl.reciprocal(jnp.sum(p, axis=-1, keepdims=True), approx=True)
            o_h = jnp.einsum('bqk,bkd->bqd', p.astype(jnp.bfloat16), v,
                             preferred_element_type=jnp.float32)
            # concat heads via static lane-offset writes into VMEM scratch
            attn_sc[:, lo:hi] = o_h.reshape(M, HEAD_DIM)

        attn = jnp.dot(attn_sc[...].astype(jnp.bfloat16), outw_ref[...],
                       preferred_element_type=jnp.float32) + outb_ref[...]
        h1 = x + attn                                           # fused residual

        # ---- MLP: LN2 + fc1 + exact-erf GELU + fc2 + residual ----------------
        y2 = _ln(h1, ln2g_ref[...], ln2b_ref[...])
        z = jnp.dot(y2.astype(jnp.bfloat16), fc1w_ref[...],
                    preferred_element_type=jnp.float32) + fc1b_ref[...]
        z = _gelu(z)
        m = jnp.dot(z.astype(jnp.bfloat16), fc2w_ref[...],
                    preferred_element_type=jnp.float32) + fc2b_ref[...]
        o_ref[...] = (h1 + m).reshape(B_BLK, SEQ_PAD, HIDDEN)   # fused residual

    def full2(shp):
        return pl.BlockSpec(shp, lambda i: (0, 0))

    return pl.pallas_call(
        kernel,
        out_shape=jax.ShapeDtypeStruct((B, SEQ_PAD, HIDDEN), jnp.float32),
        grid=(B // B_BLK,),
        in_specs=[
            pl.BlockSpec((B_BLK, SEQ_PAD, HIDDEN), lambda i: (i, 0, 0)),
            full2((1, SEQ_PAD)),                                       # key mask
            full2((1, HIDDEN)), full2((1, HIDDEN)),                    # ln1
            full2((HIDDEN, 3 * HIDDEN)), full2((1, 3 * HIDDEN)),       # in_proj
            full2((HIDDEN, HIDDEN)), full2((1, HIDDEN)),               # out_proj
            full2((1, HIDDEN)), full2((1, HIDDEN)),                    # ln2
            full2((HIDDEN, MLP_DIM)), full2((1, MLP_DIM)),             # fc1
            full2((MLP_DIM, HIDDEN)), full2((1, HIDDEN)),              # fc2
        ],
        out_specs=pl.BlockSpec((B_BLK, SEQ_PAD, HIDDEN), lambda i: (i, 0, 0)),
        scratch_shapes=[pltpu.VMEM((M, HIDDEN), jnp.float32)],
        compiler_params=pltpu.CompilerParams(dimension_semantics=("parallel",)),
    )(h, key_bias,
      lw["ln1_g"], lw["ln1_b"], lw["in_w_t"], lw["in_b"],
      lw["out_w_t"], lw["out_b"], lw["ln2_g"], lw["ln2_b"],
      lw["fc1_w_t"], lw["fc1_b"], lw["fc2_w_t"], lw["fc2_b"])


def ln_head(cls_tokens, g, b, w_pad, b_pad):
    """Final encoder LN (class token only) + lane-padded classification head."""
    B = cls_tokens.shape[0]

    def kernel(x_ref, g_ref, b_ref, w_ref, hb_ref, o_ref):
        y = _ln(x_ref[...], g_ref[...], b_ref[...])
        o = jnp.dot(y.astype(jnp.bfloat16), w_ref[...],
                    preferred_element_type=jnp.float32) + hb_ref[...]
        o_ref[...] = o

    return pl.pallas_call(
        kernel,
        out_shape=jax.ShapeDtypeStruct((B, HEAD_PAD), jnp.float32),
        grid=(1,),
        in_specs=[
            pl.BlockSpec((B, HIDDEN), lambda i: (0, 0)),
            pl.BlockSpec((1, HIDDEN), lambda i: (0, 0)),
            pl.BlockSpec((1, HIDDEN), lambda i: (0, 0)),
            pl.BlockSpec((HIDDEN, HEAD_PAD), lambda i: (0, 0)),
            pl.BlockSpec((1, HEAD_PAD), lambda i: (0, 0)),
        ],
        out_specs=pl.BlockSpec((B, HEAD_PAD), lambda i: (0, 0)),
    )(cls_tokens, g, b, w_pad, b_pad)


# --------------------------- parameter setup ---------------------------------
def _bilinear_matrix(out_size, in_size):
    """Row-interpolation matrix matching F.interpolate(bilinear, align_corners=False)."""
    i = np.arange(out_size, dtype=np.float64)
    src = (i + 0.5) * in_size / out_size - 0.5
    src = np.clip(src, 0.0, in_size - 1)
    lo = np.floor(src).astype(np.int64)
    hi = np.minimum(lo + 1, in_size - 1)
    w_hi = (src - lo).astype(np.float32)
    w_lo = 1.0 - w_hi
    A = np.zeros((out_size, in_size), np.float32)
    A[np.arange(out_size), lo] += w_lo
    A[np.arange(out_size), hi] += w_hi
    return A


def init_params(key):
    """All weights pre-transposed / pre-cast / pre-padded once (no per-forward prep)."""
    keys = jax.random.split(key, 64)
    ki = iter(keys)
    scale = 0.02

    def randn(shape):
        return scale * jax.random.normal(next(ki), shape, jnp.float32)

    A = jnp.asarray(_bilinear_matrix(IMG_OUT, IMG_IN))
    conv_w = randn((HIDDEN, 3, PATCH, PATCH))             # conv_proj weight (torch layout)
    head_w = randn((NUM_CLASSES, HIDDEN))                 # new Linear head (torch layout)
    head_b = jnp.zeros((NUM_CLASSES,), jnp.float32)
    w_pad = jnp.zeros((HIDDEN, HEAD_PAD), jnp.float32).at[:, :NUM_CLASSES].set(head_w.T)
    b_pad = jnp.zeros((1, HEAD_PAD), jnp.float32).at[:, :NUM_CLASSES].set(head_b[None])
    key_bias = jnp.where(jnp.arange(SEQ_PAD)[None, :] < SEQ,
                         0.0, NEG_INF).astype(jnp.float32)          # (1, SEQ_PAD)

    params = {
        "resize_h": A.astype(jnp.bfloat16),
        "resize_w": A.astype(jnp.bfloat16),
        "conv_w_t": conv_w.reshape(HIDDEN, KDIM).T.astype(jnp.bfloat16),
        "conv_b": jnp.zeros((1, HIDDEN), jnp.float32),
        "cls_token": randn((1, HIDDEN)),
        "pos_embedding": randn((SEQ, HIDDEN)),
        "ln_g": jnp.ones((1, HIDDEN), jnp.float32),        # final encoder LN
        "ln_b": jnp.zeros((1, HIDDEN), jnp.float32),
        "head_w_pad": w_pad.astype(jnp.bfloat16),
        "head_b_pad": b_pad,
        "key_bias": key_bias,
        "layers": [],
    }
    for _ in range(LAYERS):
        in_w = randn((3 * HIDDEN, HIDDEN))                 # MHA in_proj_weight
        out_w = randn((HIDDEN, HIDDEN))                    # MHA out_proj
        fc1_w = randn((MLP_DIM, HIDDEN))
        fc2_w = randn((HIDDEN, MLP_DIM))
        params["layers"].append({
            "ln1_g": jnp.ones((1, HIDDEN), jnp.float32),
            "ln1_b": jnp.zeros((1, HIDDEN), jnp.float32),
            "in_w_t": in_w.T.astype(jnp.bfloat16),
            "in_b": jnp.zeros((1, 3 * HIDDEN), jnp.float32),
            "out_w_t": out_w.T.astype(jnp.bfloat16),
            "out_b": jnp.zeros((1, HIDDEN), jnp.float32),
            "ln2_g": jnp.ones((1, HIDDEN), jnp.float32),
            "ln2_b": jnp.zeros((1, HIDDEN), jnp.float32),
            "fc1_w_t": fc1_w.T.astype(jnp.bfloat16),
            "fc1_b": jnp.zeros((1, MLP_DIM), jnp.float32),
            "fc2_w_t": fc2_w.T.astype(jnp.bfloat16),
            "fc2_b": jnp.zeros((1, HIDDEN), jnp.float32),
        })
    return params


# ------------------------------ forward pass ---------------------------------
def vit_forward(x, params):
    B, C, Hin, Win = x.shape
    assert (C, Hin, Win) == (3, IMG_IN, IMG_IN)

    # 1) bilinear upsample (align_corners=False), all planes in one kernel call.
    x_up = bilinear_resize(x.reshape(B * C, IMG_IN, IMG_IN),
                           params["resize_h"], params["resize_w"])
    x_up = x_up.reshape(B, C, IMG_OUT, IMG_OUT)

    # 2) patchify (layout plumbing in XLA) + batched conv_proj-as-matmul + pos.
    p = x_up.reshape(B, C, N_PATCH, PATCH, N_PATCH, PATCH)
    p = p.transpose(0, 2, 4, 1, 3, 5).reshape(B * NP2, KDIM)      # bf16 already
    pos = params["pos_embedding"]                                 # (SEQ, HIDDEN)
    tokens = patch_embed(p, params["conv_w_t"], params["conv_b"], pos[1:, :])

    # 3) prepend class token (with its positional embedding) and pad SEQ -> SEQ_PAD.
    cls = params["cls_token"] + pos[0:1, :]                       # (1, HIDDEN)
    h = jnp.concatenate(
        [jnp.broadcast_to(cls[None], (B, 1, HIDDEN)), tokens], axis=1)
    h = jnp.pad(h, ((0, 0), (0, SEQ_PAD - SEQ), (0, 0)))          # (B, SEQ_PAD, H)

    # 4) transformer encoder: one fused Pallas kernel per layer, whole batch per
    #    grid step (dropout = identity, eval semantics); padded keys masked to -inf.
    for lw in params["layers"]:
        h = encoder_layer(h, lw, params["key_bias"])

    # 5) final LN on the class token + classification head (padded to 128 lanes
    #    inside the kernel; sliced back to NUM_CLASSES here).
    cls_out = h[:, 0, :]                                          # (B, HIDDEN)
    logits_pad = ln_head(cls_out, params["ln_g"], params["ln_b"],
                         params["head_w_pad"], params["head_b_pad"])
    return logits_pad[:, :NUM_CLASSES]                            # (B, NUM_CLASSES)


if __name__ == "__main__":
    key = jax.random.PRNGKey(0)
    pkey, xkey = jax.random.split(key)
    params = init_params(pkey)
    x = jax.random.normal(xkey, (2, 3, IMG_IN, IMG_IN), jnp.float32)
    logits = jax.jit(vit_forward)(x, params)
    jax.block_until_ready(logits)
    assert logits.shape == (2, NUM_CLASSES)
    assert bool(jnp.all(jnp.isfinite(logits)))
    print("KERNEL_OK")
</pallas_src>

<mosaic_0001>
module attributes {stable_mosaic.version = 11 : i64} {
  func.func @kernel(%arg0: i32, %arg1: memref<6x32x32xf32, #tpu.memory_space<vmem>>, %arg2: memref<64x32xbf16, #tpu.memory_space<vmem>>, %arg3: memref<64x32xbf16, #tpu.memory_space<vmem>>, %arg4: memref<6x64x64xbf16, #tpu.memory_space<vmem>>) attributes {dimension_semantics = [#tpu.dimension_semantics<arbitrary>], iteration_bounds = array<i64: 1>, scalar_prefetch = 0 : i64, scratch_operands = 0 : i64, tpu.core_type = #tpu.core_type<tc>, window_params = [{pipeline_mode = #tpu.pipeline_mode<synchronous>, transform_indices = @transform_0, window_bounds = array<i64: 6, 32, 32>}, {pipeline_mode = #tpu.pipeline_mode<synchronous>, transform_indices = @transform_1, window_bounds = array<i64: 64, 32>}, {pipeline_mode = #tpu.pipeline_mode<synchronous>, transform_indices = @transform_2, window_bounds = array<i64: 64, 32>}, {pipeline_mode = #tpu.pipeline_mode<synchronous>, transform_indices = @transform_3, window_bounds = array<i64: 6, 64, 64>}]} {
    %c0 = arith.constant 0 : index
    %c0_0 = arith.constant 0 : index
    %c0_1 = arith.constant 0 : index
    %0 = vector.load %arg1[%c0, %c0_0, %c0_1] : memref<6x32x32xf32, #tpu.memory_space<vmem>>, vector<6x32x32xf32>
    %1 = vector.shape_cast %0 : vector<6x32x32xf32> to vector<192x32xf32>
    %2 = arith.truncf %1 : vector<192x32xf32> to vector<192x32xbf16>
    %c0_2 = arith.constant 0 : index
    %c0_3 = arith.constant 0 : index
    %3 = vector.load %arg3[%c0_2, %c0_3] : memref<64x32xbf16, #tpu.memory_space<vmem>>, vector<64x32xbf16>
    %cst = arith.constant dense<0.000000e+00> : vector<192x64xf32>
    %4 = tpu.matmul %2, %3, %cst {dimension_numbers = #tpu.dot_dimension_numbers<[1], [1], [0], [0], [0, 0, 1, 0], [], []>} : vector<192x32xbf16>, vector<64x32xbf16>, vector<192x64xf32> -> vector<192x64xf32>
    %5 = vector.shape_cast %4 : vector<192x64xf32> to vector<6x32x64xf32>
    %6 = arith.truncf %5 : vector<6x32x64xf32> to vector<6x32x64xbf16>
    %c0_4 = arith.constant 0 : index
    %c0_5 = arith.constant 0 : index
    %7 = vector.load %arg2[%c0_4, %c0_5] : memref<64x32xbf16, #tpu.memory_space<vmem>>, vector<64x32xbf16>
    %8 = vector.shape_cast %7 : vector<64x32xbf16> to vector<1x64x32xbf16>
    %9 = vector.broadcast %8 : vector<1x64x32xbf16> to vector<6x64x32xbf16>
    "tpu.trace_start"() <{level = 10 : i32, message = "phk,pkw->phw"}> : () -> ()
    %cst_6 = arith.constant dense<0.000000e+00> : vector<6x64x64xf32>
    %10 = tpu.matmul %9, %6, %cst_6 {dimension_numbers = #tpu.dot_dimension_numbers<[2], [1], [1], [2], [0, 0, 0, 1, 1, 2], [0], [0]>} : vector<6x64x32xbf16>, vector<6x32x64xbf16>, vector<6x64x64xf32> -> vector<6x64x64xf32>
    "tpu.trace_stop"() : () -> ()
    %11 = arith.truncf %10 : vector<6x64x64xf32> to vector<6x64x64xbf16>
    %c0_7 = arith.constant 0 : index
    %c0_8 = arith.constant 0 : index
    %c0_9 = arith.constant 0 : index
    %12 = vector.load %arg4[%c0_7, %c0_8, %c0_9] : memref<6x64x64xbf16, #tpu.memory_space<vmem>>, vector<6x64x64xbf16>
    tpu.vector_store %arg4[%c0_7, %c0_8, %c0_9], %11 {strides = array<i32>} : memref<6x64x64xbf16, #tpu.memory_space<vmem>>, vector<6x64x64xbf16>,
    return
  }
  func.func @transform_0(%arg0: i32) -> (i32, i32, i32) {
    %c0_i32 = arith.constant 0 : i32
    %c0_i32_0 = arith.constant 0 : i32
    %c0_i32_1 = arith.constant 0 : i32
    %c0_i32_2 = arith.constant 0 : i32
    return %c0_i32, %c0_i32_0, %c0_i32_1 : i32, i32, i32
  }
  func.func @transform_1(%arg0: i32) -> (i32, i32) {
    %c0_i32 = arith.constant 0 : i32
    %c0_i32_0 = arith.constant 0 : i32
    %c0_i32_1 = arith.constant 0 : i32
    return %c0_i32, %c0_i32_0 : i32, i32
  }
  func.func @transform_2(%arg0: i32) -> (i32, i32) {
    %c0_i32 = arith.constant 0 : i32
    %c0_i32_0 = arith.constant 0 : i32
    %c0_i32_1 = arith.constant 0 : i32
    return %c0_i32, %c0_i32_0 : i32, i32
  }
  func.func @transform_3(%arg0: i32) -> (i32, i32, i32) {
    %c0_i32 = arith.constant 0 : i32
    %c0_i32_0 = arith.constant 0 : i32
    %c0_i32_1 = arith.constant 0 : i32
    %c0_i32_2 = arith.constant 0 : i32
    return %c0_i32, %c0_i32_0, %c0_i32_1 : i32, i32, i32
  }
}

module attributes {stable_mosaic.version = 11 : i64} {
  func.func @kernel(%arg0: i32, %arg1: memref<32x768xbf16, #tpu.memory_space<vmem>>, %arg2: memref<768x64xbf16, #tpu.memory_space<vmem>>, %arg3: memref<1x64xf32, #tpu.memory_space<vmem>>, %arg4: memref<16x64xf32, #tpu.memory_space<vmem>>, %arg5: memref<2x16x64xf32, #tpu.memory_space<vmem>>) attributes {dimension_semantics = [#tpu.dimension_semantics<arbitrary>], iteration_bounds = array<i64: 1>, scalar_prefetch = 0 : i64, scratch_operands = 0 : i64, tpu.core_type = #tpu.core_type<tc>, window_params = [{pipeline_mode = #tpu.pipeline_mode<synchronous>, transform_indices = @transform_0, window_bounds = array<i64: 32, 768>}, {pipeline_mode = #tpu.pipeline_mode<synchronous>, transform_indices = @transform_1, window_bounds = array<i64: 768, 64>}, {pipeline_mode = #tpu.pipeline_mode<synchronous>, transform_indices = @transform_2, window_bounds = array<i64: 1, 64>}, {pipeline_mode = #tpu.pipeline_mode<synchronous>, transform_indices = @transform_3, window_bounds = array<i64: 16, 64>}, {pipeline_mode = #tpu.pipeline_mode<synchronous>, transform_indices = @transform_4, window_bounds = array<i64: 2, 16, 64>}]} {
    %c0 = arith.constant 0 : index
    %c0_0 = arith.constant 0 : index
    %0 = vector.load %arg1[%c0, %c0_0] : memref<32x768xbf16, #tpu.memory_space<vmem>>, vector<32x768xbf16>
    %c0_1 = arith.constant 0 : index
    %c0_2 = arith.constant 0 : index
    %1 = vector.load %arg2[%c0_1, %c0_2] : memref<768x64xbf16, #tpu.memory_space<vmem>>, vector<768x64xbf16>
    %cst = arith.constant dense<0.000000e+00> : vector<32x64xf32>
    %2 = tpu.matmul %0, %1, %cst {dimension_numbers = #tpu.dot_dimension_numbers<[1], [0], [0], [1], [0, 0, 1, 1], [], []>} : vector<32x768xbf16>, vector<768x64xbf16>, vector<32x64xf32> -> vector<32x64xf32>
    %c0_3 = arith.constant 0 : index
    %c0_4 = arith.constant 0 : index
    %3 = vector.load %arg3[%c0_3, %c0_4] : memref<1x64xf32, #tpu.memory_space<vmem>>, vector<1x64xf32>
    %4 = vector.broadcast %3 : vector<1x64xf32> to vector<32x64xf32>
    %5 = arith.addf %2, %4 : vector<32x64xf32>
    %6 = vector.shape_cast %5 : vector<32x64xf32> to vector<2x16x64xf32>
    %c0_5 = arith.constant 0 : index
    %c0_6 = arith.constant 0 : index
    %7 = vector.load %arg4[%c0_5, %c0_6] : memref<16x64xf32, #tpu.memory_space<vmem>>, vector<16x64xf32>
    %8 = vector.shape_cast %7 : vector<16x64xf32> to vector<1x16x64xf32>
    %9 = vector.broadcast %8 : vector<1x16x64xf32> to vector<2x16x64xf32>
    %10 = arith.addf %6, %9 : vector<2x16x64xf32>
    %c0_7 = arith.constant 0 : index
    %c0_8 = arith.constant 0 : index
    %c0_9 = arith.constant 0 : index
    %11 = vector.load %arg5[%c0_7, %c0_8, %c0_9] : memref<2x16x64xf32, #tpu.memory_space<vmem>>, vector<2x16x64xf32>
    tpu.vector_store %arg5[%c0_7, %c0_8, %c0_9], %10 {strides = array<i32>} : memref<2x16x64xf32, #tpu.memory_space<vmem>>, vector<2x16x64xf32>,
    return
  }
  func.func @transform_0(%arg0: i32) -> (i32, i32) {
    %c0_i32 = arith.constant 0 : i32
    %c0_i32_0 = arith.constant 0 : i32
    %c0_i32_1 = arith.constant 0 : i32
    return %c0_i32, %c0_i32_0 : i32, i32
  }
  func.func @transform_1(%arg0: i32) -> (i32, i32) {
    %c0_i32 = arith.constant 0 : i32
    %c0_i32_0 = arith.constant 0 : i32
    %c0_i32_1 = arith.constant 0 : i32
    return %c0_i32, %c0_i32_0 : i32, i32
  }
  func.func @transform_2(%arg0: i32) -> (i32, i32) {
    %c0_i32 = arith.constant 0 : i32
    %c0_i32_0 = arith.constant 0 : i32
    %c0_i32_1 = arith.constant 0 : i32
    return %c0_i32, %c0_i32_0 : i32, i32
  }
  func.func @transform_3(%arg0: i32) -> (i32, i32) {
    %c0_i32 = arith.constant 0 : i32
    %c0_i32_0 = arith.constant 0 : i32
    %c0_i32_1 = arith.constant 0 : i32
    return %c0_i32, %c0_i32_0 : i32, i32
  }
  func.func @transform_4(%arg0: i32) -> (i32, i32, i32) {
    %c0_i32 = arith.constant 0 : i32
    %c0_i32_0 = arith.constant 0 : i32
    %c0_i32_1 = arith.constant 0 : i32
    %c0_i32_2 = arith.constant 0 : i32
    return %c0_i32, %c0_i32_0, %c0_i32_1 : i32, i32, i32
  }
}

module attributes {stable_mosaic.version = 11 : i64} {
  func.func @kernel(%arg0: i32, %arg1: memref<2x64xf32, #tpu.memory_space<vmem>>, %arg2: memref<1x64xf32, #tpu.memory_space<vmem>>, %arg3: memref<1x64xf32, #tpu.memory_space<vmem>>, %arg4: memref<64x128xbf16, #tpu.memory_space<vmem>>, %arg5: memref<1x128xf32, #tpu.memory_space<vmem>>, %arg6: memref<2x128xf32, #tpu.memory_space<vmem>>) attributes {dimension_semantics = [#tpu.dimension_semantics<arbitrary>], iteration_bounds = array<i64: 1>, scalar_prefetch = 0 : i64, scratch_operands = 0 : i64, tpu.core_type = #tpu.core_type<tc>, window_params = [{pipeline_mode = #tpu.pipeline_mode<synchronous>, transform_indices = @transform_0, window_bounds = array<i64: 2, 64>}, {pipeline_mode = #tpu.pipeline_mode<synchronous>, transform_indices = @transform_1, window_bounds = array<i64: 1, 64>}, {pipeline_mode = #tpu.pipeline_mode<synchronous>, transform_indices = @transform_2, window_bounds = array<i64: 1, 64>}, {pipeline_mode = #tpu.pipeline_mode<synchronous>, transform_indices = @transform_3, window_bounds = array<i64: 64, 128>}, {pipeline_mode = #tpu.pipeline_mode<synchronous>, transform_indices = @transform_4, window_bounds = array<i64: 1, 128>}, {pipeline_mode = #tpu.pipeline_mode<synchronous>, transform_indices = @transform_5, window_bounds = array<i64: 2, 128>}]} {
    %c0 = arith.constant 0 : index
    %c0_0 = arith.constant 0 : index
    %0 = vector.load %arg1[%c0, %c0_0] : memref<2x64xf32, #tpu.memory_space<vmem>>, vector<2x64xf32>
    %c0_1 = arith.constant 0 : index
    %c0_2 = arith.constant 0 : index
    %1 = vector.load %arg2[%c0_1, %c0_2] : memref<1x64xf32, #tpu.memory_space<vmem>>, vector<1x64xf32>
    %c0_3 = arith.constant 0 : index
    %c0_4 = arith.constant 0 : index
    %2 = vector.load %arg3[%c0_3, %c0_4] : memref<1x64xf32, #tpu.memory_space<vmem>>, vector<1x64xf32>
    %cst = arith.constant dense<0.000000e+00> : vector<2xf32>
    %3 = vector.multi_reduction <add>, %0, %cst [1] : vector<2x64xf32> to vector<2xf32>
    %4 = vector.shape_cast %3 : vector<2xf32> to vector<2x1xf32>
    %cst_5 = arith.constant 6.400000e+01 : f32
    %5 = vector.broadcast %cst_5 : f32 to vector<2x1xf32>
    %6 = arith.divf %4, %5 : vector<2x1xf32>
    %7 = vector.broadcast %6 : vector<2x1xf32> to vector<2x64xf32>
    %8 = arith.subf %0, %7 : vector<2x64xf32>
    %9 = arith.mulf %8, %8 : vector<2x64xf32>
    %cst_6 = arith.constant dense<0.000000e+00> : vector<2xf32>
    %10 = vector.multi_reduction <add>, %9, %cst_6 [1] : vector<2x64xf32> to vector<2xf32>
    %11 = vector.shape_cast %10 : vector<2xf32> to vector<2x1xf32>
    %cst_7 = arith.constant 6.400000e+01 : f32
    %12 = vector.broadcast %cst_7 : f32 to vector<2x1xf32>
    %13 = arith.divf %11, %12 : vector<2x1xf32>
    %14 = vector.broadcast %6 : vector<2x1xf32> to vector<2x64xf32>
    %15 = arith.subf %0, %14 : vector<2x64xf32>
    %cst_8 = arith.constant 9.99999997E-7 : f32
    %16 = vector.broadcast %cst_8 : f32 to vector<2x1xf32>
    %17 = arith.addf %13, %16 : vector<2x1xf32>
    %18 = math.rsqrt %17 : vector<2x1xf32>
    %19 = vector.broadcast %18 : vector<2x1xf32> to vector<2x64xf32>
    %20 = arith.mulf %15, %19 : vector<2x64xf32>
    %21 = vector.broadcast %1 : vector<1x64xf32> to vector<2x64xf32>
    %22 = arith.mulf %20, %21 : vector<2x64xf32>
    %23 = vector.broadcast %2 : vector<1x64xf32> to vector<2x64xf32>
    %24 = arith.addf %22, %23 : vector<2x64xf32>
    %25 = arith.truncf %24 : vector<2x64xf32> to vector<2x64xbf16>
    %c0_9 = arith.constant 0 : index
    %c0_10 = arith.constant 0 : index
    %26 = vector.load %arg4[%c0_9, %c0_10] : memref<64x128xbf16, #tpu.memory_space<vmem>>, vector<64x128xbf16>
    %cst_11 = arith.constant dense<0.000000e+00> : vector<2x128xf32>
    %27 = tpu.matmul %25, %26, %cst_11 {dimension_numbers = #tpu.dot_dimension_numbers<[1], [0], [0], [1], [0, 0, 1, 1], [], []>} : vector<2x64xbf16>, vector<64x128xbf16>, vector<2x128xf32> -> vector<2x128xf32>
    %c0_12 = arith.constant 0 : index
    %c0_13 = arith.constant 0 : index
    %28 = vector.load %arg5[%c0_12, %c0_13] : memref<1x128xf32, #tpu.memory_space<vmem>>, vector<1x128xf32>
    %29 = vector.broadcast %28 : vector<1x128xf32> to vector<2x128xf32>
    %30 = arith.addf %27, %29 : vector<2x128xf32>
    %c0_14 = arith.constant 0 : index
    %c0_15 = arith.constant 0 : index
    %31 = vector.load %arg6[%c0_14, %c0_15] : memref<2x128xf32, #tpu.memory_space<vmem>>, vector<2x128xf32>
    tpu.vector_store %arg6[%c0_14, %c0_15], %30 {strides = array<i32>} : memref<2x128xf32, #tpu.memory_space<vmem>>, vector<2x128xf32>,
    return
  }
  func.func @transform_0(%arg0: i32) -> (i32, i32) {
    %c0_i32 = arith.constant 0 : i32
    %c0_i32_0 = arith.constant 0 : i32
    %c0_i32_1 = arith.constant 0 : i32
    return %c0_i32, %c0_i32_0 : i32, i32
  }
  func.func @transform_1(%arg0: i32) -> (i32, i32) {
    %c0_i32 = arith.constant 0 : i32
    %c0_i32_0 = arith.constant 0 : i32
    %c0_i32_1 = arith.constant 0 : i32
    return %c0_i32, %c0_i32_0 : i32, i32
  }
  func.func @transform_2(%arg0: i32) -> (i32, i32) {
    %c0_i32 = arith.constant 0 : i32
    %c0_i32_0 = arith.constant 0 : i32
    %c0_i32_1 = arith.constant 0 : i32
    return %c0_i32, %c0_i32_0 : i32, i32
  }
  func.func @transform_3(%arg0: i32) -> (i32, i32) {
    %c0_i32 = arith.constant 0 : i32
    %c0_i32_0 = arith.constant 0 : i32
    %c0_i32_1 = arith.constant 0 : i32
    return %c0_i32, %c0_i32_0 : i32, i32
  }
  func.func @transform_4(%arg0: i32) -> (i32, i32) {
    %c0_i32 = arith.constant 0 : i32
    %c0_i32_0 = arith.constant 0 : i32
    %c0_i32_1 = arith.constant 0 : i32
    return %c0_i32, %c0_i32_0 : i32, i32
  }
  func.func @transform_5(%arg0: i32) -> (i32, i32) {
    %c0_i32 = arith.constant 0 : i32
    %c0_i32_0 = arith.constant 0 : i32
    %c0_i32_1 = arith.constant 0 : i32
    return %c0_i32, %c0_i32_0 : i32, i32
  }
}

module attributes {stable_mosaic.version = 11 : i64} {
  func.func @kernel(%arg0: i32, %arg1: memref<2x24x64xf32, #tpu.memory_space<vmem>>, %arg2: memref<1x24xf32, #tpu.memory_space<vmem>>, %arg3: memref<1x64xf32, #tpu.memory_space<vmem>>, %arg4: memref<1x64xf32, #tpu.memory_space<vmem>>, %arg5: memref<64x192xbf16, #tpu.memory_space<vmem>>, %arg6: memref<1x192xf32, #tpu.memory_space<vmem>>, %arg7: memref<64x64xbf16, #tpu.memory_space<vmem>>, %arg8: memref<1x64xf32, #tpu.memory_space<vmem>>, %arg9: memref<1x64xf32, #tpu.memory_space<vmem>>, %arg10: memref<1x64xf32, #tpu.memory_space<vmem>>, %arg11: memref<64x128xbf16, #tpu.memory_space<vmem>>, %arg12: memref<1x128xf32, #tpu.memory_space<vmem>>, %arg13: memref<128x64xbf16, #tpu.memory_space<vmem>>, %arg14: memref<1x64xf32, #tpu.memory_space<vmem>>, %arg15: memref<2x24x64xf32, #tpu.memory_space<vmem>>, %arg16: memref<48x64xf32, #tpu.memory_space<vmem>>) attributes {dimension_semantics = [#tpu.dimension_semantics<parallel>], iteration_bounds = array<i64: 1>, scalar_prefetch = 0 : i64, scratch_operands = 1 : i64, tpu.core_type = #tpu.core_type<tc>, window_params = [{transform_indices = @transform_0, window_bounds = array<i64: 2, 24, 64>}, {pipeline_mode = #tpu.pipeline_mode<synchronous>, transform_indices = @transform_1, window_bounds = array<i64: 1, 24>}, {pipeline_mode = #tpu.pipeline_mode<synchronous>, transform_indices = @transform_2, window_bounds = array<i64: 1, 64>}, {pipeline_mode = #tpu.pipeline_mode<synchronous>, transform_indices = @transform_3, window_bounds = array<i64: 1, 64>}, {pipeline_mode = #tpu.pipeline_mode<synchronous>, transform_indices = @transform_4, window_bounds = array<i64: 64, 192>}, {pipeline_mode = #tpu.pipeline_mode<synchronous>, transform_indices = @transform_5, window_bounds = array<i64: 1, 192>}, {pipeline_mode = #tpu.pipeline_mode<synchronous>, transform_indices = @transform_6, window_bounds = array<i64: 64, 64>}, {pipeline_mode = #tpu.pipeline_mode<synchronous>, transform_indices = @transform_7, window_bounds = array<i64: 1, 64>}, {pipeline_mode = #tpu.pipeline_mode<synchronous>, transform_indices = @transform_8, window_bounds = array<i64: 1, 64>}, {pipeline_mode = #tpu.pipeline_mode<synchronous>, transform_indices = @transform_9, window_bounds = array<i64: 1, 64>}, {pipeline_mode = #tpu.pipeline_mode<synchronous>, transform_indices = @transform_10, window_bounds = array<i64: 64, 128>}, {pipeline_mode = #tpu.pipeline_mode<synchronous>, transform_indices = @transform_11, window_bounds = array<i64: 1, 128>}, {pipeline_mode = #tpu.pipeline_mode<synchronous>, transform_indices = @transform_12, window_bounds = array<i64: 128, 64>}, {pipeline_mode = #tpu.pipeline_mode<synchronous>, transform_indices = @transform_13, window_bounds = array<i64: 1, 64>}, {transform_indices = @transform_14, window_bounds = array<i64: 2, 24, 64>}]} {
    %c0 = arith.constant 0 : index
    %c0_0 = arith.constant 0 : index
    %c0_1 = arith.constant 0 : index
    %0 = vector.load %arg1[%c0, %c0_0, %c0_1] : memref<2x24x64xf32, #tpu.memory_space<vmem>>, vector<2x24x64xf32>
    %1 = vector.shape_cast %0 : vector<2x24x64xf32> to vector<48x64xf32>
    %c0_2 = arith.constant 0 : index
    %c0_3 = arith.constant 0 : index
    %2 = vector.load %arg3[%c0_2, %c0_3] : memref<1x64xf32, #tpu.memory_space<vmem>>, vector<1x64xf32>
    %c0_4 = arith.constant 0 : index
    %c0_5 = arith.constant 0 : index
    %3 = vector.load %arg4[%c0_4, %c0_5] : memref<1x64xf32, #tpu.memory_space<vmem>>, vector<1x64xf32>
    %cst = arith.constant dense<0.000000e+00> : vector<48xf32>
    %4 = vector.multi_reduction <add>, %1, %cst [1] : vector<48x64xf32> to vector<48xf32>
    %5 = vector.shape_cast %4 : vector<48xf32> to vector<48x1xf32>
    %cst_6 = arith.constant 6.400000e+01 : f32
    %6 = vector.broadcast %cst_6 : f32 to vector<48x1xf32>
    %7 = arith.divf %5, %6 : vector<48x1xf32>
    %8 = vector.broadcast %7 : vector<48x1xf32> to vector<48x64xf32>
    %9 = arith.subf %1, %8 : vector<48x64xf32>
    %10 = arith.mulf %9, %9 : vector<48x64xf32>
    %cst_7 = arith.constant dense<0.000000e+00> : vector<48xf32>
    %11 = vector.multi_reduction <add>, %10, %cst_7 [1] : vector<48x64xf32> to vector<48xf32>
    %12 = vector.shape_cast %11 : vector<48xf32> to vector<48x1xf32>
    %cst_8 = arith.constant 6.400000e+01 : f32
    %13 = vector.broadcast %cst_8 : f32 to vector<48x1xf32>
    %14 = arith.divf %12, %13 : vector<48x1xf32>
    %15 = vector.broadcast %7 : vector<48x1xf32> to vector<48x64xf32>
    %16 = arith.subf %1, %15 : vector<48x64xf32>
    %cst_9 = arith.constant 9.99999997E-7 : f32
    %17 = vector.broadcast %cst_9 : f32 to vector<48x1xf32>
    %18 = arith.addf %14, %17 : vector<48x1xf32>
    %19 = math.rsqrt %18 : vector<48x1xf32>
    %20 = vector.broadcast %19 : vector<48x1xf32> to vector<48x64xf32>
    %21 = arith.mulf %16, %20 : vector<48x64xf32>
    %22 = vector.broadcast %2 : vector<1x64xf32> to vector<48x64xf32>
    %23 = arith.mulf %21, %22 : vector<48x64xf32>
    %24 = vector.broadcast %3 : vector<1x64xf32> to vector<48x64xf32>
    %25 = arith.addf %23, %24 : vector<48x64xf32>
    %26 = arith.truncf %25 : vector<48x64xf32> to vector<48x64xbf16>
    %c0_10 = arith.constant 0 : index
    %c0_11 = arith.constant 0 : index
    %27 = vector.load %arg5[%c0_10, %c0_11] : memref<64x192xbf16, #tpu.memory_space<vmem>>, vector<64x192xbf16>
    %cst_12 = arith.constant dense<0.000000e+00> : vector<48x192xf32>
    %28 = tpu.matmul %26, %27, %cst_12 {dimension_numbers = #tpu.dot_dimension_numbers<[1], [0], [0], [1], [0, 0, 1, 1], [], []>} : vector<48x64xbf16>, vector<64x192xbf16>, vector<48x192xf32> -> vector<48x192xf32>
    %c0_13 = arith.constant 0 : index
    %c0_14 = arith.constant 0 : index
    %29 = vector.load %arg6[%c0_13, %c0_14] : memref<1x192xf32, #tpu.memory_space<vmem>>, vector<1x192xf32>
    %30 = vector.broadcast %29 : vector<1x192xf32> to vector<48x192xf32>
    %31 = arith.addf %28, %30 : vector<48x192xf32>
    %32 = vector.shape_cast %31 : vector<48x192xf32> to vector<2x24x192xf32>
    %c0_15 = arith.constant 0 : index
    %c0_16 = arith.constant 0 : index
    %33 = vector.load %arg2[%c0_15, %c0_16] : memref<1x24xf32, #tpu.memory_space<vmem>>, vector<1x24xf32>
    %34 = vector.shape_cast %33 : vector<1x24xf32> to vector<1x1x24xf32>
    %35 = vector.extract_strided_slice %32 {offsets = [0, 0, 0], sizes = [2, 24, 16], strides = [1, 1, 1]} : vector<2x24x192xf32> to vector<2x24x16xf32>
    %36 = arith.truncf %35 : vector<2x24x16xf32> to vector<2x24x16xbf16>
    %37 = vector.extract_strided_slice %32 {offsets = [0, 0, 64], sizes = [2, 24, 16], strides = [1, 1, 1]} : vector<2x24x192xf32> to vector<2x24x16xf32>
    %38 = arith.truncf %37 : vector<2x24x16xf32> to vector<2x24x16xbf16>
    %39 = vector.extract_strided_slice %32 {offsets = [0, 0, 128], sizes = [2, 24, 16], strides = [1, 1, 1]} : vector<2x24x192xf32> to vector<2x24x16xf32>
    %40 = arith.truncf %39 : vector<2x24x16xf32> to vector<2x24x16xbf16>
    "tpu.trace_start"() <{level = 10 : i32, message = "bqd,bkd->bqk"}> : () -> ()
    %cst_17 = arith.constant dense<0.000000e+00> : vector<2x24x24xf32>
    %41 = tpu.matmul %36, %38, %cst_17 {dimension_numbers = #tpu.dot_dimension_numbers<[2], [2], [1], [1], [0, 0, 0, 1, 1, 1], [0], [0]>} : vector<2x24x16xbf16>, vector<2x24x16xbf16>, vector<2x24x24xf32> -> vector<2x24x24xf32>
    "tpu.trace_stop"() : () -> ()
    %cst_18 = arith.constant 2.500000e-01 : f32
    %42 = vector.broadcast %cst_18 : f32 to vector<2x24x24xf32>
    %43 = arith.mulf %41, %42 : vector<2x24x24xf32>
    %44 = vector.broadcast %34 : vector<1x1x24xf32> to vector<2x24x24xf32>
    %45 = arith.addf %43, %44 : vector<2x24x24xf32>
    %cst_19 = arith.constant dense<0xFF800000> : vector<2x24xf32>
    %46 = vector.multi_reduction <maximumf>, %45, %cst_19 [2] : vector<2x24x24xf32> to vector<2x24xf32>
    %47 = vector.shape_cast %46 : vector<2x24xf32> to vector<2x24x1xf32>
    %48 = vector.broadcast %47 : vector<2x24x1xf32> to vector<2x24x24xf32>
    %49 = arith.subf %45, %48 : vector<2x24x24xf32>
    %50 = math.exp %49 : vector<2x24x24xf32>
    %cst_20 = arith.constant dense<0.000000e+00> : vector<2x24xf32>
    %51 = vector.multi_reduction <add>, %50, %cst_20 [2] : vector<2x24x24xf32> to vector<2x24xf32>
    %52 = vector.shape_cast %51 : vector<2x24xf32> to vector<2x24x1xf32>
    %53 = tpu.reciprocal %52 {approx = true} : vector<2x24x1xf32> -> vector<2x24x1xf32>
    %54 = vector.broadcast %53 : vector<2x24x1xf32> to vector<2x24x24xf32>
    %55 = arith.mulf %50, %54 : vector<2x24x24xf32>
    %56 = arith.truncf %55 : vector<2x24x24xf32> to vector<2x24x24xbf16>
    "tpu.trace_start"() <{level = 10 : i32, message = "bqk,bkd->bqd"}> : () -> ()
    %cst_21 = arith.constant dense<0.000000e+00> : vector<2x24x16xf32>
    %57 = tpu.matmul %56, %40, %cst_21 {dimension_numbers = #tpu.dot_dimension_numbers<[2], [1], [1], [2], [0, 0, 0, 1, 1, 2], [0], [0]>} : vector<2x24x24xbf16>, vector<2x24x16xbf16>, vector<2x24x16xf32> -> vector<2x24x16xf32>
    "tpu.trace_stop"() : () -> ()
    %58 = vector.shape_cast %57 : vector<2x24x16xf32> to vector<48x16xf32>
    %c0_22 = arith.constant 0 : index
    %c0_23 = arith.constant 0 : index
    %59 = vector.load %arg16[%c0_22, %c0_23] : memref<48x64xf32, #tpu.memory_space<vmem>>, vector<48x16xf32>
    tpu.vector_store %arg16[%c0_22, %c0_23], %58 {strides = array<i32>} : memref<48x64xf32, #tpu.memory_space<vmem>>, vector<48x16xf32>,
    %60 = vector.extract_strided_slice %32 {offsets = [0, 0, 16], sizes = [2, 24, 16], strides = [1, 1, 1]} : vector<2x24x192xf32> to vector<2x24x16xf32>
    %61 = arith.truncf %60 : vector<2x24x16xf32> to vector<2x24x16xbf16>
    %62 = vector.extract_strided_slice %32 {offsets = [0, 0, 80], sizes = [2, 24, 16], strides = [1, 1, 1]} : vector<2x24x192xf32> to vector<2x24x16xf32>
    %63 = arith.truncf %62 : vector<2x24x16xf32> to vector<2x24x16xbf16>
    %64 = vector.extract_strided_slice %32 {offsets = [0, 0, 144], sizes = [2, 24, 16], strides = [1, 1, 1]} : vector<2x24x192xf32> to vector<2x24x16xf32>
    %65 = arith.truncf %64 : vector<2x24x16xf32> to vector<2x24x16xbf16>
    "tpu.trace_start"() <{level = 10 : i32, message = "bqd,bkd->bqk"}> : () -> ()
    %cst_24 = arith.constant dense<0.000000e+00> : vector<2x24x24xf32>
    %66 = tpu.matmul %61, %63, %cst_24 {dimension_numbers = #tpu.dot_dimension_numbers<[2], [2], [1], [1], [0, 0, 0, 1, 1, 1], [0], [0]>} : vector<2x24x16xbf16>, vector<2x24x16xbf16>, vector<2x24x24xf32> -> vector<2x24x24xf32>
    "tpu.trace_stop"() : () -> ()
    %cst_25 = arith.constant 2.500000e-01 : f32
    %67 = vector.broadcast %cst_25 : f32 to vector<2x24x24xf32>
    %68 = arith.mulf %66, %67 : vector<2x24x24xf32>
    %69 = vector.broadcast %34 : vector<1x1x24xf32> to vector<2x24x24xf32>
    %70 = arith.addf %68, %69 : vector<2x24x24xf32>
    %cst_26 = arith.constant dense<0xFF800000> : vector<2x24xf32>
    %71 = vector.multi_reduction <maximumf>, %70, %cst_26 [2] : vector<2x24x24xf32> to vector<2x24xf32>
    %72 = vector.shape_cast %71 : vector<2x24xf32> to vector<2x24x1xf32>
    %73 = vector.broadcast %72 : vector<2x24x1xf32> to vector<2x24x24xf32>
    %74 = arith.subf %70, %73 : vector<2x24x24xf32>
    %75 = math.exp %74 : vector<2x24x24xf32>
    %cst_27 = arith.constant dense<0.000000e+00> : vector<2x24xf32>
    %76 = vector.multi_reduction <add>, %75, %cst_27 [2] : vector<2x24x24xf32> to vector<2x24xf32>
    %77 = vector.shape_cast %76 : vector<2x24xf32> to vector<2x24x1xf32>
    %78 = tpu.reciprocal %77 {approx = true} : vector<2x24x1xf32> -> vector<2x24x1xf32>
    %79 = vector.broadcast %78 : vector<2x24x1xf32> to vector<2x24x24xf32>
    %80 = arith.mulf %75, %79 : vector<2x24x24xf32>
    %81 = arith.truncf %80 : vector<2x24x24xf32> to vector<2x24x24xbf16>
    "tpu.trace_start"() <{level = 10 : i32, message = "bqk,bkd->bqd"}> : () -> ()
    %cst_28 = arith.constant dense<0.000000e+00> : vector<2x24x16xf32>
    %82 = tpu.matmul %81, %65, %cst_28 {dimension_numbers = #tpu.dot_dimension_numbers<[2], [1], [1], [2], [0, 0, 0, 1, 1, 2], [0], [0]>} : vector<2x24x24xbf16>, vector<2x24x16xbf16>, vector<2x24x16xf32> -> vector<2x24x16xf32>
    "tpu.trace_stop"() : () -> ()
    %83 = vector.shape_cast %82 : vector<2x24x16xf32> to vector<48x16xf32>
    %c0_29 = arith.constant 0 : index
    %c16 = arith.constant 16 : index
    %84 = vector.load %arg16[%c0_29, %c16] : memref<48x64xf32, #tpu.memory_space<vmem>>, vector<48x16xf32>
    tpu.vector_store %arg16[%c0_29, %c16], %83 {strides = array<i32>} : memref<48x64xf32, #tpu.memory_space<vmem>>, vector<48x16xf32>,
    %85 = vector.extract_strided_slice %32 {offsets = [0, 0, 32], sizes = [2, 24, 16], strides = [1, 1, 1]} : vector<2x24x192xf32> to vector<2x24x16xf32>
    %86 = arith.truncf %85 : vector<2x24x16xf32> to vector<2x24x16xbf16>
    %87 = vector.extract_strided_slice %32 {offsets = [0, 0, 96], sizes = [2, 24, 16], strides = [1, 1, 1]} : vector<2x24x192xf32> to vector<2x24x16xf32>
    %88 = arith.truncf %87 : vector<2x24x16xf32> to vector<2x24x16xbf16>
    %89 = vector.extract_strided_slice %32 {offsets = [0, 0, 160], sizes = [2, 24, 16], strides = [1, 1, 1]} : vector<2x24x192xf32> to vector<2x24x16xf32>
    %90 = arith.truncf %89 : vector<2x24x16xf32> to vector<2x24x16xbf16>
    "tpu.trace_start"() <{level = 10 : i32, message = "bqd,bkd->bqk"}> : () -> ()
    %cst_30 = arith.constant dense<0.000000e+00> : vector<2x24x24xf32>
    %91 = tpu.matmul %86, %88, %cst_30 {dimension_numbers = #tpu.dot_dimension_numbers<[2], [2], [1], [1], [0, 0, 0, 1, 1, 1], [0], [0]>} : vector<2x24x16xbf16>, vector<2x24x16xbf16>, vector<2x24x24xf32> -> vector<2x24x24xf32>
    "tpu.trace_stop"() : () -> ()
    %cst_31 = arith.constant 2.500000e-01 : f32
    %92 = vector.broadcast %cst_31 : f32 to vector<2x24x24xf32>
    %93 = arith.mulf %91, %92 : vector<2x24x24xf32>
    %94 = vector.broadcast %34 : vector<1x1x24xf32> to vector<2x24x24xf32>
    %95 = arith.addf %93, %94 : vector<2x24x24xf32>
    %cst_32 = arith.constant dense<0xFF800000> : vector<2x24xf32>
    %96 = vector.multi_reduction <maximumf>, %95, %cst_32 [2] : vector<2x24x24xf32> to vector<2x24xf32>
    %97 = vector.shape_cast %96 : vector<2x24xf32> to vector<2x24x1xf32>
    %98 = vector.broadcast %97 : vector<2x24x1xf32> to vector<2x24x24xf32>
    %99 = arith.subf %95, %98 : vector<2x24x24xf32>
    %100 = math.exp %99 : vector<2x24x24xf32>
    %cst_33 = arith.constant dense<0.000000e+00> : vector<2x24xf32>
    %101 = vector.multi_reduction <add>, %100, %cst_33 [2] : vector<2x24x24xf32> to vector<2x24xf32>
    %102 = vector.shape_cast %101 : vector<2x24xf32> to vector<2x24x1xf32>
    %103 = tpu.reciprocal %102 {approx = true} : vector<2x24x1xf32> -> vector<2x24x1xf32>
    %104 = vector.broadcast %103 : vector<2x24x1xf32> to vector<2x24x24xf32>
    %105 = arith.mulf %100, %104 : vector<2x24x24xf32>
    %106 = arith.truncf %105 : vector<2x24x24xf32> to vector<2x24x24xbf16>
    "tpu.trace_start"() <{level = 10 : i32, message = "bqk,bkd->bqd"}> : () -> ()
    %cst_34 = arith.constant dense<0.000000e+00> : vector<2x24x16xf32>
    %107 = tpu.matmul %106, %90, %cst_34 {dimension_numbers = #tpu.dot_dimension_numbers<[2], [1], [1], [2], [0, 0, 0, 1, 1, 2], [0], [0]>} : vector<2x24x24xbf16>, vector<2x24x16xbf16>, vector<2x24x16xf32> -> vector<2x24x16xf32>
    "tpu.trace_stop"() : () -> ()
    %108 = vector.shape_cast %107 : vector<2x24x16xf32> to vector<48x16xf32>
    %c0_35 = arith.constant 0 : index
    %c32 = arith.constant 32 : index
    %109 = vector.load %arg16[%c0_35, %c32] : memref<48x64xf32, #tpu.memory_space<vmem>>, vector<48x16xf32>
    tpu.vector_store %arg16[%c0_35, %c32], %108 {strides = array<i32>} : memref<48x64xf32, #tpu.memory_space<vmem>>, vector<48x16xf32>,
    %110 = vector.extract_strided_slice %32 {offsets = [0, 0, 48], sizes = [2, 24, 16], strides = [1, 1, 1]} : vector<2x24x192xf32> to vector<2x24x16xf32>
    %111 = arith.truncf %110 : vector<2x24x16xf32> to vector<2x24x16xbf16>
    %112 = vector.extract_strided_slice %32 {offsets = [0, 0, 112], sizes = [2, 24, 16], strides = [1, 1, 1]} : vector<2x24x192xf32> to vector<2x24x16xf32>
    %113 = arith.truncf %112 : vector<2x24x16xf32> to vector<2x24x16xbf16>
    %114 = vector.extract_strided_slice %32 {offsets = [0, 0, 176], sizes = [2, 24, 16], strides = [1, 1, 1]} : vector<2x24x192xf32> to vector<2x24x16xf32>
    %115 = arith.truncf %114 : vector<2x24x16xf32> to vector<2x24x16xbf16>
    "tpu.trace_start"() <{level = 10 : i32, message = "bqd,bkd->bqk"}> : () -> ()
    %cst_36 = arith.constant dense<0.000000e+00> : vector<2x24x24xf32>
    %116 = tpu.matmul %111, %113, %cst_36 {dimension_numbers = #tpu.dot_dimension_numbers<[2], [2], [1], [1], [0, 0, 0, 1, 1, 1], [0], [0]>} : vector<2x24x16xbf16>, vector<2x24x16xbf16>, vector<2x24x24xf32> -> vector<2x24x24xf32>
    "tpu.trace_stop"() : () -> ()
    %cst_37 = arith.constant 2.500000e-01 : f32
    %117 = vector.broadcast %cst_37 : f32 to vector<2x24x24xf32>
    %118 = arith.mulf %116, %117 : vector<2x24x24xf32>
    %119 = vector.broadcast %34 : vector<1x1x24xf32> to vector<2x24x24xf32>
    %120 = arith.addf %118, %119 : vector<2x24x24xf32>
    %cst_38 = arith.constant dense<0xFF800000> : vector<2x24xf32>
    %121 = vector.multi_reduction <maximumf>, %120, %cst_38 [2] : vector<2x24x24xf32> to vector<2x24xf32>
    %122 = vector.shape_cast %121 : vector<2x24xf32> to vector<2x24x1xf32>
    %123 = vector.broadcast %122 : vector<2x24x1xf32> to vector<2x24x24xf32>
    %124 = arith.subf %120, %123 : vector<2x24x24xf32>
    %125 = math.exp %124 : vector<2x24x24xf32>
    %cst_39 = arith.constant dense<0.000000e+00> : vector<2x24xf32>
    %126 = vector.multi_reduction <add>, %125, %cst_39 [2] : vector<2x24x24xf32> to vector<2x24xf32>
    %127 = vector.shape_cast %126 : vector<2x24xf32> to vector<2x24x1xf32>
    %128 = tpu.reciprocal %127 {approx = true} : vector<2x24x1xf32> -> vector<2x24x1xf32>
    %129 = vector.broadcast %128 : vector<2x24x1xf32> to vector<2x24x24xf32>
    %130 = arith.mulf %125, %129 : vector<2x24x24xf32>
    %131 = arith.truncf %130 : vector<2x24x24xf32> to vector<2x24x24xbf16>
    "tpu.trace_start"() <{level = 10 : i32, message = "bqk,bkd->bqd"}> : () -> ()
    %cst_40 = arith.constant dense<0.000000e+00> : vector<2x24x16xf32>
    %132 = tpu.matmul %131, %115, %cst_40 {dimension_numbers = #tpu.dot_dimension_numbers<[2], [1], [1], [2], [0, 0, 0, 1, 1, 2], [0], [0]>} : vector<2x24x24xbf16>, vector<2x24x16xbf16>, vector<2x24x16xf32> -> vector<2x24x16xf32>
    "tpu.trace_stop"() : () -> ()
    %133 = vector.shape_cast %132 : vector<2x24x16xf32> to vector<48x16xf32>
    %c0_41 = arith.constant 0 : index
    %c48 = arith.constant 48 : index
    %134 = vector.load %arg16[%c0_41, %c48] : memref<48x64xf32, #tpu.memory_space<vmem>>, vector<48x16xf32>
    tpu.vector_store %arg16[%c0_41, %c48], %133 {strides = array<i32>} : memref<48x64xf32, #tpu.memory_space<vmem>>, vector<48x16xf32>,
    %c0_42 = arith.constant 0 : index
    %c0_43 = arith.constant 0 : index
    %135 = vector.load %arg16[%c0_42, %c0_43] : memref<48x64xf32, #tpu.memory_space<vmem>>, vector<48x64xf32>
    %136 = arith.truncf %135 : vector<48x64xf32> to vector<48x64xbf16>
    %c0_44 = arith.constant 0 : index
    %c0_45 = arith.constant 0 : index
    %137 = vector.load %arg7[%c0_44, %c0_45] : memref<64x64xbf16, #tpu.memory_space<vmem>>, vector<64x64xbf16>
    %cst_46 = arith.constant dense<0.000000e+00> : vector<48x64xf32>
    %138 = tpu.matmul %136, %137, %cst_46 {dimension_numbers = #tpu.dot_dimension_numbers<[1], [0], [0], [1], [0, 0, 1, 1], [], []>} : vector<48x64xbf16>, vector<64x64xbf16>, vector<48x64xf32> -> vector<48x64xf32>
    %c0_47 = arith.constant 0 : index
    %c0_48 = arith.constant 0 : index
    %139 = vector.load %arg8[%c0_47, %c0_48] : memref<1x64xf32, #tpu.memory_space<vmem>>, vector<1x64xf32>
    %140 = vector.broadcast %139 : vector<1x64xf32> to vector<48x64xf32>
    %141 = arith.addf %138, %140 : vector<48x64xf32>
    %142 = arith.addf %1, %141 : vector<48x64xf32>
    %c0_49 = arith.constant 0 : index
    %c0_50 = arith.constant 0 : index
    %143 = vector.load %arg9[%c0_49, %c0_50] : memref<1x64xf32, #tpu.memory_space<vmem>>, vector<1x64xf32>
    %c0_51 = arith.constant 0 : index
    %c0_52 = arith.constant 0 : index
    %144 = vector.load %arg10[%c0_51, %c0_52] : memref<1x64xf32, #tpu.memory_space<vmem>>, vector<1x64xf32>
    %cst_53 = arith.constant dense<0.000000e+00> : vector<48xf32>
    %145 = vector.multi_reduction <add>, %142, %cst_53 [1] : vector<48x64xf32> to vector<48xf32>
    %146 = vector.shape_cast %145 : vector<48xf32> to vector<48x1xf32>
    %cst_54 = arith.constant 6.400000e+01 : f32
    %147 = vector.broadcast %cst_54 : f32 to vector<48x1xf32>
    %148 = arith.divf %146, %147 : vector<48x1xf32>
    %149 = vector.broadcast %148 : vector<48x1xf32> to vector<48x64xf32>
    %150 = arith.subf %142, %149 : vector<48x64xf32>
    %151 = arith.mulf %150, %150 : vector<48x64xf32>
    %cst_55 = arith.constant dense<0.000000e+00> : vector<48xf32>
    %152 = vector.multi_reduction <add>, %151, %cst_55 [1] : vector<48x64xf32> to vector<48xf32>
    %153 = vector.shape_cast %152 : vector<48xf32> to vector<48x1xf32>
    %cst_56 = arith.constant 6.400000e+01 : f32
    %154 = vector.broadcast %cst_56 : f32 to vector<48x1xf32>
    %155 = arith.divf %153, %154 : vector<48x1xf32>
    %156 = vector.broadcast %148 : vector<48x1xf32> to vector<48x64xf32>
    %157 = arith.subf %142, %156 : vector<48x64xf32>
    %cst_57 = arith.constant 9.99999997E-7 : f32
    %158 = vector.broadcast %cst_57 : f32 to vector<48x1xf32>
    %159 = arith.addf %155, %158 : vector<48x1xf32>
    %160 = math.rsqrt %159 : vector<48x1xf32>
    %161 = vector.broadcast %160 : vector<48x1xf32> to vector<48x64xf32>
    %162 = arith.mulf %157, %161 : vector<48x64xf32>
    %163 = vector.broadcast %143 : vector<1x64xf32> to vector<48x64xf32>
    %164 = arith.mulf %162, %163 : vector<48x64xf32>
    %165 = vector.broadcast %144 : vector<1x64xf32> to vector<48x64xf32>
    %166 = arith.addf %164, %165 : vector<48x64xf32>
    %167 = arith.truncf %166 : vector<48x64xf32> to vector<48x64xbf16>
    %c0_58 = arith.constant 0 : index
    %c0_59 = arith.constant 0 : index
    %168 = vector.load %arg11[%c0_58, %c0_59] : memref<64x128xbf16, #tpu.memory_space<vmem>>, vector<64x128xbf16>
    %cst_60 = arith.constant dense<0.000000e+00> : vector<48x128xf32>
    %169 = tpu.matmul %167, %168, %cst_60 {dimension_numbers = #tpu.dot_dimension_numbers<[1], [0], [0], [1], [0, 0, 1, 1], [], []>} : vector<48x64xbf16>, vector<64x128xbf16>, vector<48x128xf32> -> vector<48x128xf32>
    %c0_61 = arith.constant 0 : index
    %c0_62 = arith.constant 0 : index
    %170 = vector.load %arg12[%c0_61, %c0_62] : memref<1x128xf32, #tpu.memory_space<vmem>>, vector<1x128xf32>
    %171 = vector.broadcast %170 : vector<1x128xf32> to vector<48x128xf32>
    %172 = arith.addf %169, %171 : vector<48x128xf32>
    %cst_63 = arith.constant 5.000000e-01 : f32
    %173 = vector.broadcast %cst_63 : f32 to vector<48x128xf32>
    %174 = arith.mulf %173, %172 : vector<48x128xf32>
    %cst_64 = arith.constant 0.707106769 : f32
    %175 = vector.broadcast %cst_64 : f32 to vector<48x128xf32>
    %176 = arith.mulf %172, %175 : vector<48x128xf32>
    %177 = math.erf %176 : vector<48x128xf32>
    %cst_65 = arith.constant 1.000000e+00 : f32
    %178 = vector.broadcast %cst_65 : f32 to vector<48x128xf32>
    %179 = arith.addf %178, %177 : vector<48x128xf32>
    %180 = arith.mulf %174, %179 : vector<48x128xf32>
    %181 = arith.truncf %180 : vector<48x128xf32> to vector<48x128xbf16>
    %c0_66 = arith.constant 0 : index
    %c0_67 = arith.constant 0 : index
    %182 = vector.load %arg13[%c0_66, %c0_67] : memref<128x64xbf16, #tpu.memory_space<vmem>>, vector<128x64xbf16>
    %cst_68 = arith.constant dense<0.000000e+00> : vector<48x64xf32>
    %183 = tpu.matmul %181, %182, %cst_68 {dimension_numbers = #tpu.dot_dimension_numbers<[1], [0], [0], [1], [0, 0, 1, 1], [], []>} : vector<48x128xbf16>, vector<128x64xbf16>, vector<48x64xf32> -> vector<48x64xf32>
    %c0_69 = arith.constant 0 : index
    %c0_70 = arith.constant 0 : index
    %184 = vector.load %arg14[%c0_69, %c0_70] : memref<1x64xf32, #tpu.memory_space<vmem>>, vector<1x64xf32>
    %185 = vector.broadcast %184 : vector<1x64xf32> to vector<48x64xf32>
    %186 = arith.addf %183, %185 : vector<48x64xf32>
    %187 = arith.addf %142, %186 : vector<48x64xf32>
    %188 = vector.shape_cast %187 : vector<48x64xf32> to vector<2x24x64xf32>
    %c0_71 = arith.constant 0 : index
    %c0_72 = arith.constant 0 : index
    %c0_73 = arith.constant 0 : index
    %189 = vector.load %arg15[%c0_71, %c0_72, %c0_73] : memref<2x24x64xf32, #tpu.memory_space<vmem>>, vector<2x24x64xf32>
    tpu.vector_store %arg15[%c0_71, %c0_72, %c0_73], %188 {strides = array<i32>} : memref<2x24x64xf32, #tpu.memory_space<vmem>>, vector<2x24x64xf32>,
    return
  }
  func.func @transform_0(%arg0: i32) -> (i32, i32, i32) {
    %c0_i32 = arith.constant 0 : i32
    %c0_i32_0 = arith.constant 0 : i32
    %c0_i32_1 = arith.constant 0 : i32
    return %arg0, %c0_i32, %c0_i32_0 : i32, i32, i32
  }
  func.func @transform_1(%arg0: i32) -> (i32, i32) {
    %c0_i32 = arith.constant 0 : i32
    %c0_i32_0 = arith.constant 0 : i32
    %c0_i32_1 = arith.constant 0 : i32
    return %c0_i32, %c0_i32_0 : i32, i32
  }
  func.func @transform_2(%arg0: i32) -> (i32, i32) {
    %c0_i32 = arith.constant 0 : i32
    %c0_i32_0 = arith.constant 0 : i32
    %c0_i32_1 = arith.constant 0 : i32
    return %c0_i32, %c0_i32_0 : i32, i32
  }
  func.func @transform_3(%arg0: i32) -> (i32, i32) {
    %c0_i32 = arith.constant 0 : i32
    %c0_i32_0 = arith.constant 0 : i32
    %c0_i32_1 = arith.constant 0 : i32
    return %c0_i32, %c0_i32_0 : i32, i32
  }
  func.func @transform_4(%arg0: i32) -> (i32, i32) {
    %c0_i32 = arith.constant 0 : i32
    %c0_i32_0 = arith.constant 0 : i32
    %c0_i32_1 = arith.constant 0 : i32
    return %c0_i32, %c0_i32_0 : i32, i32
  }
  func.func @transform_5(%arg0: i32) -> (i32, i32) {
    %c0_i32 = arith.constant 0 : i32
    %c0_i32_0 = arith.constant 0 : i32
    %c0_i32_1 = arith.constant 0 : i32
    return %c0_i32, %c0_i32_0 : i32, i32
  }
  func.func @transform_6(%arg0: i32) -> (i32, i32) {
    %c0_i32 = arith.constant 0 : i32
    %c0_i32_0 = arith.constant 0 : i32
    %c0_i32_1 = arith.constant 0 : i32
    return %c0_i32, %c0_i32_0 : i32, i32
  }
  func.func @transform_7(%arg0: i32) -> (i32, i32) {
    %c0_i32 = arith.constant 0 : i32
    %c0_i32_0 = arith.constant 0 : i32
    %c0_i32_1 = arith.constant 0 : i32
    return %c0_i32, %c0_i32_0 : i32, i32
  }
  func.func @transform_8(%arg0: i32) -> (i32, i32) {
    %c0_i32 = arith.constant 0 : i32
    %c0_i32_0 = arith.constant 0 : i32
    %c0_i32_1 = arith.constant 0 : i32
    return %c0_i32, %c0_i32_0 : i32, i32
  }
  func.func @transform_9(%arg0: i32) -> (i32, i32) {
    %c0_i32 = arith.constant 0 : i32
    %c0_i32_0 = arith.constant 0 : i32
    %c0_i32_1 = arith.constant 0 : i32
    return %c0_i32, %c0_i32_0 : i32, i32
  }
  func.func @transform_10(%arg0: i32) -> (i32, i32) {
    %c0_i32 = arith.constant 0 : i32
    %c0_i32_0 = arith.constant 0 : i32
    %c0_i32_1 = arith.constant 0 : i32
    return %c0_i32, %c0_i32_0 : i32, i32
  }
  func.func @transform_11(%arg0: i32) -> (i32, i32) {
    %c0_i32 = arith.constant 0 : i32
    %c0_i32_0 = arith.constant 0 : i32
    %c0_i32_1 = arith.constant 0 : i32
    return %c0_i32, %c0_i32_0 : i32, i32
  }
  func.func @transform_12(%arg0: i32) -> (i32, i32) {
    %c0_i32 = arith.constant 0 : i32
    %c0_i32_0 = arith.constant 0 : i32
    %c0_i32_1 = arith.constant 0 : i32
    return %c0_i32, %c0_i32_0 : i32, i32
  }
  func.func @transform_13(%arg0: i32) -> (i32, i32) {
    %c0_i32 = arith.constant 0 : i32
    %c0_i32_0 = arith.constant 0 : i32
    %c0_i32_1 = arith.constant 0 : i32
    return %c0_i32, %c0_i32_0 : i32, i32
  }
  func.func @transform_14(%arg0: i32) -> (i32, i32, i32) {
    %c0_i32 = arith.constant 0 : i32
    %c0_i32_0 = arith.constant 0 : i32
    %c0_i32_1 = arith.constant 0 : i32
    return %arg0, %c0_i32, %c0_i32_0 : i32, i32, i32
  }
}

</mosaic_0001>

<llo_original>
// kernel: vit_forward.5
$region0: #{vit_forward.5}
  #allocation0 [shape = 'u32[]', space=smem, size = 0x4, offset = 0x4, fixed_abs, tag = 'smem constant byte address 0x4 - core index']
  #allocation1 [shape = 'u32[144,128]{1,0:T(1,128)}', space=vmem, size = 0x12000, scoped, tag = 'internal scratch']
  %s0 = inlined_call_operand.vmem [shape: f32[6,32,32], index: 0, kind: input, shape index: {}]
  %s1 = inlined_call_operand.vmem [shape: bf16[64,32], index: 1, kind: input, shape index: {}]
  %s2 = inlined_call_operand.vmem [shape: bf16[64,32], index: 2, kind: input, shape index: {}]
  %s3 = inlined_call_operand.vmem [shape: bf16[6,64,64], index: 3, kind: output, shape index: {}]
  %s4 = sld [smem:[#allocation0]]
  $region22: #{vit_forward.5} parent=0
    _
  %s6 = ssub.s32 1, %s4
  %s7 = scalar_select 0, %s6, %s4
  // Predicated region
  $region2: #{vit_forward.5} parent=0 // pred_check
    _
  $region3: #{vit_forward.5} parent=0 // pred_check_branch
    %9 = sbr.rel (0) target = $region5
  $region4: #{vit_forward.5} parent=0 // pred_region
    _
  $region5: #{vit_forward.5} parent=0 // pred_fallthru
    _
  // Predicated region
  $region6: #{vit_forward.5} parent=0 // pred_check
    _
  $region7: #{vit_forward.5} parent=0 // pred_check_branch
    %11 = sbr.rel (0) target = $region9
  $region8: #{vit_forward.5} parent=0 // pred_region
    _
  $region9: #{vit_forward.5} parent=0 // pred_fallthru
    _
  // Predicated region
  $region10: #{vit_forward.5} parent=0 // pred_check
    _
  $region11: #{vit_forward.5} parent=0 // pred_check_branch
    %13 = sbr.rel (0) target = $region13
  $region12: #{vit_forward.5} parent=0 // pred_region
    _
  $region13: #{vit_forward.5} parent=0 // pred_fallthru
    _
  %v15 = vld [vmem:[%s0] sm:$0xff]
  %v16 = vld [vmem:[%s0 + $0x8] sm:$0xff]
  %v17 = vld [vmem:[%s0 + $0x10] sm:$0xff]
  %v18 = vld [vmem:[%s0 + $0x18] sm:$0xff]
  %v19 = vld [vmem:[%s0 + $0x20] sm:$0xff]
  %v20 = vld [vmem:[%s0 + $0x28] sm:$0xff]
  %v21 = vld [vmem:[%s0 + $0x30] sm:$0xff]
  %v22 = vld [vmem:[%s0 + $0x38] sm:$0xff]
  %v23 = vld [vmem:[%s0 + $0x40] sm:$0xff]
  %v24 = vld [vmem:[%s0 + $0x48] sm:$0xff]
  %v25 = vld [vmem:[%s0 + $0x50] sm:$0xff]
  %v26 = vld [vmem:[%s0 + $0x58] sm:$0xff]
  %v27 = vld [vmem:[%s0 + $0x60] sm:$0xff]
  %v28 = vld [vmem:[%s0 + $0x68] sm:$0xff]
  %v29 = vld [vmem:[%s0 + $0x70] sm:$0xff]
  %v30 = vld [vmem:[%s0 + $0x78] sm:$0xff]
  %v31 = vld [vmem:[%s0 + $0x80] sm:$0xff]
  %v32 = vld [vmem:[%s0 + $0x88] sm:$0xff]
  %v33 = vld [vmem:[%s0 + $0x90] sm:$0xff]
  %v34 = vld [vmem:[%s0 + $0x98] sm:$0xff]
  %v35 = vld [vmem:[%s0 + $0xa0] sm:$0xff]
  %v36 = vld [vmem:[%s0 + $0xa8] sm:$0xff]
  %v37 = vld [vmem:[%s0 + $0xb0] sm:$0xff]
  %v38 = vld [vmem:[%s0 + $0xb8] sm:$0xff]
  %v39 = vpack.c.bf16 %v16, %v15
  %v40 = vpack.c.bf16 %v18, %v17
  %v41 = vpack.c.bf16 %v20, %v19
  %v42 = vpack.c.bf16 %v22, %v21
  %v43 = vpack.c.bf16 %v24, %v23
  %v44 = vpack.c.bf16 %v26, %v25
  %v45 = vpack.c.bf16 %v28, %v27
  %v46 = vpack.c.bf16 %v30, %v29
  %v47 = vpack.c.bf16 %v32, %v31
  %v48 = vpack.c.bf16 %v34, %v33
  %v49 = vpack.c.bf16 %v36, %v35
  %v50 = vpack.c.bf16 %v38, %v37
  %v51 = vld [vmem:[%s2] sm:$0xf]
  %v52 = vld [vmem:[%s2 + $0x4] sm:$0xf]
  %v53 = vld [vmem:[%s2 + $0x8] sm:$0xf]
  %v54 = vld [vmem:[%s2 + $0xc] sm:$0xf]
  %v55 = vld [vmem:[%s2 + $0x10] sm:$0xf]
  %v56 = vld [vmem:[%s2 + $0x14] sm:$0xf]
  %v57 = vld [vmem:[%s2 + $0x18] sm:$0xf]
  %v58 = vld [vmem:[%s2 + $0x1c] sm:$0xf]
  %v67 = vunpack.c.l.b16 %v51
  %v68 = vunpack.c.l.b16 %v52
  %v69 = vunpack.c.l.b16 %v53
  %v70 = vunpack.c.l.b16 %v54
  %v71 = vunpack.c.l.b16 %v55
  %v72 = vunpack.c.l.b16 %v56
  %v73 = vunpack.c.l.b16 %v57
  %v74 = vunpack.c.l.b16 %v58
  %v75 = vpack.c.b16 %v68, %v67
  %v76 = vpack.c.b16 %v70, %v69
  %v77 = vpack.c.b16 %v72, %v71
  %v78 = vpack.c.b16 %v74, %v73
  %vm79 = vcmask 261120
  %v81 = vsel %vm79, %v39, 0
  %v84 = vsel %vm79, %v40, 0
  %v87 = vsel %vm79, %v41, 0
  %v90 = vsel %vm79, %v42, 0
  %v93 = vsel %vm79, %v43, 0
  %v96 = vsel %vm79, %v44, 0
  %v99 = vsel %vm79, %v45, 0
  %v102 = vsel %vm79, %v46, 0
  %v105 = vsel %vm79, %v47, 0
  %v108 = vsel %vm79, %v48, 0
  %v111 = vsel %vm79, %v49, 0
  %v114 = vsel %vm79, %v50, 0
  %v117 = vsel %vm79, %v75, 0
  %v120 = vsel %vm79, %v76, 0
  %v123 = vsel %vm79, %v77, 0
  %v126 = vsel %vm79, %v78, 0
  %128 = vmatprep.subr.bf16.mxu0 0
  %129 = vmatpush1.bf16.xpose.msra.mxu0 %v117
  %130 = vmatprep.subr.bf16.mxu0 0
  %131 = vmatpush1.bf16.xpose.msra.mxu0 %v120
  %132 = vmatprep.subr.bf16.mxu0 0
  %133 = vmatpush1.bf16.xpose.msra.mxu0 %v123
  %134 = vmatprep.subr.bf16.mxu0 0
  %135 = vmatpush1.bf16.xpose.msra.mxu0 %v126
  %136 = vmatprep.subr.bf16.mxu0 0
  %137 = vmatpush1.bf16.xpose.msra.mxu0 0
  %138 = vmatprep.subr.bf16.mxu0 0
  %139 = vmatpush1.bf16.xpose.msra.mxu0 0
  %140 = vmatprep.subr.bf16.mxu0 0
  %141 = vmatpush1.bf16.xpose.msra.mxu0 0
  %142 = vmatprep.subr.bf16.mxu0 0
  %143 = vmatpush1.bf16.xpose.msra.mxu0 0
  %144 = vmatprep.subr.bf16.mxu0 0
  %145 = vmatpush1.bf16.xpose.msra.mxu0 0
  %146 = vmatprep.subr.bf16.mxu0 0
  %147 = vmatpush1.bf16.xpose.msra.mxu0 0
  %148 = vmatprep.subr.bf16.mxu0 0
  %149 = vmatpush1.bf16.xpose.msra.mxu0 0
  %150 = vmatprep.subr.bf16.mxu0 0
  %151 = vmatpush1.bf16.xpose.msra.mxu0 0
  %152 = vmatprep.subr.bf16.mxu0 0
  %153 = vmatpush1.bf16.xpose.msra.mxu0 0
  %154 = vmatprep.subr.bf16.mxu0 0
  %155 = vmatpush1.bf16.xpose.msra.mxu0 0
  %156 = vmatprep.subr.bf16.mxu0 0
  %157 = vmatpush1.bf16.xpose.msra.mxu0 0
  %158 = vmatprep.subr.bf16.mxu0 0
  %159 = vmatpush1.bf16.xpose.msra.mxu0 0
  %160 = vmatprep.mubr.bf16.mxu0 0
  %161 = vmatmul.mubr.bf16.gmra.mrb[0].mxu0 %v81
  %v162 = vpop.f32.mrb[0].mxu0
  %v163 = vadd.f32 0.0, %v162
  %v164 = vpop.f32.mrb[0].mxu0
  %v165 = vpop.f32.mrb[0].mxu0
  %v166 = vadd.f32 0.0, %v165
  %v167 = vpop.f32.mrb[0].mxu0
  %168 = vmatprep.mubr.bf16.mxu0 0
  %169 = vmatmul.mubr.bf16.gmra.mrb[0].mxu0 %v84
  %v170 = vpop.f32.mrb[0].mxu0
  %v171 = vadd.f32 0.0, %v170
  %v172 = vpop.f32.mrb[0].mxu0
  %v173 = vpop.f32.mrb[0].mxu0
  %v174 = vadd.f32 0.0, %v173
  %v175 = vpop.f32.mrb[0].mxu0
  %176 = vmatprep.mubr.bf16.mxu0 0
  %177 = vmatmul.mubr.bf16.gmra.mrb[0].mxu0 %v87
  %v178 = vpop.f32.mrb[0].mxu0
  %v179 = vadd.f32 0.0, %v178
  %v180 = vpop.f32.mrb[0].mxu0
  %v181 = vpop.f32.mrb[0].mxu0
  %v182 = vadd.f32 0.0, %v181
  %v183 = vpop.f32.mrb[0].mxu0
  %184 = vmatprep.mubr.bf16.mxu0 0
  %185 = vmatmul.mubr.bf16.gmra.mrb[0].mxu0 %v90
  %v186 = vpop.f32.mrb[0].mxu0
  %v187 = vadd.f32 0.0, %v186
  %v188 = vpop.f32.mrb[0].mxu0
  %v189 = vpop.f32.mrb[0].mxu0
  %v190 = vadd.f32 0.0, %v189
  %v191 = vpop.f32.mrb[0].mxu0
  %192 = vmatprep.mubr.bf16.mxu0 0
  %193 = vmatmul.mubr.bf16.gmra.mrb[0].mxu0 %v93
  %v194 = vpop.f32.mrb[0].mxu0
  %v195 = vadd.f32 0.0, %v194
  %v196 = vpop.f32.mrb[0].mxu0
  %v197 = vpop.f32.mrb[0].mxu0
  %v198 = vadd.f32 0.0, %v197
  %v199 = vpop.f32.mrb[0].mxu0
  %200 = vmatprep.mubr.bf16.mxu0 0
  %201 = vmatmul.mubr.bf16.gmra.mrb[0].mxu0 %v96
  %v202 = vpop.f32.mrb[0].mxu0
  %v203 = vadd.f32 0.0, %v202
  %v204 = vpop.f32.mrb[0].mxu0
  %v205 = vpop.f32.mrb[0].mxu0
  %v206 = vadd.f32 0.0, %v205
  %v207 = vpop.f32.mrb[0].mxu0
  %208 = vmatprep.mubr.bf16.mxu0 0
  %209 = vmatmul.mubr.bf16.gmra.mrb[0].mxu0 %v99
  %v210 = vpop.f32.mrb[0].mxu0
  %v211 = vadd.f32 0.0, %v210
  %v212 = vpop.f32.mrb[0].mxu0
  %v213 = vpop.f32.mrb[0].mxu0
  %v214 = vadd.f32 0.0, %v213
  %v215 = vpop.f32.mrb[0].mxu0
  %216 = vmatprep.mubr.bf16.mxu0 0
  %217 = vmatmul.mubr.bf16.gmra.mrb[0].mxu0 %v102
  %v218 = vpop.f32.mrb[0].mxu0
  %v219 = vadd.f32 0.0, %v218
  %v220 = vpop.f32.mrb[0].mxu0
  %v221 = vpop.f32.mrb[0].mxu0
  %v222 = vadd.f32 0.0, %v221
  %v223 = vpop.f32.mrb[0].mxu0
  %224 = vmatprep.mubr.bf16.mxu0 0
  %225 = vmatmul.mubr.bf16.gmra.mrb[0].mxu0 %v105
  %v226 = vpop.f32.mrb[0].mxu0
  %v227 = vadd.f32 0.0, %v226
  %v228 = vpop.f32.mrb[0].mxu0
  %v229 = vpop.f32.mrb[0].mxu0
  %v230 = vadd.f32 0.0, %v229
  %v231 = vpop.f32.mrb[0].mxu0
  %232 = vmatprep.mubr.bf16.mxu0 0
  %233 = vmatmul.mubr.bf16.gmra.mrb[0].mxu0 %v108
  %v234 = vpop.f32.mrb[0].mxu0
  %v235 = vadd.f32 0.0, %v234
  %v236 = vpop.f32.mrb[0].mxu0
  %v237 = vpop.f32.mrb[0].mxu0
  %v238 = vadd.f32 0.0, %v237
  %v239 = vpop.f32.mrb[0].mxu0
  %240 = vmatprep.mubr.bf16.mxu0 0
  %241 = vmatmul.mubr.bf16.gmra.mrb[0].mxu0 %v111
  %v242 = vpop.f32.mrb[0].mxu0
  %v243 = vadd.f32 0.0, %v242
  %v244 = vpop.f32.mrb[0].mxu0
  %v245 = vpop.f32.mrb[0].mxu0
  %v246 = vadd.f32 0.0, %v245
  %v247 = vpop.f32.mrb[0].mxu0
  %248 = vmatprep.mubr.bf16.mxu0 0
  %249 = vmatmul.mubr.bf16.gmra.mrb[0].mxu0 %v114
  %v250 = vpop.f32.mrb[0].mxu0
  %v251 = vadd.f32 0.0, %v250
  %v252 = vpop.f32.mrb[0].mxu0
  %v253 = vpop.f32.mrb[0].mxu0
  %v254 = vadd.f32 0.0, %v253
  %v255 = vpop.f32.mrb[0].mxu0
  %256 = vdwg.mxu0
  %v257 = vpack.c.bf16 %v166, %v163
  %v258 = vpack.c.bf16 %v174, %v171
  %v259 = vpack.c.bf16 %v182, %v179
  %v260 = vpack.c.bf16 %v190, %v187
  %v261 = vpack.c.bf16 %v198, %v195
  %v262 = vpack.c.bf16 %v206, %v203
  %v263 = vpack.c.bf16 %v214, %v211
  %v264 = vpack.c.bf16 %v222, %v219
  %v265 = vpack.c.bf16 %v230, %v227
  %v266 = vpack.c.bf16 %v238, %v235
  %v267 = vpack.c.bf16 %v246, %v243
  %v268 = vpack.c.bf16 %v254, %v251
  %v269 = vld [vmem:[%s1] sm:$0xf]
  %v270 = vld [vmem:[%s1 + $0x4] sm:$0xf]
  %v271 = vld [vmem:[%s1 + $0x8] sm:$0xf]
  %v272 = vld [vmem:[%s1 + $0xc] sm:$0xf]
  %v273 = vld [vmem:[%s1 + $0x10] sm:$0xf]
  %v274 = vld [vmem:[%s1 + $0x14] sm:$0xf]
  %v275 = vld [vmem:[%s1 + $0x18] sm:$0xf]
  %v276 = vld [vmem:[%s1 + $0x1c] sm:$0xf]
  %v285 = vunpack.c.l.b16 %v269
  %v286 = vunpack.c.l.b16 %v270
  %v287 = vunpack.c.l.b16 %v271
  %v288 = vunpack.c.l.b16 %v272
  %v289 = vunpack.c.l.b16 %v273
  %v290 = vunpack.c.l.b16 %v274
  %v291 = vunpack.c.l.b16 %v275
  %v292 = vunpack.c.l.b16 %v276
  %v293 = vpack.c.b16 %v286, %v285
  %v294 = vpack.c.b16 %v288, %v287
  %v295 = vpack.c.b16 %v290, %v289
  %v296 = vpack.c.b16 %v292, %v291
  %v298 = vsel %vm79, %v293, 0
  %v301 = vsel %vm79, %v294, 0
  %v304 = vsel %vm79, %v295, 0
  %v307 = vsel %vm79, %v296, 0
  %309 = vmatprep.subr.bf16.mxu0 0
  %310 = vmatpush1.bf16.msra.mxu0 %v257
  %311 = vmatprep.subr.bf16.mxu0 0
  %312 = vmatpush1.bf16.msra.mxu0 %v258
  %313 = vmatprep.subr.bf16.mxu0 0
  %314 = vmatpush1.bf16.msra.mxu0 0
  %315 = vmatprep.subr.bf16.mxu0 0
  %316 = vmatpush1.bf16.msra.mxu0 0
  %317 = vmatprep.subr.bf16.mxu0 0
  %318 = vmatpush1.bf16.msra.mxu0 0
  %319 = vmatprep.subr.bf16.mxu0 0
  %320 = vmatpush1.bf16.msra.mxu0 0
  %321 = vmatprep.subr.bf16.mxu0 0
  %322 = vmatpush1.bf16.msra.mxu0 0
  %323 = vmatprep.subr.bf16.mxu0 0
  %324 = vmatpush1.bf16.msra.mxu0 0
  %325 = vmatprep.subr.bf16.mxu0 0
  %326 = vmatpush1.bf16.msra.mxu0 0
  %327 = vmatprep.subr.bf16.mxu0 0
  %328 = vmatpush1.bf16.msra.mxu0 0
  %329 = vmatprep.subr.bf16.mxu0 0
  %330 = vmatpush1.bf16.msra.mxu0 0
  %331 = vmatprep.subr.bf16.mxu0 0
  %332 = vmatpush1.bf16.msra.mxu0 0
  %333 = vmatprep.subr.bf16.mxu0 0
  %334 = vmatpush1.bf16.msra.mxu0 0
  %335 = vmatprep.subr.bf16.mxu0 0
  %336 = vmatpush1.bf16.msra.mxu0 0
  %337 = vmatprep.subr.bf16.mxu0 0
  %338 = vmatpush1.bf16.msra.mxu0 0
  %339 = vmatprep.subr.bf16.mxu0 0
  %340 = vmatpush1.bf16.msra.mxu0 0
  %341 = vmatprep.mubr.bf16.mxu0 0
  %342 = vmatmul.mubr.bf16.gmra.mrb[0].mxu0 %v298
  %v343 = vpop.f32.mrb[0].mxu0
  %v344 = vadd.f32 0.0, %v343
  %v345 = vpop.f32.mrb[0].mxu0
  %v346 = vpop.f32.mrb[0].mxu0
  %v347 = vadd.f32 0.0, %v346
  %v348 = vpop.f32.mrb[0].mxu0
  %349 = vmatprep.mubr.bf16.mxu0 0
  %350 = vmatmul.mubr.bf16.gmra.mrb[0].mxu0 %v301
  %v351 = vpop.f32.mrb[0].mxu0
  %v352 = vadd.f32 0.0, %v351
  %v353 = vpop.f32.mrb[0].mxu0
  %v354 = vpop.f32.mrb[0].mxu0
  %v355 = vadd.f32 0.0, %v354
  %v356 = vpop.f32.mrb[0].mxu0
  %357 = vmatprep.mubr.bf16.mxu0 0
  %358 = vmatmul.mubr.bf16.gmra.mrb[0].mxu0 %v304
  %v359 = vpop.f32.mrb[0].mxu0
  %v360 = vadd.f32 0.0, %v359
  %v361 = vpop.f32.mrb[0].mxu0
  %v362 = vpop.f32.mrb[0].mxu0
  %v363 = vadd.f32 0.0, %v362
  %v364 = vpop.f32.mrb[0].mxu0
  %365 = vmatprep.mubr.bf16.mxu0 0
  %366 = vmatmul.mubr.bf16.gmra.mrb[0].mxu0 %v307
  %v367 = vpop.f32.mrb[0].mxu0
  %v368 = vadd.f32 0.0, %v367
  %v369 = vpop.f32.mrb[0].mxu0
  %v370 = vpop.f32.mrb[0].mxu0
  %v371 = vadd.f32 0.0, %v370
  %v372 = vpop.f32.mrb[0].mxu0
  %373 = vdwg.mxu0
  %374 = vmatprep.subr.bf16.mxu0 0
  %375 = vmatpush1.bf16.msra.mxu0 %v259
  %376 = vmatprep.subr.bf16.mxu0 0
  %377 = vmatpush1.bf16.msra.mxu0 %v260
  %378 = vmatprep.subr.bf16.mxu0 0
  %379 = vmatpush1.bf16.msra.mxu0 0
  %380 = vmatprep.subr.bf16.mxu0 0
  %381 = vmatpush1.bf16.msra.mxu0 0
  %382 = vmatprep.subr.bf16.mxu0 0
  %383 = vmatpush1.bf16.msra.mxu0 0
  %384 = vmatprep.subr.bf16.mxu0 0
  %385 = vmatpush1.bf16.msra.mxu0 0
  %386 = vmatprep.subr.bf16.mxu0 0
  %387 = vmatpush1.bf16.msra.mxu0 0
  %388 = vmatprep.subr.bf16.mxu0 0
  %389 = vmatpush1.bf16.msra.mxu0 0
  %390 = vmatprep.subr.bf16.mxu0 0
  %391 = vmatpush1.bf16.msra.mxu0 0
  %392 = vmatprep.subr.bf16.mxu0 0
  %393 = vmatpush1.bf16.msra.mxu0 0
  %394 = vmatprep.subr.bf16.mxu0 0
  %395 = vmatpush1.bf16.msra.mxu0 0
  %396 = vmatprep.subr.bf16.mxu0 0
  %397 = vmatpush1.bf16.msra.mxu0 0
  %398 = vmatprep.subr.bf16.mxu0 0
  %399 = vmatpush1.bf16.msra.mxu0 0
  %400 = vmatprep.subr.bf16.mxu0 0
  %401 = vmatpush1.bf16.msra.mxu0 0
  %402 = vmatprep.subr.bf16.mxu0 0
  %403 = vmatpush1.bf16.msra.mxu0 0
  %404 = vmatprep.subr.bf16.mxu0 0
  %405 = vmatpush1.bf16.msra.mxu0 0
  %406 = vmatprep.mubr.bf16.mxu0 0
  %407 = vmatmul.mubr.bf16.gmra.mrb[0].mxu0 %v298
  %v408 = vpop.f32.mrb[0].mxu0
  %v409 = vadd.f32 0.0, %v408
  %v410 = vpop.f32.mrb[0].mxu0
  %v411 = vpop.f32.mrb[0].mxu0
  %v412 = vadd.f32 0.0, %v411
  %v413 = vpop.f32.mrb[0].mxu0
  %414 = vmatprep.mubr.bf16.mxu0 0
  %415 = vmatmul.mubr.bf16.gmra.mrb[0].mxu0 %v301
  %v416 = vpop.f32.mrb[0].mxu0
  %v417 = vadd.f32 0.0, %v416
  %v418 = vpop.f32.mrb[0].mxu0
  %v419 = vpop.f32.mrb[0].mxu0
  %v420 = vadd.f32 0.0, %v419
  %v421 = vpop.f32.mrb[0].mxu0
  %422 = vmatprep.mubr.bf16.mxu0 0
  %423 = vmatmul.mubr.bf16.gmra.mrb[0].mxu0 %v304
  %v424 = vpop.f32.mrb[0].mxu0
  %v425 = vadd.f32 0.0, %v424
  %v426 = vpop.f32.mrb[0].mxu0
  %v427 = vpop.f32.mrb[0].mxu0
  %v428 = vadd.f32 0.0, %v427
  %v429 = vpop.f32.mrb[0].mxu0
  %430 = vmatprep.mubr.bf16.mxu0 0
  %431 = vmatmul.mubr.bf16.gmra.mrb[0].mxu0 %v307
  %v432 = vpop.f32.mrb[0].mxu0
  %v433 = vadd.f32 0.0, %v432
  %v434 = vpop.f32.mrb[0].mxu0
  %v435 = vpop.f32.mrb[0].mxu0
  %v436 = vadd.f32 0.0, %v435
  %v437 = vpop.f32.mrb[0].mxu0
  %438 = vdwg.mxu0
  %439 = vmatprep.subr.bf16.mxu0 0
  %440 = vmatpush1.bf16.msra.mxu0 %v261
  %441 = vmatprep.subr.bf16.mxu0 0
  %442 = vmatpush1.bf16.msra.mxu0 %v262
  %443 = vmatprep.subr.bf16.mxu0 0
  %444 = vmatpush1.bf16.msra.mxu0 0
  %445 = vmatprep.subr.bf16.mxu0 0
  %446 = vmatpush1.bf16.msra.mxu0 0
  %447 = vmatprep.subr.bf16.mxu0 0
  %448 = vmatpush1.bf16.msra.mxu0 0
  %449 = vmatprep.subr.bf16.mxu0 0
  %450 = vmatpush1.bf16.msra.mxu0 0
  %451 = vmatprep.subr.bf16.mxu0 0
  %452 = vmatpush1.bf16.msra.mxu0 0
  %453 = vmatprep.subr.bf16.mxu0 0
  %454 = vmatpush1.bf16.msra.mxu0 0
  %455 = vmatprep.subr.bf16.mxu0 0
  %456 = vmatpush1.bf16.msra.mxu0 0
  %457 = vmatprep.subr.bf16.mxu0 0
  %458 = vmatpush1.bf16.msra.mxu0 0
  %459 = vmatprep.subr.bf16.mxu0 0
  %460 = vmatpush1.bf16.msra.mxu0 0
  %461 = vmatprep.subr.bf16.mxu0 0
  %462 = vmatpush1.bf16.msra.mxu0 0
  %463 = vmatprep.subr.bf16.mxu0 0
  %464 = vmatpush1.bf16.msra.mxu0 0
  %465 = vmatprep.subr.bf16.mxu0 0
  %466 = vmatpush1.bf16.msra.mxu0 0
  %467 = vmatprep.subr.bf16.mxu0 0
  %468 = vmatpush1.bf16.msra.mxu0 0
  %469 = vmatprep.subr.bf16.mxu0 0
  %470 = vmatpush1.bf16.msra.mxu0 0
  %471 = vmatprep.mubr.bf16.mxu0 0
  %472 = vmatmul.mubr.bf16.gmra.mrb[0].mxu0 %v298
  %v473 = vpop.f32.mrb[0].mxu0
  %v474 = vadd.f32 0.0, %v473
  %v475 = vpop.f32.mrb[0].mxu0
  %v476 = vpop.f32.mrb[0].mxu0
  %v477 = vadd.f32 0.0, %v476
  %v478 = vpop.f32.mrb[0].mxu0
  %479 = vmatprep.mubr.bf16.mxu0 0
  %480 = vmatmul.mubr.bf16.gmra.mrb[0].mxu0 %v301
  %v481 = vpop.f32.mrb[0].mxu0
  %v482 = vadd.f32 0.0, %v481
  %v483 = vpop.f32.mrb[0].mxu0
  %v484 = vpop.f32.mrb[0].mxu0
  %v485 = vadd.f32 0.0, %v484
  %v486 = vpop.f32.mrb[0].mxu0
  %487 = vmatprep.mubr.bf16.mxu0 0
  %488 = vmatmul.mubr.bf16.gmra.mrb[0].mxu0 %v304
  %v489 = vpop.f32.mrb[0].mxu0
  %v490 = vadd.f32 0.0, %v489
  %v491 = vpop.f32.mrb[0].mxu0
  %v492 = vpop.f32.mrb[0].mxu0
  %v493 = vadd.f32 0.0, %v492
  %v494 = vpop.f32.mrb[0].mxu0
  %495 = vmatprep.mubr.bf16.mxu0 0
  %496 = vmatmul.mubr.bf16.gmra.mrb[0].mxu0 %v307
  %v497 = vpop.f32.mrb[0].mxu0
  %v498 = vadd.f32 0.0, %v497
  %v499 = vpop.f32.mrb[0].mxu0
  %v500 = vpop.f32.mrb[0].mxu0
  %v501 = vadd.f32 0.0, %v500
  %v502 = vpop.f32.mrb[0].mxu0
  %503 = vdwg.mxu0
  %504 = vmatprep.subr.bf16.mxu0 0
  %505 = vmatpush1.bf16.msra.mxu0 %v263
  %506 = vmatprep.subr.bf16.mxu0 0
  %507 = vmatpush1.bf16.msra.mxu0 %v264
  %508 = vmatprep.subr.bf16.mxu0 0
  %509 = vmatpush1.bf16.msra.mxu0 0
  %510 = vmatprep.subr.bf16.mxu0 0
  %511 = vmatpush1.bf16.msra.mxu0 0
  %512 = vmatprep.subr.bf16.mxu0 0
  %513 = vmatpush1.bf16.msra.mxu0 0
  %514 = vmatprep.subr.bf16.mxu0 0
  %515 = vmatpush1.bf16.msra.mxu0 0
  %516 = vmatprep.subr.bf16.mxu0 0
  %517 = vmatpush1.bf16.msra.mxu0 0
  %518 = vmatprep.subr.bf16.mxu0 0
  %519 = vmatpush1.bf16.msra.mxu0 0
  %520 = vmatprep.subr.bf16.mxu0 0
  %521 = vmatpush1.bf16.msra.mxu0 0
  %522 = vmatprep.subr.bf16.mxu0 0
  %523 = vmatpush1.bf16.msra.mxu0 0
  %524 = vmatprep.subr.bf16.mxu0 0
  %525 = vmatpush1.bf16.msra.mxu0 0
  %526 = vmatprep.subr.bf16.mxu0 0
  %527 = vmatpush1.bf16.msra.mxu0 0
  %528 = vmatprep.subr.bf16.mxu0 0
  %529 = vmatpush1.bf16.msra.mxu0 0
  %530 = vmatprep.subr.bf16.mxu0 0
  %531 = vmatpush1.bf16.msra.mxu0 0
  %532 = vmatprep.subr.bf16.mxu0 0
  %533 = vmatpush1.bf16.msra.mxu0 0
  %534 = vmatprep.subr.bf16.mxu0 0
  %535 = vmatpush1.bf16.msra.mxu0 0
  %536 = vmatprep.mubr.bf16.mxu0 0
  %537 = vmatmul.mubr.bf16.gmra.mrb[0].mxu0 %v298
  %v538 = vpop.f32.mrb[0].mxu0
  %v539 = vadd.f32 0.0, %v538
  %v540 = vpop.f32.mrb[0].mxu0
  %v541 = vpop.f32.mrb[0].mxu0
  %v542 = vadd.f32 0.0, %v541
  %v543 = vpop.f32.mrb[0].mxu0
  %544 = vmatprep.mubr.bf16.mxu0 0
  %545 = vmatmul.mubr.bf16.gmra.mrb[0].mxu0 %v301
  %v546 = vpop.f32.mrb[0].mxu0
  %v547 = vadd.f32 0.0, %v546
  %v548 = vpop.f32.mrb[0].mxu0
  %v549 = vpop.f32.mrb[0].mxu0
  %v550 = vadd.f32 0.0, %v549
  %v551 = vpop.f32.mrb[0].mxu0
  %552 = vmatprep.mubr.bf16.mxu0 0
  %553 = vmatmul.mubr.bf16.gmra.mrb[0].mxu0 %v304
  %v554 = vpop.f32.mrb[0].mxu0
  %v555 = vadd.f32 0.0, %v554
  %v556 = vpop.f32.mrb[0].mxu0
  %v557 = vpop.f32.mrb[0].mxu0
  %v558 = vadd.f32 0.0, %v557
  %v559 = vpop.f32.mrb[0].mxu0
  %560 = vmatprep.mubr.bf16.mxu0 0
  %561 = vmatmul.mubr.bf16.gmra.mrb[0].mxu0 %v307
  %v562 = vpop.f32.mrb[0].mxu0
  %v563 = vadd.f32 0.0, %v562
  %v564 = vpop.f32.mrb[0].mxu0
  %v565 = vpop.f32.mrb[0].mxu0
  %v566 = vadd.f32 0.0, %v565
  %v567 = vpop.f32.mrb[0].mxu0
  %568 = vdwg.mxu0
  %569 = vmatprep.subr.bf16.mxu0 0
  %570 = vmatpush1.bf16.msra.mxu0 %v265
  %571 = vmatprep.subr.bf16.mxu0 0
  %572 = vmatpush1.bf16.msra.mxu0 %v266
  %573 = vmatprep.subr.bf16.mxu0 0
  %574 = vmatpush1.bf16.msra.mxu0 0
  %575 = vmatprep.subr.bf16.mxu0 0
  %576 = vmatpush1.bf16.msra.mxu0 0
  %577 = vmatprep.subr.bf16.mxu0 0
  %578 = vmatpush1.bf16.msra.mxu0 0
  %579 = vmatprep.subr.bf16.mxu0 0
  %580 = vmatpush1.bf16.msra.mxu0 0
  %581 = vmatprep.subr.bf16.mxu0 0
  %582 = vmatpush1.bf16.msra.mxu0 0
  %583 = vmatprep.subr.bf16.mxu0 0
  %584 = vmatpush1.bf16.msra.mxu0 0
  %585 = vmatprep.subr.bf16.mxu0 0
  %586 = vmatpush1.bf16.msra.mxu0 0
  %587 = vmatprep.subr.bf16.mxu0 0
  %588 = vmatpush1.bf16.msra.mxu0 0
  %589 = vmatprep.subr.bf16.mxu0 0
  %590 = vmatpush1.bf16.msra.mxu0 0
  %591 = vmatprep.subr.bf16.mxu0 0
  %592 = vmatpush1.bf16.msra.mxu0 0
  %593 = vmatprep.subr.bf16.mxu0 0
  %594 = vmatpush1.bf16.msra.mxu0 0
  %595 = vmatprep.subr.bf16.mxu0 0
  %596 = vmatpush1.bf16.msra.mxu0 0
  %597 = vmatprep.subr.bf16.mxu0 0
  %598 = vmatpush1.bf16.msra.mxu0 0
  %599 = vmatprep.subr.bf16.mxu0 0
  %600 = vmatpush1.bf16.msra.mxu0 0
  %601 = vmatprep.mubr.bf16.mxu0 0
  %602 = vmatmul.mubr.bf16.gmra.mrb[0].mxu0 %v298
  %v603 = vpop.f32.mrb[0].mxu0
  %v604 = vadd.f32 0.0, %v603
  %v605 = vpop.f32.mrb[0].mxu0
  %v606 = vpop.f32.mrb[0].mxu0
  %v607 = vadd.f32 0.0, %v606
  %v608 = vpop.f32.mrb[0].mxu0
  %609 = vmatprep.mubr.bf16.mxu0 0
  %610 = vmatmul.mubr.bf16.gmra.mrb[0].mxu0 %v301
  %v611 = vpop.f32.mrb[0].mxu0
  %v612 = vadd.f32 0.0, %v611
  %v613 = vpop.f32.mrb[0].mxu0
  %v614 = vpop.f32.mrb[0].mxu0
  %v615 = vadd.f32 0.0, %v614
  %v616 = vpop.f32.mrb[0].mxu0
  %617 = vmatprep.mubr.bf16.mxu0 0
  %618 = vmatmul.mubr.bf16.gmra.mrb[0].mxu0 %v304
  %v619 = vpop.f32.mrb[0].mxu0
  %v620 = vadd.f32 0.0, %v619
  %v621 = vpop.f32.mrb[0].mxu0
  %v622 = vpop.f32.mrb[0].mxu0
  %v623 = vadd.f32 0.0, %v622
  %v624 = vpop.f32.mrb[0].mxu0
  %625 = vmatprep.mubr.bf16.mxu0 0
  %626 = vmatmul.mubr.bf16.gmra.mrb[0].mxu0 %v307
  %v627 = vpop.f32.mrb[0].mxu0
  %v628 = vadd.f32 0.0, %v627
  %v629 = vpop.f32.mrb[0].mxu0
  %v630 = vpop.f32.mrb[0].mxu0
  %v631 = vadd.f32 0.0, %v630
  %v632 = vpop.f32.mrb[0].mxu0
  %633 = vdwg.mxu0
  %634 = vmatprep.subr.bf16.mxu0 0
  %635 = vmatpush1.bf16.msra.mxu0 %v267
  %636 = vmatprep.subr.bf16.mxu0 0
  %637 = vmatpush1.bf16.msra.mxu0 %v268
  %638 = vmatprep.subr.bf16.mxu0 0
  %639 = vmatpush1.bf16.msra.mxu0 0
  %640 = vmatprep.subr.bf16.mxu0 0
  %641 = vmatpush1.bf16.msra.mxu0 0
  %642 = vmatprep.subr.bf16.mxu0 0
  %643 = vmatpush1.bf16.msra.mxu0 0
  %644 = vmatprep.subr.bf16.mxu0 0
  %645 = vmatpush1.bf16.msra.mxu0 0
  %646 = vmatprep.subr.bf16.mxu0 0
  %647 = vmatpush1.bf16.msra.mxu0 0
  %648 = vmatprep.subr.bf16.mxu0 0
  %649 = vmatpush1.bf16.msra.mxu0 0
  %650 = vmatprep.subr.bf16.mxu0 0
  %651 = vmatpush1.bf16.msra.mxu0 0
  %652 = vmatprep.subr.bf16.mxu0 0
  %653 = vmatpush1.bf16.msra.mxu0 0
  %654 = vmatprep.subr.bf16.mxu0 0
  %655 = vmatpush1.bf16.msra.mxu0 0
  %656 = vmatprep.subr.bf16.mxu0 0
  %657 = vmatpush1.bf16.msra.mxu0 0
  %658 = vmatprep.subr.bf16.mxu0 0
  %659 = vmatpush1.bf16.msra.mxu0 0
  %660 = vmatprep.subr.bf16.mxu0 0
  %661 = vmatpush1.bf16.msra.mxu0 0
  %662 = vmatprep.subr.bf16.mxu0 0
  %663 = vmatpush1.bf16.msra.mxu0 0
  %664 = vmatprep.subr.bf16.mxu0 0
  %665 = vmatpush1.bf16.msra.mxu0 0
  %666 = vmatprep.mubr.bf16.mxu0 0
  %667 = vmatmul.mubr.bf16.gmra.mrb[0].mxu0 %v298
  %v668 = vpop.f32.mrb[0].mxu0
  %v669 = vadd.f32 0.0, %v668
  %v670 = vpop.f32.mrb[0].mxu0
  %v671 = vpop.f32.mrb[0].mxu0
  %v672 = vadd.f32 0.0, %v671
  %v673 = vpop.f32.mrb[0].mxu0
  %674 = vmatprep.mubr.bf16.mxu0 0
  %675 = vmatmul.mubr.bf16.gmra.mrb[0].mxu0 %v301
  %v676 = vpop.f32.mrb[0].mxu0
  %v677 = vadd.f32 0.0, %v676
  %v678 = vpop.f32.mrb[0].mxu0
  %v679 = vpop.f32.mrb[0].mxu0
  %v680 = vadd.f32 0.0, %v679
  %v681 = vpop.f32.mrb[0].mxu0
  %682 = vmatprep.mubr.bf16.mxu0 0
  %683 = vmatmul.mubr.bf16.gmra.mrb[0].mxu0 %v304
  %v684 = vpop.f32.mrb[0].mxu0
  %v685 = vadd.f32 0.0, %v684
  %v686 = vpop.f32.mrb[0].mxu0
  %v687 = vpop.f32.mrb[0].mxu0
  %v688 = vadd.f32 0.0, %v687
  %v689 = vpop.f32.mrb[0].mxu0
  %690 = vmatprep.mubr.bf16.mxu0 0
  %691 = vmatmul.mubr.bf16.gmra.mrb[0].mxu0 %v307
  %v692 = vpop.f32.mrb[0].mxu0
  %v693 = vadd.f32 0.0, %v692
  %v694 = vpop.f32.mrb[0].mxu0
  %v695 = vpop.f32.mrb[0].mxu0
  %v696 = vadd.f32 0.0, %v695
  %v697 = vpop.f32.mrb[0].mxu0
  %698 = vdwg.mxu0
  %v699 = vpack.c.bf16 %v347, %v344
  %v700 = vpack.c.bf16 %v355, %v352
  %v701 = vpack.c.bf16 %v363, %v360
  %v702 = vpack.c.bf16 %v371, %v368
  %v703 = vpack.c.bf16 %v412, %v409
  %v704 = vpack.c.bf16 %v420, %v417
  %v705 = vpack.c.bf16 %v428, %v425
  %v706 = vpack.c.bf16 %v436, %v433
  %v707 = vpack.c.bf16 %v477, %v474
  %v708 = vpack.c.bf16 %v485, %v482
  %v709 = vpack.c.bf16 %v493, %v490
  %v710 = vpack.c.bf16 %v501, %v498
  %v711 = vpack.c.bf16 %v542, %v539
  %v712 = vpack.c.bf16 %v550, %v547
  %v713 = vpack.c.bf16 %v558, %v555
  %v714 = vpack.c.bf16 %v566, %v563
  %v715 = vpack.c.bf16 %v607, %v604
  %v716 = vpack.c.bf16 %v615, %v612
  %v717 = vpack.c.bf16 %v623, %v620
  %v718 = vpack.c.bf16 %v631, %v628
  %v719 = vpack.c.bf16 %v672, %v669
  %v720 = vpack.c.bf16 %v680, %v677
  %v721 = vpack.c.bf16 %v688, %v685
  %v722 = vpack.c.bf16 %v696, %v693
  %v747 = vunpack.c.l.b16 %v699
  %v748 = vunpack.c.h.b16 %v699
  %v749 = vunpack.c.l.b16 %v700
  %v750 = vunpack.c.h.b16 %v700
  %v751 = vunpack.c.l.b16 %v701
  %v752 = vunpack.c.h.b16 %v701
  %v753 = vunpack.c.l.b16 %v702
  %v754 = vunpack.c.h.b16 %v702
  %v755 = vunpack.c.l.b16 %v703
  %v756 = vunpack.c.h.b16 %v703
  %v757 = vunpack.c.l.b16 %v704
  %v758 = vunpack.c.h.b16 %v704
  %v759 = vunpack.c.l.b16 %v705
  %v760 = vunpack.c.h.b16 %v705
  %v761 = vunpack.c.l.b16 %v706
  %v762 = vunpack.c.h.b16 %v706
  %v763 = vunpack.c.l.b16 %v707
  %v764 = vunpack.c.h.b16 %v707
  %v765 = vunpack.c.l.b16 %v708
  %v766 = vunpack.c.h.b16 %v708
  %v767 = vunpack.c.l.b16 %v709
  %v768 = vunpack.c.h.b16 %v709
  %v769 = vunpack.c.l.b16 %v710
  %v770 = vunpack.c.h.b16 %v710
  %v771 = vunpack.c.l.b16 %v711
  %v772 = vunpack.c.h.b16 %v711
  %v773 = vunpack.c.l.b16 %v712
  %v774 = vunpack.c.h.b16 %v712
  %v775 = vunpack.c.l.b16 %v713
  %v776 = vunpack.c.h.b16 %v713
  %v777 = vunpack.c.l.b16 %v714
  %v778 = vunpack.c.h.b16 %v714
  %v779 = vunpack.c.l.b16 %v715
  %v780 = vunpack.c.h.b16 %v715
  %v781 = vunpack.c.l.b16 %v716
  %v782 = vunpack.c.h.b16 %v716
  %v783 = vunpack.c.l.b16 %v717
  %v784 = vunpack.c.h.b16 %v717
  %v785 = vunpack.c.l.b16 %v718
  %v786 = vunpack.c.h.b16 %v718
  %v787 = vunpack.c.l.b16 %v719
  %v788 = vunpack.c.h.b16 %v719
  %v789 = vunpack.c.l.b16 %v720
  %v790 = vunpack.c.h.b16 %v720
  %v791 = vunpack.c.l.b16 %v721
  %v792 = vunpack.c.h.b16 %v721
  %v793 = vunpack.c.l.b16 %v722
  %v794 = vunpack.c.h.b16 %v722
  %v795 = vpack.c.b16 %v747, %v747
  %v796 = vpack.c.b16 %v748, %v748
  %v797 = vpack.c.b16 %v749, %v749
  %v798 = vpack.c.b16 %v750, %v750
  %v799 = vpack.c.b16 %v751, %v751
  %v800 = vpack.c.b16 %v752, %v752
  %v801 = vpack.c.b16 %v753, %v753
  %v802 = vpack.c.b16 %v754, %v754
  %v803 = vpack.c.b16 %v755, %v755
  %v804 = vpack.c.b16 %v756, %v756
  %v805 = vpack.c.b16 %v757, %v757
  %v806 = vpack.c.b16 %v758, %v758
  %v807 = vpack.c.b16 %v759, %v759
  %v808 = vpack.c.b16 %v760, %v760
  %v809 = vpack.c.b16 %v761, %v761
  %v810 = vpack.c.b16 %v762, %v762
  %v811 = vpack.c.b16 %v763, %v763
  %v812 = vpack.c.b16 %v764, %v764
  %v813 = vpack.c.b16 %v765, %v765
  %v814 = vpack.c.b16 %v766, %v766
  %v815 = vpack.c.b16 %v767, %v767
  %v816 = vpack.c.b16 %v768, %v768
  %v817 = vpack.c.b16 %v769, %v769
  %v818 = vpack.c.b16 %v770, %v770
  %v819 = vpack.c.b16 %v771, %v771
  %v820 = vpack.c.b16 %v772, %v772
  %v821 = vpack.c.b16 %v773, %v773
  %v822 = vpack.c.b16 %v774, %v774
  %v823 = vpack.c.b16 %v775, %v775
  %v824 = vpack.c.b16 %v776, %v776
  %v825 = vpack.c.b16 %v777, %v777
  %v826 = vpack.c.b16 %v778, %v778
  %v827 = vpack.c.b16 %v779, %v779
  %v828 = vpack.c.b16 %v780, %v780
  %v829 = vpack.c.b16 %v781, %v781
  %v830 = vpack.c.b16 %v782, %v782
  %v831 = vpack.c.b16 %v783, %v783
  %v832 = vpack.c.b16 %v784, %v784
  %v833 = vpack.c.b16 %v785, %v785
  %v834 = vpack.c.b16 %v786, %v786
  %v835 = vpack.c.b16 %v787, %v787
  %v836 = vpack.c.b16 %v788, %v788
  %v837 = vpack.c.b16 %v789, %v789
  %v838 = vpack.c.b16 %v790, %v790
  %v839 = vpack.c.b16 %v791, %v791
  %v840 = vpack.c.b16 %v792, %v792
  %v841 = vpack.c.b16 %v793, %v793
  %v842 = vpack.c.b16 %v794, %v794
  %vm891 = vcmask 519168
  %892 = vst.msk [vmem:[%s3] sm:$0xf] %vm891, %v795
  %893 = vst.msk [vmem:[%s3 + $0x4] sm:$0xf] %vm891, %v796
  %894 = vst.msk [vmem:[%s3 + $0x8] sm:$0xf] %vm891, %v797
  %895 = vst.msk [vmem:[%s3 + $0xc] sm:$0xf] %vm891, %v798
  %896 = vst.msk [vmem:[%s3 + $0x10] sm:$0xf] %vm891, %v799
  %897 = vst.msk [vmem:[%s3 + $0x14] sm:$0xf] %vm891, %v800
  %898 = vst.msk [vmem:[%s3 + $0x18] sm:$0xf] %vm891, %v801
  %899 = vst.msk [vmem:[%s3 + $0x1c] sm:$0xf] %vm891, %v802
  %900 = vst.msk [vmem:[%s3 + $0x20] sm:$0xf] %vm891, %v803
  %901 = vst.msk [vmem:[%s3 + $0x24] sm:$0xf] %vm891, %v804
  %902 = vst.msk [vmem:[%s3 + $0x28] sm:$0xf] %vm891, %v805
  %903 = vst.msk [vmem:[%s3 + $0x2c] sm:$0xf] %vm891, %v806
  %904 = vst.msk [vmem:[%s3 + $0x30] sm:$0xf] %vm891, %v807
  %905 = vst.msk [vmem:[%s3 + $0x34] sm:$0xf] %vm891, %v808
  %906 = vst.msk [vmem:[%s3 + $0x38] sm:$0xf] %vm891, %v809
  %907 = vst.msk [vmem:[%s3 + $0x3c] sm:$0xf] %vm891, %v810
  %908 = vst.msk [vmem:[%s3 + $0x40] sm:$0xf] %vm891, %v811
  %909 = vst.msk [vmem:[%s3 + $0x44] sm:$0xf] %vm891, %v812
  %910 = vst.msk [vmem:[%s3 + $0x48] sm:$0xf] %vm891, %v813
  %911 = vst.msk [vmem:[%s3 + $0x4c] sm:$0xf] %vm891, %v814
  %912 = vst.msk [vmem:[%s3 + $0x50] sm:$0xf] %vm891, %v815
  %913 = vst.msk [vmem:[%s3 + $0x54] sm:$0xf] %vm891, %v816
  %914 = vst.msk [vmem:[%s3 + $0x58] sm:$0xf] %vm891, %v817
  %915 = vst.msk [vmem:[%s3 + $0x5c] sm:$0xf] %vm891, %v818
  %916 = vst.msk [vmem:[%s3 + $0x60] sm:$0xf] %vm891, %v819
  %917 = vst.msk [vmem:[%s3 + $0x64] sm:$0xf] %vm891, %v820
  %918 = vst.msk [vmem:[%s3 + $0x68] sm:$0xf] %vm891, %v821
  %919 = vst.msk [vmem:[%s3 + $0x6c] sm:$0xf] %vm891, %v822
  %920 = vst.msk [vmem:[%s3 + $0x70] sm:$0xf] %vm891, %v823
  %921 = vst.msk [vmem:[%s3 + $0x74] sm:$0xf] %vm891, %v824
  %922 = vst.msk [vmem:[%s3 + $0x78] sm:$0xf] %vm891, %v825
  %923 = vst.msk [vmem:[%s3 + $0x7c] sm:$0xf] %vm891, %v826
  %924 = vst.msk [vmem:[%s3 + $0x80] sm:$0xf] %vm891, %v827
  %925 = vst.msk [vmem:[%s3 + $0x84] sm:$0xf] %vm891, %v828
  %926 = vst.msk [vmem:[%s3 + $0x88] sm:$0xf] %vm891, %v829
  %927 = vst.msk [vmem:[%s3 + $0x8c] sm:$0xf] %vm891, %v830
  %928 = vst.msk [vmem:[%s3 + $0x90] sm:$0xf] %vm891, %v831
  %929 = vst.msk [vmem:[%s3 + $0x94] sm:$0xf] %vm891, %v832
  %930 = vst.msk [vmem:[%s3 + $0x98] sm:$0xf] %vm891, %v833
  %931 = vst.msk [vmem:[%s3 + $0x9c] sm:$0xf] %vm891, %v834
  %932 = vst.msk [vmem:[%s3 + $0xa0] sm:$0xf] %vm891, %v835
  %933 = vst.msk [vmem:[%s3 + $0xa4] sm:$0xf] %vm891, %v836
  %934 = vst.msk [vmem:[%s3 + $0xa8] sm:$0xf] %vm891, %v837
  %935 = vst.msk [vmem:[%s3 + $0xac] sm:$0xf] %vm891, %v838
  %936 = vst.msk [vmem:[%s3 + $0xb0] sm:$0xf] %vm891, %v839
  %937 = vst.msk [vmem:[%s3 + $0xb4] sm:$0xf] %vm891, %v840
  %938 = vst.msk [vmem:[%s3 + $0xb8] sm:$0xf] %vm891, %v841
  %939 = vst.msk [vmem:[%s3 + $0xbc] sm:$0xf] %vm891, %v842
  // Predicated region
  $region14: #{vit_forward.5} parent=0 // pred_check
    _
  $region15: #{vit_forward.5} parent=0 // pred_check_branch
    %941 = sbr.rel (0) target = $region17
  $region16: #{vit_forward.5} parent=0 // pred_region
    _
  $region17: #{vit_forward.5} parent=0 // pred_fallthru
    _
  // Predicated region
  $region18: #{vit_forward.5} parent=0 // pred_check
    _
  $region19: #{vit_forward.5} parent=0 // pred_check_branch
    %943 = sbr.rel (0) target = $region21
  $region20: #{vit_forward.5} parent=0 // pred_region
    _
  $region21: #{vit_forward.5} parent=0 // pred_fallthru
    _

// kernel: vit_forward.6
$region0: #{vit_forward.6}
  #allocation0 [shape = 'u32[]', space=smem, size = 0x4, offset = 0x4, fixed_abs, tag = 'smem constant byte address 0x4 - core index']
  #allocation1 [shape = 'u32[144,128]{1,0:T(1,128)}', space=vmem, size = 0x12000, scoped, tag = 'internal scratch']
  %s0 = inlined_call_operand.vmem [shape: bf16[32,768], index: 0, kind: input, shape index: {}]
  %s1 = inlined_call_operand.vmem [shape: bf16[768,64], index: 1, kind: input, shape index: {}]
  %s2 = inlined_call_operand.vmem [shape: f32[1,64], index: 2, kind: input, shape index: {}]
  %s3 = inlined_call_operand.vmem [shape: f32[16,64], index: 3, kind: input, shape index: {}]
  %s4 = inlined_call_operand.vmem [shape: f32[2,16,64], index: 4, kind: output, shape index: {}]
  %s5 = sld [smem:[#allocation0]]
  $region26: #{vit_forward.6} parent=0
    _
  %s7 = ssub.s32 1, %s5
  %s8 = scalar_select 0, %s7, %s5
  // Predicated region
  $region2: #{vit_forward.6} parent=0 // pred_check
    _
  $region3: #{vit_forward.6} parent=0 // pred_check_branch
    %10 = sbr.rel (0) target = $region5
  $region4: #{vit_forward.6} parent=0 // pred_region
    _
  $region5: #{vit_forward.6} parent=0 // pred_fallthru
    _
  // Predicated region
  $region6: #{vit_forward.6} parent=0 // pred_check
    _
  $region7: #{vit_forward.6} parent=0 // pred_check_branch
    %12 = sbr.rel (0) target = $region9
  $region8: #{vit_forward.6} parent=0 // pred_region
    _
  $region9: #{vit_forward.6} parent=0 // pred_fallthru
    _
  // Predicated region
  $region10: #{vit_forward.6} parent=0 // pred_check
    _
  $region11: #{vit_forward.6} parent=0 // pred_check_branch
    %14 = sbr.rel (0) target = $region13
  $region12: #{vit_forward.6} parent=0 // pred_region
    _
  $region13: #{vit_forward.6} parent=0 // pred_fallthru
    _
  // Predicated region
  $region14: #{vit_forward.6} parent=0 // pred_check
    _
  $region15: #{vit_forward.6} parent=0 // pred_check_branch
    %16 = sbr.rel (0) target = $region17
  $region16: #{vit_forward.6} parent=0 // pred_region
    _
  $region17: #{vit_forward.6} parent=0 // pred_fallthru
    _
  %v18 = vld [vmem:[%s0] sm:$0xff]
  %v19 = vld [vmem:[%s0 + $0x8] sm:$0xff]
  %v20 = vld [vmem:[%s0 + $0x10] sm:$0xff]
  %v21 = vld [vmem:[%s0 + $0x18] sm:$0xff]
  %v22 = vld [vmem:[%s0 + $0x20] sm:$0xff]
  %v23 = vld [vmem:[%s0 + $0x28] sm:$0xff]
  %v24 = vld [vmem:[%s0 + $0x30] sm:$0xff]
  %v25 = vld [vmem:[%s0 + $0x38] sm:$0xff]
  %v26 = vld [vmem:[%s0 + $0x40] sm:$0xff]
  %v27 = vld [vmem:[%s0 + $0x48] sm:$0xff]
  %v28 = vld [vmem:[%s0 + $0x50] sm:$0xff]
  %v29 = vld [vmem:[%s0 + $0x58] sm:$0xff]
  %v30 = vld [vmem:[%s1] sm:$0xf]
  %v31 = vld [vmem:[%s1 + $0x4] sm:$0xf]
  %v32 = vld [vmem:[%s1 + $0x8] sm:$0xf]
  %v33 = vld [vmem:[%s1 + $0xc] sm:$0xf]
  %v34 = vld [vmem:[%s1 + $0x10] sm:$0xf]
  %v35 = vld [vmem:[%s1 + $0x14] sm:$0xf]
  %v36 = vld [vmem:[%s1 + $0x18] sm:$0xf]
  %v37 = vld [vmem:[%s1 + $0x1c] sm:$0xf]
  %v38 = vld [vmem:[%s1 + $0x20] sm:$0xf]
  %v39 = vld [vmem:[%s1 + $0x24] sm:$0xf]
  %v40 = vld [vmem:[%s1 + $0x28] sm:$0xf]
  %v41 = vld [vmem:[%s1 + $0x2c] sm:$0xf]
  %v42 = vld [vmem:[%s1 + $0x30] sm:$0xf]
  %v43 = vld [vmem:[%s1 + $0x34] sm:$0xf]
  %v44 = vld [vmem:[%s1 + $0x38] sm:$0xf]
  %v45 = vld [vmem:[%s1 + $0x3c] sm:$0xf]
  %v46 = vld [vmem:[%s1 + $0x40] sm:$0xf]
  %v47 = vld [vmem:[%s1 + $0x44] sm:$0xf]
  %v48 = vld [vmem:[%s1 + $0x48] sm:$0xf]
  %v49 = vld [vmem:[%s1 + $0x4c] sm:$0xf]
  %v50 = vld [vmem:[%s1 + $0x50] sm:$0xf]
  %v51 = vld [vmem:[%s1 + $0x54] sm:$0xf]
  %v52 = vld [vmem:[%s1 + $0x58] sm:$0xf]
  %v53 = vld [vmem:[%s1 + $0x5c] sm:$0xf]
  %v54 = vld [vmem:[%s1 + $0x60] sm:$0xf]
  %v55 = vld [vmem:[%s1 + $0x64] sm:$0xf]
  %v56 = vld [vmem:[%s1 + $0x68] sm:$0xf]
  %v57 = vld [vmem:[%s1 + $0x6c] sm:$0xf]
  %v58 = vld [vmem:[%s1 + $0x70] sm:$0xf]
  %v59 = vld [vmem:[%s1 + $0x74] sm:$0xf]
  %v60 = vld [vmem:[%s1 + $0x78] sm:$0xf]
  %v61 = vld [vmem:[%s1 + $0x7c] sm:$0xf]
  %v62 = vld [vmem:[%s1 + $0x80] sm:$0xf]
  %v63 = vld [vmem:[%s1 + $0x84] sm:$0xf]
  %v64 = vld [vmem:[%s1 + $0x88] sm:$0xf]
  %v65 = vld [vmem:[%s1 + $0x8c] sm:$0xf]
  %v66 = vld [vmem:[%s1 + $0x90] sm:$0xf]
  %v67 = vld [vmem:[%s1 + $0x94] sm:$0xf]
  %v68 = vld [vmem:[%s1 + $0x98] sm:$0xf]
  %v69 = vld [vmem:[%s1 + $0x9c] sm:$0xf]
  %v70 = vld [vmem:[%s1 + $0xa0] sm:$0xf]
  %v71 = vld [vmem:[%s1 + $0xa4] sm:$0xf]
  %v72 = vld [vmem:[%s1 + $0xa8] sm:$0xf]
  %v73 = vld [vmem:[%s1 + $0xac] sm:$0xf]
  %v74 = vld [vmem:[%s1 + $0xb0] sm:$0xf]
  %v75 = vld [vmem:[%s1 + $0xb4] sm:$0xf]
  %v76 = vld [vmem:[%s1 + $0xb8] sm:$0xf]
  %v77 = vld [vmem:[%s1 + $0xbc] sm:$0xf]
  %v78 = vld [vmem:[%s1 + $0xc0] sm:$0xf]
  %v79 = vld [vmem:[%s1 + $0xc4] sm:$0xf]
  %v80 = vld [vmem:[%s1 + $0xc8] sm:$0xf]
  %v81 = vld [vmem:[%s1 + $0xcc] sm:$0xf]
  %v82 = vld [vmem:[%s1 + $0xd0] sm:$0xf]
  %v83 = vld [vmem:[%s1 + $0xd4] sm:$0xf]
  %v84 = vld [vmem:[%s1 + $0xd8] sm:$0xf]
  %v85 = vld [vmem:[%s1 + $0xdc] sm:$0xf]
  %v86 = vld [vmem:[%s1 + $0xe0] sm:$0xf]
  %v87 = vld [vmem:[%s1 + $0xe4] sm:$0xf]
  %v88 = vld [vmem:[%s1 + $0xe8] sm:$0xf]
  %v89 = vld [vmem:[%s1 + $0xec] sm:$0xf]
  %v90 = vld [vmem:[%s1 + $0xf0] sm:$0xf]
  %v91 = vld [vmem:[%s1 + $0xf4] sm:$0xf]
  %v92 = vld [vmem:[%s1 + $0xf8] sm:$0xf]
  %v93 = vld [vmem:[%s1 + $0xfc] sm:$0xf]
  %v94 = vld [vmem:[%s1 + $0x100] sm:$0xf]
  %v95 = vld [vmem:[%s1 + $0x104] sm:$0xf]
  %v96 = vld [vmem:[%s1 + $0x108] sm:$0xf]
  %v97 = vld [vmem:[%s1 + $0x10c] sm:$0xf]
  %v98 = vld [vmem:[%s1 + $0x110] sm:$0xf]
  %v99 = vld [vmem:[%s1 + $0x114] sm:$0xf]
  %v100 = vld [vmem:[%s1 + $0x118] sm:$0xf]
  %v101 = vld [vmem:[%s1 + $0x11c] sm:$0xf]
  %v102 = vld [vmem:[%s1 + $0x120] sm:$0xf]
  %v103 = vld [vmem:[%s1 + $0x124] sm:$0xf]
  %v104 = vld [vmem:[%s1 + $0x128] sm:$0xf]
  %v105 = vld [vmem:[%s1 + $0x12c] sm:$0xf]
  %v106 = vld [vmem:[%s1 + $0x130] sm:$0xf]
  %v107 = vld [vmem:[%s1 + $0x134] sm:$0xf]
  %v108 = vld [vmem:[%s1 + $0x138] sm:$0xf]
  %v109 = vld [vmem:[%s1 + $0x13c] sm:$0xf]
  %v110 = vld [vmem:[%s1 + $0x140] sm:$0xf]
  %v111 = vld [vmem:[%s1 + $0x144] sm:$0xf]
  %v112 = vld [vmem:[%s1 + $0x148] sm:$0xf]
  %v113 = vld [vmem:[%s1 + $0x14c] sm:$0xf]
  %v114 = vld [vmem:[%s1 + $0x150] sm:$0xf]
  %v115 = vld [vmem:[%s1 + $0x154] sm:$0xf]
  %v116 = vld [vmem:[%s1 + $0x158] sm:$0xf]
  %v117 = vld [vmem:[%s1 + $0x15c] sm:$0xf]
  %v118 = vld [vmem:[%s1 + $0x160] sm:$0xf]
  %v119 = vld [vmem:[%s1 + $0x164] sm:$0xf]
  %v120 = vld [vmem:[%s1 + $0x168] sm:$0xf]
  %v121 = vld [vmem:[%s1 + $0x16c] sm:$0xf]
  %v122 = vld [vmem:[%s1 + $0x170] sm:$0xf]
  %v123 = vld [vmem:[%s1 + $0x174] sm:$0xf]
  %v124 = vld [vmem:[%s1 + $0x178] sm:$0xf]
  %v125 = vld [vmem:[%s1 + $0x17c] sm:$0xf]
  %v126 = vld [vmem:[%s2] sm:$0x1]
  %v128 = vlaneseq
  %v129 = vshrl.u32 %v128, 7
  %v130 = vsub.s32 0, %v129
  %v131 = vrot.slane %v126, %v130
  %v145 = vunpack.c.l.b16 %v18
  %v146 = vunpack.c.h.b16 %v18
  %v147 = vunpack.c.l.b16 %v19
  %v148 = vunpack.c.h.b16 %v19
  %v149 = vunpack.c.l.b16 %v20
  %v150 = vunpack.c.h.b16 %v20
  %v151 = vunpack.c.l.b16 %v21
  %v152 = vunpack.c.h.b16 %v21
  %v153 = vunpack.c.l.b16 %v22
  %v154 = vunpack.c.h.b16 %v22
  %v155 = vunpack.c.l.b16 %v23
  %v156 = vunpack.c.h.b16 %v23
  %v157 = vunpack.c.l.b16 %v24
  %v158 = vunpack.c.h.b16 %v24
  %v159 = vunpack.c.l.b16 %v25
  %v160 = vunpack.c.h.b16 %v25
  %v161 = vunpack.c.l.b16 %v26
  %v162 = vunpack.c.h.b16 %v26
  %v163 = vunpack.c.l.b16 %v27
  %v164 = vunpack.c.h.b16 %v27
  %v165 = vunpack.c.l.b16 %v28
  %v166 = vunpack.c.h.b16 %v28
  %v167 = vunpack.c.l.b16 %v29
  %v168 = vunpack.c.h.b16 %v29
  %v169 = vpack.c.b16 %v151, %v145
  %v170 = vpack.c.b16 %v152, %v146
  %v171 = vpack.c.b16 %v153, %v147
  %v172 = vpack.c.b16 %v154, %v148
  %v173 = vpack.c.b16 %v155, %v149
  %v174 = vpack.c.b16 %v156, %v150
  %v175 = vpack.c.b16 %v163, %v157
  %v176 = vpack.c.b16 %v164, %v158
  %v177 = vpack.c.b16 %v165, %v159
  %v178 = vpack.c.b16 %v166, %v160
  %v179 = vpack.c.b16 %v167, %v161
  %v180 = vpack.c.b16 %v168, %v162
  %v289 = vunpack.c.l.b16 %v30
  %v290 = vunpack.c.l.b16 %v31
  %v291 = vunpack.c.l.b16 %v32
  %v292 = vunpack.c.l.b16 %v33
  %v293 = vunpack.c.l.b16 %v34
  %v294 = vunpack.c.l.b16 %v35
  %v295 = vunpack.c.l.b16 %v36
  %v296 = vunpack.c.l.b16 %v37
  %v297 = vunpack.c.l.b16 %v38
  %v298 = vunpack.c.l.b16 %v39
  %v299 = vunpack.c.l.b16 %v40
  %v300 = vunpack.c.l.b16 %v41
  %v301 = vunpack.c.l.b16 %v42
  %v302 = vunpack.c.l.b16 %v43
  %v303 = vunpack.c.l.b16 %v44
  %v304 = vunpack.c.l.b16 %v45
  %v305 = vunpack.c.l.b16 %v46
  %v306 = vunpack.c.l.b16 %v47
  %v307 = vunpack.c.l.b16 %v48
  %v308 = vunpack.c.l.b16 %v49
  %v309 = vunpack.c.l.b16 %v50
  %v310 = vunpack.c.l.b16 %v51
  %v311 = vunpack.c.l.b16 %v52
  %v312 = vunpack.c.l.b16 %v53
  %v313 = vunpack.c.l.b16 %v54
  %v314 = vunpack.c.l.b16 %v55
  %v315 = vunpack.c.l.b16 %v56
  %v316 = vunpack.c.l.b16 %v57
  %v317 = vunpack.c.l.b16 %v58
  %v318 = vunpack.c.l.b16 %v59
  %v319 = vunpack.c.l.b16 %v60
  %v320 = vunpack.c.l.b16 %v61
  %v321 = vunpack.c.l.b16 %v62
  %v322 = vunpack.c.l.b16 %v63
  %v323 = vunpack.c.l.b16 %v64
  %v324 = vunpack.c.l.b16 %v65
  %v325 = vunpack.c.l.b16 %v66
  %v326 = vunpack.c.l.b16 %v67
  %v327 = vunpack.c.l.b16 %v68
  %v328 = vunpack.c.l.b16 %v69
  %v329 = vunpack.c.l.b16 %v70
  %v330 = vunpack.c.l.b16 %v71
  %v331 = vunpack.c.l.b16 %v72
  %v332 = vunpack.c.l.b16 %v73
  %v333 = vunpack.c.l.b16 %v74
  %v334 = vunpack.c.l.b16 %v75
  %v335 = vunpack.c.l.b16 %v76
  %v336 = vunpack.c.l.b16 %v77
  %v337 = vunpack.c.l.b16 %v78
  %v338 = vunpack.c.l.b16 %v79
  %v339 = vunpack.c.l.b16 %v80
  %v340 = vunpack.c.l.b16 %v81
  %v341 = vunpack.c.l.b16 %v82
  %v342 = vunpack.c.l.b16 %v83
  %v343 = vunpack.c.l.b16 %v84
  %v344 = vunpack.c.l.b16 %v85
  %v345 = vunpack.c.l.b16 %v86
  %v346 = vunpack.c.l.b16 %v87
  %v347 = vunpack.c.l.b16 %v88
  %v348 = vunpack.c.l.b16 %v89
  %v349 = vunpack.c.l.b16 %v90
  %v350 = vunpack.c.l.b16 %v91
  %v351 = vunpack.c.l.b16 %v92
  %v352 = vunpack.c.l.b16 %v93
  %v353 = vunpack.c.l.b16 %v94
  %v354 = vunpack.c.l.b16 %v95
  %v355 = vunpack.c.l.b16 %v96
  %v356 = vunpack.c.l.b16 %v97
  %v357 = vunpack.c.l.b16 %v98
  %v358 = vunpack.c.l.b16 %v99
  %v359 = vunpack.c.l.b16 %v100
  %v360 = vunpack.c.l.b16 %v101
  %v361 = vunpack.c.l.b16 %v102
  %v362 = vunpack.c.l.b16 %v103
  %v363 = vunpack.c.l.b16 %v104
  %v364 = vunpack.c.l.b16 %v105
  %v365 = vunpack.c.l.b16 %v106
  %v366 = vunpack.c.l.b16 %v107
  %v367 = vunpack.c.l.b16 %v108
  %v368 = vunpack.c.l.b16 %v109
  %v369 = vunpack.c.l.b16 %v110
  %v370 = vunpack.c.l.b16 %v111
  %v371 = vunpack.c.l.b16 %v112
  %v372 = vunpack.c.l.b16 %v113
  %v373 = vunpack.c.l.b16 %v114
  %v374 = vunpack.c.l.b16 %v115
  %v375 = vunpack.c.l.b16 %v116
  %v376 = vunpack.c.l.b16 %v117
  %v377 = vunpack.c.l.b16 %v118
  %v378 = vunpack.c.l.b16 %v119
  %v379 = vunpack.c.l.b16 %v120
  %v380 = vunpack.c.l.b16 %v121
  %v381 = vunpack.c.l.b16 %v122
  %v382 = vunpack.c.l.b16 %v123
  %v383 = vunpack.c.l.b16 %v124
  %v384 = vunpack.c.l.b16 %v125
  %v385 = vpack.c.b16 %v290, %v289
  %v386 = vpack.c.b16 %v292, %v291
  %v387 = vpack.c.b16 %v294, %v293
  %v388 = vpack.c.b16 %v296, %v295
  %v389 = vpack.c.b16 %v298, %v297
  %v390 = vpack.c.b16 %v300, %v299
  %v391 = vpack.c.b16 %v302, %v301
  %v392 = vpack.c.b16 %v304, %v303
  %v393 = vpack.c.b16 %v306, %v305
  %v394 = vpack.c.b16 %v308, %v307
  %v395 = vpack.c.b16 %v310, %v309
  %v396 = vpack.c.b16 %v312, %v311
  %v397 = vpack.c.b16 %v314, %v313
  %v398 = vpack.c.b16 %v316, %v315
  %v399 = vpack.c.b16 %v318, %v317
  %v400 = vpack.c.b16 %v320, %v319
  %v401 = vpack.c.b16 %v322, %v321
  %v402 = vpack.c.b16 %v324, %v323
  %v403 = vpack.c.b16 %v326, %v325
  %v404 = vpack.c.b16 %v328, %v327
  %v405 = vpack.c.b16 %v330, %v329
  %v406 = vpack.c.b16 %v332, %v331
  %v407 = vpack.c.b16 %v334, %v333
  %v408 = vpack.c.b16 %v336, %v335
  %v409 = vpack.c.b16 %v338, %v337
  %v410 = vpack.c.b16 %v340, %v339
  %v411 = vpack.c.b16 %v342, %v341
  %v412 = vpack.c.b16 %v344, %v343
  %v413 = vpack.c.b16 %v346, %v345
  %v414 = vpack.c.b16 %v348, %v347
  %v415 = vpack.c.b16 %v350, %v349
  %v416 = vpack.c.b16 %v352, %v351
  %v417 = vpack.c.b16 %v354, %v353
  %v418 = vpack.c.b16 %v356, %v355
  %v419 = vpack.c.b16 %v358, %v357
  %v420 = vpack.c.b16 %v360, %v359
  %v421 = vpack.c.b16 %v362, %v361
  %v422 = vpack.c.b16 %v364, %v363
  %v423 = vpack.c.b16 %v366, %v365
  %v424 = vpack.c.b16 %v368, %v367
  %v425 = vpack.c.b16 %v370, %v369
  %v426 = vpack.c.b16 %v372, %v371
  %v427 = vpack.c.b16 %v374, %v373
  %v428 = vpack.c.b16 %v376, %v375
  %v429 = vpack.c.b16 %v378, %v377
  %v430 = vpack.c.b16 %v380, %v379
  %v431 = vpack.c.b16 %v382, %v381
  %v432 = vpack.c.b16 %v384, %v383
  %481 = vmatprep.subr.bf16.mxu0 0
  %482 = vmatpush1.bf16.msra.mxu0 %v385
  %483 = vmatprep.subr.bf16.mxu0 0
  %484 = vmatpush1.bf16.msra.mxu0 %v386
  %485 = vmatprep.subr.bf16.mxu0 0
  %486 = vmatpush1.bf16.msra.mxu0 %v387
  %487 = vmatprep.subr.bf16.mxu0 0
  %488 = vmatpush1.bf16.msra.mxu0 %v388
  %489 = vmatprep.subr.bf16.mxu0 0
  %490 = vmatpush1.bf16.msra.mxu0 %v389
  %491 = vmatprep.subr.bf16.mxu0 0
  %492 = vmatpush1.bf16.msra.mxu0 %v390
  %493 = vmatprep.subr.bf16.mxu0 0
  %494 = vmatpush1.bf16.msra.mxu0 %v391
  %495 = vmatprep.subr.bf16.mxu0 0
  %496 = vmatpush1.bf16.msra.mxu0 %v392
  %497 = vmatprep.subr.bf16.mxu0 0
  %498 = vmatpush1.bf16.msra.mxu0 %v393
  %499 = vmatprep.subr.bf16.mxu0 0
  %500 = vmatpush1.bf16.msra.mxu0 %v394
  %501 = vmatprep.subr.bf16.mxu0 0
  %502 = vmatpush1.bf16.msra.mxu0 %v395
  %503 = vmatprep.subr.bf16.mxu0 0
  %504 = vmatpush1.bf16.msra.mxu0 %v396
  %505 = vmatprep.subr.bf16.mxu0 0
  %506 = vmatpush1.bf16.msra.mxu0 %v397
  %507 = vmatprep.subr.bf16.mxu0 0
  %508 = vmatpush1.bf16.msra.mxu0 %v398
  %509 = vmatprep.subr.bf16.mxu0 0
  %510 = vmatpush1.bf16.msra.mxu0 %v399
  %511 = vmatprep.subr.bf16.mxu0 0
  %512 = vmatpush1.bf16.msra.mxu0 %v400
  %513 = vmatprep.mubr.bf16.mxu0 %v170
  %514 = vmatmul.mubr.bf16.gmra.mrb[0].mxu0 %v169
  %v515 = vpop.f32.mrb[0].mxu0
  %v516 = vadd.f32 %v131, %v515
  %v517 = vpop.f32.mrb[0].mxu0
  %v518 = vpop.f32.mrb[0].mxu0
  %v519 = vadd.f32 %v131, %v518
  %v520 = vpop.f32.mrb[0].mxu0
  %521 = vmatprep.mubr.bf16.mxu0 %v176
  %522 = vmatmul.mubr.bf16.gmra.mrb[0].mxu0 %v175
  %v523 = vpop.f32.mrb[0].mxu0
  %v524 = vadd.f32 %v131, %v523
  %v525 = vpop.f32.mrb[0].mxu0
  %v526 = vpop.f32.mrb[0].mxu0
  %v527 = vadd.f32 %v131, %v526
  %v528 = vpop.f32.mrb[0].mxu0
  %529 = vdwg.mxu0
  %530 = vmatprep.subr.bf16.mxu0 0
  %531 = vmatpush1.bf16.msra.mxu0 %v401
  %532 = vmatprep.subr.bf16.mxu0 0
  %533 = vmatpush1.bf16.msra.mxu0 %v402
  %534 = vmatprep.subr.bf16.mxu0 0
  %535 = vmatpush1.bf16.msra.mxu0 %v403
  %536 = vmatprep.subr.bf16.mxu0 0
  %537 = vmatpush1.bf16.msra.mxu0 %v404
  %538 = vmatprep.subr.bf16.mxu0 0
  %539 = vmatpush1.bf16.msra.mxu0 %v405
  %540 = vmatprep.subr.bf16.mxu0 0
  %541 = vmatpush1.bf16.msra.mxu0 %v406
  %542 = vmatprep.subr.bf16.mxu0 0
  %543 = vmatpush1.bf16.msra.mxu0 %v407
  %544 = vmatprep.subr.bf16.mxu0 0
  %545 = vmatpush1.bf16.msra.mxu0 %v408
  %546 = vmatprep.subr.bf16.mxu0 0
  %547 = vmatpush1.bf16.msra.mxu0 %v409
  %548 = vmatprep.subr.bf16.mxu0 0
  %549 = vmatpush1.bf16.msra.mxu0 %v410
  %550 = vmatprep.subr.bf16.mxu0 0
  %551 = vmatpush1.bf16.msra.mxu0 %v411
  %552 = vmatprep.subr.bf16.mxu0 0
  %553 = vmatpush1.bf16.msra.mxu0 %v412
  %554 = vmatprep.subr.bf16.mxu0 0
  %555 = vmatpush1.bf16.msra.mxu0 %v413
  %556 = vmatprep.subr.bf16.mxu0 0
  %557 = vmatpush1.bf16.msra.mxu0 %v414
  %558 = vmatprep.subr.bf16.mxu0 0
  %559 = vmatpush1.bf16.msra.mxu0 %v415
  %560 = vmatprep.subr.bf16.mxu0 0
  %561 = vmatpush1.bf16.msra.mxu0 %v416
  %562 = vmatprep.mubr.bf16.mxu0 %v172
  %563 = vmatmul.mubr.bf16.gmra.mrb[0].mxu0 %v171
  %v564 = vpop.f32.mrb[0].mxu0
  %v565 = vadd.f32 %v516, %v564
  %v566 = vpop.f32.mrb[0].mxu0
  %v567 = vpop.f32.mrb[0].mxu0
  %v568 = vadd.f32 %v519, %v567
  %v569 = vpop.f32.mrb[0].mxu0
  %570 = vmatprep.mubr.bf16.mxu0 %v178
  %571 = vmatmul.mubr.bf16.gmra.mrb[0].mxu0 %v177
  %v572 = vpop.f32.mrb[0].mxu0
  %v573 = vadd.f32 %v524, %v572
  %v574 = vpop.f32.mrb[0].mxu0
  %v575 = vpop.f32.mrb[0].mxu0
  %v576 = vadd.f32 %v527, %v575
  %v577 = vpop.f32.mrb[0].mxu0
  %578 = vdwg.mxu0
  %579 = vmatprep.subr.bf16.mxu0 0
  %580 = vmatpush1.bf16.msra.mxu0 %v417
  %581 = vmatprep.subr.bf16.mxu0 0
  %582 = vmatpush1.bf16.msra.mxu0 %v418
  %583 = vmatprep.subr.bf16.mxu0 0
  %584 = vmatpush1.bf16.msra.mxu0 %v419
  %585 = vmatprep.subr.bf16.mxu0 0
  %586 = vmatpush1.bf16.msra.mxu0 %v420
  %587 = vmatprep.subr.bf16.mxu0 0
  %588 = vmatpush1.bf16.msra.mxu0 %v421
  %589 = vmatprep.subr.bf16.mxu0 0
  %590 = vmatpush1.bf16.msra.mxu0 %v422
  %591 = vmatprep.subr.bf16.mxu0 0
  %592 = vmatpush1.bf16.msra.mxu0 %v423
  %593 = vmatprep.subr.bf16.mxu0 0
  %594 = vmatpush1.bf16.msra.mxu0 %v424
  %595 = vmatprep.subr.bf16.mxu0 0
  %596 = vmatpush1.bf16.msra.mxu0 %v425
  %597 = vmatprep.subr.bf16.mxu0 0
  %598 = vmatpush1.bf16.msra.mxu0 %v426
  %599 = vmatprep.subr.bf16.mxu0 0
  %600 = vmatpush1.bf16.msra.mxu0 %v427
  %601 = vmatprep.subr.bf16.mxu0 0
  %602 = vmatpush1.bf16.msra.mxu0 %v428
  %603 = vmatprep.subr.bf16.mxu0 0
  %604 = vmatpush1.bf16.msra.mxu0 %v429
  %605 = vmatprep.subr.bf16.mxu0 0
  %606 = vmatpush1.bf16.msra.mxu0 %v430
  %607 = vmatprep.subr.bf16.mxu0 0
  %608 = vmatpush1.bf16.msra.mxu0 %v431
  %609 = vmatprep.subr.bf16.mxu0 0
  %610 = vmatpush1.bf16.msra.mxu0 %v432
  %611 = vmatprep.mubr.bf16.mxu0 %v174
  %612 = vmatmul.mubr.bf16.gmra.mrb[0].mxu0 %v173
  %v613 = vpop.f32.mrb[0].mxu0
  %v614 = vadd.f32 %v565, %v613
  %v615 = vpop.f32.mrb[0].mxu0
  %v616 = vpop.f32.mrb[0].mxu0
  %v617 = vadd.f32 %v568, %v616
  %v618 = vpop.f32.mrb[0].mxu0
  %619 = vmatprep.mubr.bf16.mxu0 %v180
  %620 = vmatmul.mubr.bf16.gmra.mrb[0].mxu0 %v179
  %v621 = vpop.f32.mrb[0].mxu0
  %v622 = vadd.f32 %v573, %v621
  %v623 = vpop.f32.mrb[0].mxu0
  %v624 = vpop.f32.mrb[0].mxu0
  %v625 = vadd.f32 %v576, %v624
  %v626 = vpop.f32.mrb[0].mxu0
  %627 = vdwg.mxu0
  %v628 = vld [vmem:[%s3] sm:$0xff]
  %v629 = vld [vmem:[%s3 + $0x8] sm:$0xff]
  %v630 = vadd.f32 %v614, %v628
  %v631 = vadd.f32 %v617, %v629
  %v632 = vadd.f32 %v622, %v628
  %v633 = vadd.f32 %v625, %v629
  %vm634 = vcmask 523264
  %635 = vst.msk [vmem:[%s4] sm:$0xff] %vm634, %v630
  %636 = vst.msk [vmem:[%s4 + $0x8] sm:$0xff] %vm634, %v631
  %637 = vst.msk [vmem:[%s4 + $0x10] sm:$0xff] %vm634, %v632
  %638 = vst.msk [vmem:[%s4 + $0x18] sm:$0xff] %vm634, %v633
  // Predicated region
  $region18: #{vit_forward.6} parent=0 // pred_check
    _
  $region19: #{vit_forward.6} parent=0 // pred_check_branch
    %640 = sbr.rel (0) target = $region21
  $region20: #{vit_forward.6} parent=0 // pred_region
    _
  $region21: #{vit_forward.6} parent=0 // pred_fallthru
    _
  // Predicated region
  $region22: #{vit_forward.6} parent=0 // pred_check
    _
  $region23: #{vit_forward.6} parent=0 // pred_check_branch
    %642 = sbr.rel (0) target = $region25
  $region24: #{vit_forward.6} parent=0 // pred_region
    _
  $region25: #{vit_forward.6} parent=0 // pred_fallthru
    _

// kernel: vit_forward.9
$region0: #{vit_forward.9}
  #allocation0 [shape = 'u32[]', space=smem, size = 0x4, offset = 0x4, fixed_abs, tag = 'smem constant byte address 0x4 - core index']
  #allocation1 [shape = 'u32[144,128]{1,0:T(1,128)}', space=vmem, size = 0x12000, scoped, tag = 'internal scratch']
  %s0 = inlined_call_operand.vmem [shape: f32[2,64], index: 0, kind: input, shape index: {}]
  %s1 = inlined_call_operand.vmem [shape: f32[1,64], index: 1, kind: input, shape index: {}]
  %s2 = inlined_call_operand.vmem [shape: f32[1,64], index: 2, kind: input, shape index: {}]
  %s3 = inlined_call_operand.vmem [shape: bf16[64,128], index: 3, kind: input, shape index: {}]
  %s4 = inlined_call_operand.vmem [shape: f32[1,128], index: 4, kind: input, shape index: {}]
  %s5 = inlined_call_operand.hbm [shape: f32[2,128], index: 5, kind: output, shape index: {}]
  %s6 = sld [smem:[#allocation0]]
  $region30: #{vit_forward.9} parent=0
    _
  %s8 = ssub.s32 1, %s6
  %s9 = scalar_select 0, %s8, %s6
  $region1: #{vit_forward.9} parent=0
    #allocation2 [shape = 'u8[1024]{0}', space=vmem, size = 0x400, scoped, tag = 'output window, operand 0, single buffered']
    #allocation3 [shape = 's32[1]{0}', space=sflag, size = 0x4, scoped, tag = 'scoped memory for vit_forward.9']
    %10 = vsyncpa [#allocation3], 0
    // Predicated region
    $region2: #{vit_forward.9} parent=1 // pred_check
      _
    $region3: #{vit_forward.9} parent=1 // pred_check_branch
      %12 = sbr.rel (0) target = $region5
    $region4: #{vit_forward.9} parent=1 // pred_region
      _
    $region5: #{vit_forward.9} parent=1 // pred_fallthru
      _
    // Predicated region
    $region6: #{vit_forward.9} parent=1 // pred_check
      _
    $region7: #{vit_forward.9} parent=1 // pred_check_branch
      %14 = sbr.rel (0) target = $region9
    $region8: #{vit_forward.9} parent=1 // pred_region
      _
    $region9: #{vit_forward.9} parent=1 // pred_fallthru
      _
    // Predicated region
    $region10: #{vit_forward.9} parent=1 // pred_check
      _
    $region11: #{vit_forward.9} parent=1 // pred_check_branch
      %16 = sbr.rel (0) target = $region13
    $region12: #{vit_forward.9} parent=1 // pred_region
      _
    $region13: #{vit_forward.9} parent=1 // pred_fallthru
      _
    // Predicated region
    $region14: #{vit_forward.9} parent=1 // pred_check
      _
    $region15: #{vit_forward.9} parent=1 // pred_check_branch
      %18 = sbr.rel (0) target = $region17
    $region16: #{vit_forward.9} parent=1 // pred_region
      _
    $region17: #{vit_forward.9} parent=1 // pred_fallthru
      _
    // Predicated region
    $region18: #{vit_forward.9} parent=1 // pred_check
      _
    $region19: #{vit_forward.9} parent=1 // pred_check_branch
      %20 = sbr.rel (0) target = $region21
    $region20: #{vit_forward.9} parent=1 // pred_region
      _
    $region21: #{vit_forward.9} parent=1 // pred_fallthru
      _
    %v22 = vld [vmem:[%s0] sm:$0x3]
    %v23 = vld [vmem:[%s1] sm:$0x1]
    %v24 = vld [vmem:[%s2] sm:$0x1]
    %vm25 = vcmask 517120
    %v26 = vsel %vm25, %v22, 0.0
    %27 = vadd.xlane.f32.xlu0 %v26
    %v28 = vpop.xlane.xlu0 %27
    %v29 = vrcp.pop 64.0
    %v30 = vmul.f32 %v28, %v29
    %v31 = vsub.f32 %v22, %v30
    %v32 = vmul.f32 %v31, %v31
    %v33 = vsel %vm25, %v32, 0.0
    %34 = vadd.xlane.f32.xlu0 %v33
    %v35 = vpop.xlane.xlu0 %34
    %v36 = vmul.f32 %v35, %v29
    %v37 = vadd.f32 %v36, 1e-06
    %v38 = vrsqrt.pop %v37
    %v39 = vmul.f32 %v31, %v38
    %v41 = vlaneseq
    %v42 = vshrl.u32 %v41, 7
    %v43 = vsub.s32 0, %v42
    %v44 = vrot.slane %v23, %v43
    %v46 = vmul.f32 %v39, %v44
    %v48 = vlaneseq
    %v49 = vshrl.u32 %v48, 7
    %v50 = vsub.s32 0, %v49
    %v51 = vrot.slane %v24, %v50
    %v53 = vadd.f32 %v46, %v51
    %v54 = vpack.c.bf16 %v53, %v53
    %v55 = vld [vmem:[%s3] sm:$0xf]
    %v56 = vld [vmem:[%s3 + $0x4] sm:$0xf]
    %v57 = vld [vmem:[%s3 + $0x8] sm:$0xf]
    %v58 = vld [vmem:[%s3 + $0xc] sm:$0xf]
    %v59 = vld [vmem:[%s3 + $0x10] sm:$0xf]
    %v60 = vld [vmem:[%s3 + $0x14] sm:$0xf]
    %v61 = vld [vmem:[%s3 + $0x18] sm:$0xf]
    %v62 = vld [vmem:[%s3 + $0x1c] sm:$0xf]
    %v63 = vld [vmem:[%s4] sm:$0x1]
    %v65 = vlaneseq
    %v66 = vshrl.u32 %v65, 7
    %v67 = vsub.s32 0, %v66
    %v68 = vrot.slane %v63, %v67
    %v78 = vunpack.c.l.b16 %v55
    %v79 = vunpack.c.l.b16 %v56
    %v80 = vunpack.c.l.b16 %v57
    %v81 = vunpack.c.l.b16 %v58
    %v82 = vunpack.c.l.b16 %v59
    %v83 = vunpack.c.l.b16 %v60
    %v84 = vunpack.c.l.b16 %v61
    %v85 = vunpack.c.l.b16 %v62
    %v86 = vpack.c.b16 %v79, %v78
    %v87 = vpack.c.b16 %v81, %v80
    %v88 = vpack.c.b16 %v83, %v82
    %v89 = vpack.c.b16 %v85, %v84
    %vm94 = vcmask 523264
    %v96 = vsel %vm94, %v54, 0
    %98 = vmatprep.subr.bf16.mxu0 0
    %99 = vmatpush1.bf16.msra.mxu0 %v86
    %100 = vmatprep.subr.bf16.mxu0 0
    %101 = vmatpush1.bf16.msra.mxu0 %v87
    %102 = vmatprep.subr.bf16.mxu0 0
    %103 = vmatpush1.bf16.msra.mxu0 %v88
    %104 = vmatprep.subr.bf16.mxu0 0
    %105 = vmatpush1.bf16.msra.mxu0 %v89
    %106 = vmatprep.subr.bf16.mxu0 0
    %107 = vmatpush1.bf16.msra.mxu0 0
    %108 = vmatprep.subr.bf16.mxu0 0
    %109 = vmatpush1.bf16.msra.mxu0 0
    %110 = vmatprep.subr.bf16.mxu0 0
    %111 = vmatpush1.bf16.msra.mxu0 0
    %112 = vmatprep.subr.bf16.mxu0 0
    %113 = vmatpush1.bf16.msra.mxu0 0
    %114 = vmatprep.subr.bf16.mxu0 0
    %115 = vmatpush1.bf16.msra.mxu0 0
    %116 = vmatprep.subr.bf16.mxu0 0
    %117 = vmatpush1.bf16.msra.mxu0 0
    %118 = vmatprep.subr.bf16.mxu0 0
    %119 = vmatpush1.bf16.msra.mxu0 0
    %120 = vmatprep.subr.bf16.mxu0 0
    %121 = vmatpush1.bf16.msra.mxu0 0
    %122 = vmatprep.subr.bf16.mxu0 0
    %123 = vmatpush1.bf16.msra.mxu0 0
    %124 = vmatprep.subr.bf16.mxu0 0
    %125 = vmatpush1.bf16.msra.mxu0 0
    %126 = vmatprep.subr.bf16.mxu0 0
    %127 = vmatpush1.bf16.msra.mxu0 0
    %128 = vmatprep.subr.bf16.mxu0 0
    %129 = vmatpush1.bf16.msra.mxu0 0
    %130 = vmatprep.mubr.bf16.mxu0 0
    %131 = vmatmul.mubr.bf16.gmra.mrb[0].mxu0 %v96
    %v132 = vpop.f32.mrb[0].mxu0
    %v133 = vadd.f32 %v68, %v132
    %v134 = vpop.f32.mrb[0].mxu0
    %v135 = vpop.f32.mrb[0].mxu0
    %v136 = vpop.f32.mrb[0].mxu0
    %137 = vdwg.mxu0
    %138 = vst [vmem:[#allocation2] sm:$0x3] %v133
    // Predicated region
    $region22: #{vit_forward.9} parent=1 // pred_check
      _
    $region23: #{vit_forward.9} parent=1 // pred_check_branch
      %140 = sbr.rel (0) target = $region25
    $region24: #{vit_forward.9} parent=1 // pred_region
      %s142 = ssub.s32 32, 32
      %143 = vsyncadd [#allocation3], %s142
      %s145 = sshll.u32 [#allocation2], 4
      %s146 = int_to_ptr.vmem [resolvable:$true] %s145
      %148 = dma.vmem_to_hbm [thread:$0]  %s146, 32, %s5, [#allocation3]
    $region25: #{vit_forward.9} parent=1 // pred_fallthru
      _
    // Predicated region
    $region26: #{vit_forward.9} parent=1 // pred_check
      _
    $region27: #{vit_forward.9} parent=1 // pred_check_branch
      %150 = sbr.rel (0) target = $region29
    $region28: #{vit_forward.9} parent=1 // pred_region
      %151 = dma.done [#allocation3], 32
    $region29: #{vit_forward.9} parent=1 // pred_fallthru
      _
    %152 = vsyncpa [#allocation3], 1

// kernel: vit_forward.7
$region0: #{vit_forward.7}
  #allocation0 [shape = 'u32[]', space=smem, size = 0x4, offset = 0x4, fixed_abs, tag = 'smem constant byte address 0x4 - core index']
  #allocation1 [shape = 'u32[144,128]{1,0:T(1,128)}', space=vmem, size = 0x12000, scoped, tag = 'internal scratch']
  #allocation2 [shape = 'f32[48,64]{1,0:T(8,128)}', space=vmem, size = 0x6000, scoped, tag = 'scratch operand']
  %s0 = inlined_call_operand.vmem [shape: f32[2,24,64], index: 0, kind: input, shape index: {}]
  %s1 = inlined_call_operand.vmem [shape: f32[1,24], index: 1, kind: input, shape index: {}]
  %s2 = inlined_call_operand.vmem [shape: f32[1,64], index: 2, kind: input, shape index: {}]
  %s3 = inlined_call_operand.vmem [shape: f32[1,64], index: 3, kind: input, shape index: {}]
  %s4 = inlined_call_operand.vmem [shape: bf16[64,192], index: 4, kind: input, shape index: {}]
  %s5 = inlined_call_operand.vmem [shape: f32[1,192], index: 5, kind: input, shape index: {}]
  %s6 = inlined_call_operand.vmem [shape: bf16[64,64], index: 6, kind: input, shape index: {}]
  %s7 = inlined_call_operand.vmem [shape: f32[1,64], index: 7, kind: input, shape index: {}]
  %s8 = inlined_call_operand.vmem [shape: f32[1,64], index: 8, kind: input, shape index: {}]
  %s9 = inlined_call_operand.vmem [shape: f32[1,64], index: 9, kind: input, shape index: {}]
  %s10 = inlined_call_operand.vmem [shape: bf16[64,128], index: 10, kind: input, shape index: {}]
  %s11 = inlined_call_operand.vmem [shape: f32[1,128], index: 11, kind: input, shape index: {}]
  %s12 = inlined_call_operand.vmem [shape: bf16[128,64], index: 12, kind: input, shape index: {}]
  %s13 = inlined_call_operand.vmem [shape: f32[1,64], index: 13, kind: input, shape index: {}]
  %s14 = inlined_call_operand.vmem [shape: f32[2,24,64], index: 14, kind: output, shape index: {}]
  %s15 = sld [smem:[#allocation0]]
  $region66: #{vit_forward.7} parent=0
    _
  %s17 = ssub.s32 1, %s15
  %s18 = scalar_select 0, %s17, %s15
  // Predicated region
  $region2: #{vit_forward.7} parent=0 // pred_check
    _
  $region3: #{vit_forward.7} parent=0 // pred_check_branch
    %20 = sbr.rel (0) target = $region5
  $region4: #{vit_forward.7} parent=0 // pred_region
    _
  $region5: #{vit_forward.7} parent=0 // pred_fallthru
    _
  // Predicated region
  $region6: #{vit_forward.7} parent=0 // pred_check
    _
  $region7: #{vit_forward.7} parent=0 // pred_check_branch
    %22 = sbr.rel (0) target = $region9
  $region8: #{vit_forward.7} parent=0 // pred_region
    _
  $region9: #{vit_forward.7} parent=0 // pred_fallthru
    _
  // Predicated region
  $region10: #{vit_forward.7} parent=0 // pred_check
    _
  $region11: #{vit_forward.7} parent=0 // pred_check_branch
    %24 = sbr.rel (0) target = $region13
  $region12: #{vit_forward.7} parent=0 // pred_region
    _
  $region13: #{vit_forward.7} parent=0 // pred_fallthru
    _
  // Predicated region
  $region14: #{vit_forward.7} parent=0 // pred_check
    _
  $region15: #{vit_forward.7} parent=0 // pred_check_branch
    %26 = sbr.rel (0) target = $region17
  $region16: #{vit_forward.7} parent=0 // pred_region
    _
  $region17: #{vit_forward.7} parent=0 // pred_fallthru
    _
  // Predicated region
  $region18: #{vit_forward.7} parent=0 // pred_check
    _
  $region19: #{vit_forward.7} parent=0 // pred_check_branch
    %28 = sbr.rel (0) target = $region21
  $region20: #{vit_forward.7} parent=0 // pred_region
    _
  $region21: #{vit_forward.7} parent=0 // pred_fallthru
    _
  // Predicated region
  $region22: #{vit_forward.7} parent=0 // pred_check
    _
  $region23: #{vit_forward.7} parent=0 // pred_check_branch
    %30 = sbr.rel (0) target = $region25
  $region24: #{vit_forward.7} parent=0 // pred_region
    _
  $region25: #{vit_forward.7} parent=0 // pred_fallthru
    _
  // Predicated region
  $region26: #{vit_forward.7} parent=0 // pred_check
    _
  $region27: #{vit_forward.7} parent=0 // pred_check_branch
    %32 = sbr.rel (0) target = $region29
  $region28: #{vit_forward.7} parent=0 // pred_region
    _
  $region29: #{vit_forward.7} parent=0 // pred_fallthru
    _
  // Predicated region
  $region30: #{vit_forward.7} parent=0 // pred_check
    _
  $region31: #{vit_forward.7} parent=0 // pred_check_branch
    %34 = sbr.rel (0) target = $region33
  $region32: #{vit_forward.7} parent=0 // pred_region
    _
  $region33: #{vit_forward.7} parent=0 // pred_fallthru
    _
  // Predicated region
  $region34: #{vit_forward.7} parent=0 // pred_check
    _
  $region35: #{vit_forward.7} parent=0 // pred_check_branch
    %36 = sbr.rel (0) target = $region37
  $region36: #{vit_forward.7} parent=0 // pred_region
    _
  $region37: #{vit_forward.7} parent=0 // pred_fallthru
    _
  // Predicated region
  $region38: #{vit_forward.7} parent=0 // pred_check
    _
  $region39: #{vit_forward.7} parent=0 // pred_check_branch
    %38 = sbr.rel (0) target = $region41
  $region40: #{vit_forward.7} parent=0 // pred_region
    _
  $region41: #{vit_forward.7} parent=0 // pred_fallthru
    _
  // Predicated region
  $region42: #{vit_forward.7} parent=0 // pred_check
    _
  $region43: #{vit_forward.7} parent=0 // pred_check_branch
    %40 = sbr.rel (0) target = $region45
  $region44: #{vit_forward.7} parent=0 // pred_region
    _
  $region45: #{vit_forward.7} parent=0 // pred_fallthru
    _
  // Predicated region
  $region46: #{vit_forward.7} parent=0 // pred_check
    _
  $region47: #{vit_forward.7} parent=0 // pred_check_branch
    %42 = sbr.rel (0) target = $region49
  $region48: #{vit_forward.7} parent=0 // pred_region
    _
  $region49: #{vit_forward.7} parent=0 // pred_fallthru
    _
  // Predicated region
  $region50: #{vit_forward.7} parent=0 // pred_check
    _
  $region51: #{vit_forward.7} parent=0 // pred_check_branch
    %44 = sbr.rel (0) target = $region53
  $region52: #{vit_forward.7} parent=0 // pred_region
    _
  $region53: #{vit_forward.7} parent=0 // pred_fallthru
    _
  // Predicated region
  $region54: #{vit_forward.7} parent=0 // pred_check
    _
  $region55: #{vit_forward.7} parent=0 // pred_check_branch
    %46 = sbr.rel (0) target = $region57
  $region56: #{vit_forward.7} parent=0 // pred_region
    _
  $region57: #{vit_forward.7} parent=0 // pred_fallthru
    _
  %v48 = vld [vmem:[%s0] sm:$0xff]
  %v49 = vld [vmem:[%s0 + $0x8] sm:$0xff]
  %v50 = vld [vmem:[%s0 + $0x10] sm:$0xff]
  %v51 = vld [vmem:[%s0 + $0x18] sm:$0xff]
  %v52 = vld [vmem:[%s0 + $0x20] sm:$0xff]
  %v53 = vld [vmem:[%s0 + $0x28] sm:$0xff]
  %v54 = vld [vmem:[%s2] sm:$0x1]
  %v55 = vld [vmem:[%s3] sm:$0x1]
  %vm56 = vcmask 523264
  %v57 = vsel %vm56, %v48, 0.0
  %58 = vadd.xlane.f32.xlu0 %v57
  %v59 = vpop.xlane.xlu0 %58
  %v60 = vsel %vm56, %v49, 0.0
  %61 = vadd.xlane.f32.xlu0 %v60
  %v62 = vpop.xlane.xlu0 %61
  %v63 = vsel %vm56, %v50, 0.0
  %64 = vadd.xlane.f32.xlu0 %v63
  %v65 = vpop.xlane.xlu0 %64
  %v66 = vsel %vm56, %v51, 0.0
  %67 = vadd.xlane.f32.xlu0 %v66
  %v68 = vpop.xlane.xlu0 %67
  %v69 = vsel %vm56, %v52, 0.0
  %70 = vadd.xlane.f32.xlu0 %v69
  %v71 = vpop.xlane.xlu0 %70
  %v72 = vsel %vm56, %v53, 0.0
  %73 = vadd.xlane.f32.xlu0 %v72
  %v74 = vpop.xlane.xlu0 %73
  %v75 = vrcp.pop 64.0
  %v76 = vmul.f32 %v59, %v75
  %v77 = vmul.f32 %v62, %v75
  %v78 = vmul.f32 %v65, %v75
  %v79 = vmul.f32 %v68, %v75
  %v80 = vmul.f32 %v71, %v75
  %v81 = vmul.f32 %v74, %v75
  %v82 = vsub.f32 %v48, %v76
  %v83 = vsub.f32 %v49, %v77
  %v84 = vsub.f32 %v50, %v78
  %v85 = vsub.f32 %v51, %v79
  %v86 = vsub.f32 %v52, %v80
  %v87 = vsub.f32 %v53, %v81
  %v88 = vmul.f32 %v82, %v82
  %v89 = vmul.f32 %v83, %v83
  %v90 = vmul.f32 %v84, %v84
  %v91 = vmul.f32 %v85, %v85
  %v92 = vmul.f32 %v86, %v86
  %v93 = vmul.f32 %v87, %v87
  %v94 = vsel %vm56, %v88, 0.0
  %95 = vadd.xlane.f32.xlu0 %v94
  %v96 = vpop.xlane.xlu0 %95
  %v97 = vsel %vm56, %v89, 0.0
  %98 = vadd.xlane.f32.xlu0 %v97
  %v99 = vpop.xlane.xlu0 %98
  %v100 = vsel %vm56, %v90, 0.0
  %101 = vadd.xlane.f32.xlu0 %v100
  %v102 = vpop.xlane.xlu0 %101
  %v103 = vsel %vm56, %v91, 0.0
  %104 = vadd.xlane.f32.xlu0 %v103
  %v105 = vpop.xlane.xlu0 %104
  %v106 = vsel %vm56, %v92, 0.0
  %107 = vadd.xlane.f32.xlu0 %v106
  %v108 = vpop.xlane.xlu0 %107
  %v109 = vsel %vm56, %v93, 0.0
  %110 = vadd.xlane.f32.xlu0 %v109
  %v111 = vpop.xlane.xlu0 %110
  %v112 = vmul.f32 %v96, %v75
  %v113 = vmul.f32 %v99, %v75
  %v114 = vmul.f32 %v102, %v75
  %v115 = vmul.f32 %v105, %v75
  %v116 = vmul.f32 %v108, %v75
  %v117 = vmul.f32 %v111, %v75
  %v118 = vadd.f32 %v112, 1e-06
  %v119 = vadd.f32 %v113, 1e-06
  %v120 = vadd.f32 %v114, 1e-06
  %v121 = vadd.f32 %v115, 1e-06
  %v122 = vadd.f32 %v116, 1e-06
  %v123 = vadd.f32 %v117, 1e-06
  %v124 = vrsqrt.pop %v118
  %v125 = vrsqrt.pop %v119
  %v126 = vrsqrt.pop %v120
  %v127 = vrsqrt.pop %v121
  %v128 = vrsqrt.pop %v122
  %v129 = vrsqrt.pop %v123
  %v130 = vmul.f32 %v82, %v124
  %v131 = vmul.f32 %v83, %v125
  %v132 = vmul.f32 %v84, %v126
  %v133 = vmul.f32 %v85, %v127
  %v134 = vmul.f32 %v86, %v128
  %v135 = vmul.f32 %v87, %v129
  %v137 = vlaneseq
  %v138 = vshrl.u32 %v137, 7
  %v139 = vsub.s32 0, %v138
  %v140 = vrot.slane %v54, %v139
  %v142 = vmul.f32 %v130, %v140
  %v143 = vmul.f32 %v131, %v140
  %v144 = vmul.f32 %v132, %v140
  %v145 = vmul.f32 %v133, %v140
  %v146 = vmul.f32 %v134, %v140
  %v147 = vmul.f32 %v135, %v140
  %v149 = vlaneseq
  %v150 = vshrl.u32 %v149, 7
  %v151 = vsub.s32 0, %v150
  %v152 = vrot.slane %v55, %v151
  %v154 = vadd.f32 %v142, %v152
  %v155 = vadd.f32 %v143, %v152
  %v156 = vadd.f32 %v144, %v152
  %v157 = vadd.f32 %v145, %v152
  %v158 = vadd.f32 %v146, %v152
  %v159 = vadd.f32 %v147, %v152
  %v160 = vpack.c.bf16 %v155, %v154
  %v161 = vpack.c.bf16 %v157, %v156
  %v162 = vpack.c.bf16 %v159, %v158
  %v163 = vld [vmem:[%s4] sm:$0xff]
  %v164 = vld [vmem:[%s4 + $0x8] sm:$0xff]
  %v165 = vld [vmem:[%s4 + $0x10] sm:$0xff]
  %v166 = vld [vmem:[%s4 + $0x18] sm:$0xff]
  %v167 = vld [vmem:[%s4 + $0x20] sm:$0xff]
  %v168 = vld [vmem:[%s4 + $0x28] sm:$0xff]
  %v169 = vld [vmem:[%s4 + $0x30] sm:$0xff]
  %v170 = vld [vmem:[%s4 + $0x38] sm:$0xff]
  %v171 = vld [vmem:[%s5] sm:$0x3]
  %v173 = vlaneseq
  %v174 = vshrl.u32 %v173, 7
  %v175 = vsub.s32 0, %v174
  %v176 = vrot.slane %v171, %v175
  %v177 = vlaneseq
  %v178 = vshrl.u32 %v177, 7
  %v179 = vsub.s32 1, %v178
  %v180 = vrot.slane %v171, %v179
  %v191 = vunpack.c.l.b16 %v163
  %v192 = vunpack.c.h.b16 %v163
  %v193 = vunpack.c.l.b16 %v164
  %v194 = vunpack.c.h.b16 %v164
  %v195 = vunpack.c.l.b16 %v165
  %v196 = vunpack.c.h.b16 %v165
  %v197 = vunpack.c.l.b16 %v166
  %v198 = vunpack.c.h.b16 %v166
  %v199 = vunpack.c.l.b16 %v167
  %v200 = vunpack.c.h.b16 %v167
  %v201 = vunpack.c.l.b16 %v168
  %v202 = vunpack.c.h.b16 %v168
  %v203 = vunpack.c.l.b16 %v169
  %v204 = vunpack.c.h.b16 %v169
  %v205 = vunpack.c.l.b16 %v170
  %v206 = vunpack.c.h.b16 %v170
  %v207 = vpack.c.b16 %v193, %v191
  %v208 = vpack.c.b16 %v194, %v192
  %v209 = vpack.c.b16 %v197, %v195
  %v210 = vpack.c.b16 %v198, %v196
  %v211 = vpack.c.b16 %v201, %v199
  %v212 = vpack.c.b16 %v202, %v200
  %v213 = vpack.c.b16 %v205, %v203
  %v214 = vpack.c.b16 %v206, %v204
  %v224 = vsel %vm56, %v160, 0
  %v227 = vsel %vm56, %v161, 0
  %v230 = vsel %vm56, %v162, 0
  %232 = vmatprep.subr.bf16.mxu0 %v208
  %233 = vmatpush1.bf16.msra.mxu0 %v207
  %234 = vmatprep.subr.bf16.mxu0 %v210
  %235 = vmatpush1.bf16.msra.mxu0 %v209
  %236 = vmatprep.subr.bf16.mxu0 %v212
  %237 = vmatpush1.bf16.msra.mxu0 %v211
  %238 = vmatprep.subr.bf16.mxu0 %v214
  %239 = vmatpush1.bf16.msra.mxu0 %v213
  %240 = vmatprep.subr.bf16.mxu0 0
  %241 = vmatpush1.bf16.msra.mxu0 0
  %242 = vmatprep.subr.bf16.mxu0 0
  %243 = vmatpush1.bf16.msra.mxu0 0
  %244 = vmatprep.subr.bf16.mxu0 0
  %245 = vmatpush1.bf16.msra.mxu0 0
  %246 = vmatprep.subr.bf16.mxu0 0
  %247 = vmatpush1.bf16.msra.mxu0 0
  %248 = vmatprep.subr.bf16.mxu0 0
  %249 = vmatpush1.bf16.msra.mxu0 0
  %250 = vmatprep.subr.bf16.mxu0 0
  %251 = vmatpush1.bf16.msra.mxu0 0
  %252 = vmatprep.subr.bf16.mxu0 0
  %253 = vmatpush1.bf16.msra.mxu0 0
  %254 = vmatprep.subr.bf16.mxu0 0
  %255 = vmatpush1.bf16.msra.mxu0 0
  %256 = vmatprep.subr.bf16.mxu0 0
  %257 = vmatpush1.bf16.msra.mxu0 0
  %258 = vmatprep.subr.bf16.mxu0 0
  %259 = vmatpush1.bf16.msra.mxu0 0
  %260 = vmatprep.subr.bf16.mxu0 0
  %261 = vmatpush1.bf16.msra.mxu0 0
  %262 = vmatprep.subr.bf16.mxu0 0
  %263 = vmatpush1.bf16.msra.mxu0 0
  %264 = vmatprep.mubr.bf16.mxu0 0
  %265 = vmatmul.mubr.bf16.gmra.mrb[0].mxu0 %v224
  %v266 = vpop.f32.mrb[0].mxu0
  %v267 = vadd.f32 %v176, %v266
  %v268 = vpop.f32.mrb[0].mxu0
  %v269 = vadd.f32 %v180, %v268
  %v270 = vpop.f32.mrb[0].mxu0
  %v271 = vadd.f32 %v176, %v270
  %v272 = vpop.f32.mrb[0].mxu0
  %v273 = vadd.f32 %v180, %v272
  %274 = vmatprep.mubr.bf16.mxu0 0
  %275 = vmatmul.mubr.bf16.gmra.mrb[0].mxu0 %v227
  %v276 = vpop.f32.mrb[0].mxu0
  %v277 = vadd.f32 %v176, %v276
  %v278 = vpop.f32.mrb[0].mxu0
  %v279 = vadd.f32 %v180, %v278
  %v280 = vpop.f32.mrb[0].mxu0
  %v281 = vadd.f32 %v176, %v280
  %v282 = vpop.f32.mrb[0].mxu0
  %v283 = vadd.f32 %v180, %v282
  %284 = vmatprep.mubr.bf16.mxu0 0
  %285 = vmatmul.mubr.bf16.gmra.mrb[0].mxu0 %v230
  %v286 = vpop.f32.mrb[0].mxu0
  %v287 = vadd.f32 %v176, %v286
  %v288 = vpop.f32.mrb[0].mxu0
  %v289 = vadd.f32 %v180, %v288
  %v290 = vpop.f32.mrb[0].mxu0
  %v291 = vadd.f32 %v176, %v290
  %v292 = vpop.f32.mrb[0].mxu0
  %v293 = vadd.f32 %v180, %v292
  %294 = vdwg.mxu0
  %v295 = vld [vmem:[%s1] sm:$0x1]
  %v296 = vpack.c.bf16 %v271, %v267
  %v297 = vpack.c.bf16 %v277, %v277
  %v298 = vpack.c.bf16 %v287, %v281
  %v299 = vpack.c.bf16 %v291, %v291
  %v300 = vpack.c.bf16 %v273, %v269
  %v301 = vpack.c.bf16 %v279, %v279
  %v302 = vpack.c.bf16 %v289, %v283
  %v303 = vpack.c.bf16 %v293, %v293
  %306 = vrot.lane.b32.xlu0 %v296, 64
  %v307 = vpop.permute.xlu0 %306
  %308 = vrot.lane.b32.xlu0 %v297, 64
  %v309 = vpop.permute.xlu0 %308
  %vm310 = vcmask 130048
  %v312 = vsel %vm310, %v296, 0
  %v315 = vsel %vm310, %v297, 0
  %v318 = vsel %vm310, %v307, 0
  %v321 = vsel %vm310, %v309, 0
  %323 = vmatprep.subr.bf16.mxu0 0
  %324 = vmatpush1.bf16.xpose.msra.mxu0 %v318
  %325 = vmatprep.subr.bf16.mxu0 0
  %326 = vmatpush1.bf16.xpose.msra.mxu0 %v321
  %327 = vmatprep.subr.bf16.mxu0 0
  %328 = vmatpush1.bf16.xpose.msra.mxu0 0
  %329 = vmatprep.subr.bf16.mxu0 0
  %330 = vmatpush1.bf16.xpose.msra.mxu0 0
  %331 = vmatprep.subr.bf16.mxu0 0
  %332 = vmatpush1.bf16.xpose.msra.mxu0 0
  %333 = vmatprep.subr.bf16.mxu0 0
  %334 = vmatpush1.bf16.xpose.msra.mxu0 0
  %335 = vmatprep.subr.bf16.mxu0 0
  %336 = vmatpush1.bf16.xpose.msra.mxu0 0
  %337 = vmatprep.subr.bf16.mxu0 0
  %338 = vmatpush1.bf16.xpose.msra.mxu0 0
  %339 = vmatprep.subr.bf16.mxu0 0
  %340 = vmatpush1.bf16.xpose.msra.mxu0 0
  %341 = vmatprep.subr.bf16.mxu0 0
  %342 = vmatpush1.bf16.xpose.msra.mxu0 0
  %343 = vmatprep.subr.bf16.mxu0 0
  %344 = vmatpush1.bf16.xpose.msra.mxu0 0
  %345 = vmatprep.subr.bf16.mxu0 0
  %346 = vmatpush1.bf16.xpose.msra.mxu0 0
  %347 = vmatprep.subr.bf16.mxu0 0
  %348 = vmatpush1.bf16.xpose.msra.mxu0 0
  %349 = vmatprep.subr.bf16.mxu0 0
  %350 = vmatpush1.bf16.xpose.msra.mxu0 0
  %351 = vmatprep.subr.bf16.mxu0 0
  %352 = vmatpush1.bf16.xpose.msra.mxu0 0
  %353 = vmatprep.subr.bf16.mxu0 0
  %354 = vmatpush1.bf16.xpose.msra.mxu0 0
  %355 = vmatprep.mubr.bf16.mxu0 0
  %356 = vmatmul.mubr.bf16.gmra.mrb[0].mxu0 %v312
  %v357 = vpop.f32.mrb[0].mxu0
  %v358 = vadd.f32 0.0, %v357
  %v359 = vpop.f32.mrb[0].mxu0
  %v360 = vpop.f32.mrb[0].mxu0
  %v361 = vadd.f32 0.0, %v360
  %v362 = vpop.f32.mrb[0].mxu0
  %363 = vmatprep.mubr.bf16.mxu0 0
  %364 = vmatmul.mubr.bf16.gmra.mrb[0].mxu0 %v315
  %v365 = vpop.f32.mrb[0].mxu0
  %v366 = vadd.f32 0.0, %v365
  %v367 = vpop.f32.mrb[0].mxu0
  %v368 = vpop.f32.mrb[0].mxu0
  %v369 = vpop.f32.mrb[0].mxu0
  %370 = vdwg.mxu0
  %373 = vrot.lane.b32.xlu0 %v298, 64
  %v374 = vpop.permute.xlu0 %373
  %375 = vrot.lane.b32.xlu0 %v299, 64
  %v376 = vpop.permute.xlu0 %375
  %v378 = vsel %vm310, %v298, 0
  %v381 = vsel %vm310, %v299, 0
  %v384 = vsel %vm310, %v374, 0
  %v387 = vsel %vm310, %v376, 0
  %389 = vmatprep.subr.bf16.mxu0 0
  %390 = vmatpush1.bf16.xpose.msra.mxu0 %v384
  %391 = vmatprep.subr.bf16.mxu0 0
  %392 = vmatpush1.bf16.xpose.msra.mxu0 %v387
  %393 = vmatprep.subr.bf16.mxu0 0
  %394 = vmatpush1.bf16.xpose.msra.mxu0 0
  %395 = vmatprep.subr.bf16.mxu0 0
  %396 = vmatpush1.bf16.xpose.msra.mxu0 0
  %397 = vmatprep.subr.bf16.mxu0 0
  %398 = vmatpush1.bf16.xpose.msra.mxu0 0
  %399 = vmatprep.subr.bf16.mxu0 0
  %400 = vmatpush1.bf16.xpose.msra.mxu0 0
  %401 = vmatprep.subr.bf16.mxu0 0
  %402 = vmatpush1.bf16.xpose.msra.mxu0 0
  %403 = vmatprep.subr.bf16.mxu0 0
  %404 = vmatpush1.bf16.xpose.msra.mxu0 0
  %405 = vmatprep.subr.bf16.mxu0 0
  %406 = vmatpush1.bf16.xpose.msra.mxu0 0
  %407 = vmatprep.subr.bf16.mxu0 0
  %408 = vmatpush1.bf16.xpose.msra.mxu0 0
  %409 = vmatprep.subr.bf16.mxu0 0
  %410 = vmatpush1.bf16.xpose.msra.mxu0 0
  %411 = vmatprep.subr.bf16.mxu0 0
  %412 = vmatpush1.bf16.xpose.msra.mxu0 0
  %413 = vmatprep.subr.bf16.mxu0 0
  %414 = vmatpush1.bf16.xpose.msra.mxu0 0
  %415 = vmatprep.subr.bf16.mxu0 0
  %416 = vmatpush1.bf16.xpose.msra.mxu0 0
  %417 = vmatprep.subr.bf16.mxu0 0
  %418 = vmatpush1.bf16.xpose.msra.mxu0 0
  %419 = vmatprep.subr.bf16.mxu0 0
  %420 = vmatpush1.bf16.xpose.msra.mxu0 0
  %421 = vmatprep.mubr.bf16.mxu0 0
  %422 = vmatmul.mubr.bf16.gmra.mrb[0].mxu0 %v378
  %v423 = vpop.f32.mrb[0].mxu0
  %v424 = vadd.f32 0.0, %v423
  %v425 = vpop.f32.mrb[0].mxu0
  %v426 = vpop.f32.mrb[0].mxu0
  %v427 = vadd.f32 0.0, %v426
  %v428 = vpop.f32.mrb[0].mxu0
  %429 = vmatprep.mubr.bf16.mxu0 0
  %430 = vmatmul.mubr.bf16.gmra.mrb[0].mxu0 %v381
  %v431 = vpop.f32.mrb[0].mxu0
  %v432 = vadd.f32 0.0, %v431
  %v433 = vpop.f32.mrb[0].mxu0
  %v434 = vpop.f32.mrb[0].mxu0
  %v435 = vpop.f32.mrb[0].mxu0
  %436 = vdwg.mxu0
  %v437 = vmul.f32 %v358, 0.25
  %v438 = vmul.f32 %v361, 0.25
  %v439 = vmul.f32 %v366, 0.25
  %v440 = vmul.f32 %v424, 0.25
  %v441 = vmul.f32 %v427, 0.25
  %v442 = vmul.f32 %v432, 0.25
  %v444 = vlaneseq
  %v445 = vshrl.u32 %v444, 7
  %v446 = vsub.s32 0, %v445
  %v447 = vrot.slane %v295, %v446
  %v449 = vadd.f32 %v437, %v447
  %v450 = vadd.f32 %v438, %v447
  %v451 = vadd.f32 %v439, %v447
  %v452 = vadd.f32 %v440, %v447
  %v453 = vadd.f32 %v441, %v447
  %v454 = vadd.f32 %v442, %v447
  %vm455 = vcmask 195584
  %v456 = vsel %vm455, %v449, -inf
  %457 = vmax.xlane.f32.xlu0 %v456
  %v458 = vpop.xlane.xlu0 %457
  %v459 = vsel %vm455, %v450, -inf
  %460 = vmax.xlane.f32.xlu0 %v459
  %v461 = vpop.xlane.xlu0 %460
  %v462 = vsel %vm455, %v451, -inf
  %463 = vmax.xlane.f32.xlu0 %v462
  %v464 = vpop.xlane.xlu0 %463
  %v465 = vsel %vm455, %v452, -inf
  %466 = vmax.xlane.f32.xlu0 %v465
  %v467 = vpop.xlane.xlu0 %466
  %v468 = vsel %vm455, %v453, -inf
  %469 = vmax.xlane.f32.xlu0 %v468
  %v470 = vpop.xlane.xlu0 %469
  %v471 = vsel %vm455, %v454, -inf
  %472 = vmax.xlane.f32.xlu0 %v471
  %v473 = vpop.xlane.xlu0 %472
  %v474 = vsub.f32 %v449, %v458
  %v475 = vsub.f32 %v450, %v461
  %v476 = vsub.f32 %v451, %v464
  %v477 = vsub.f32 %v452, %v467
  %v478 = vsub.f32 %v453, %v470
  %v479 = vsub.f32 %v454, %v473
  %v480 = vmul.f32 %v474, 1.442695
  %v481 = vpow.pop %v480
  %v482 = vmul.f32 %v475, 1.442695
  %v483 = vpow.pop %v482
  %v484 = vmul.f32 %v476, 1.442695
  %v485 = vpow.pop %v484
  %v486 = vmul.f32 %v477, 1.442695
  %v487 = vpow.pop %v486
  %v488 = vmul.f32 %v478, 1.442695
  %v489 = vpow.pop %v488
  %v490 = vmul.f32 %v479, 1.442695
  %v491 = vpow.pop %v490
  %v492 = vsel %vm455, %v481, 0.0
  %493 = vadd.xlane.f32.xlu0 %v492
  %v494 = vpop.xlane.xlu0 %493
  %v495 = vsel %vm455, %v483, 0.0
  %496 = vadd.xlane.f32.xlu0 %v495
  %v497 = vpop.xlane.xlu0 %496
  %v498 = vsel %vm455, %v485, 0.0
  %499 = vadd.xlane.f32.xlu0 %v498
  %v500 = vpop.xlane.xlu0 %499
  %v501 = vsel %vm455, %v487, 0.0
  %502 = vadd.xlane.f32.xlu0 %v501
  %v503 = vpop.xlane.xlu0 %502
  %v504 = vsel %vm455, %v489, 0.0
  %505 = vadd.xlane.f32.xlu0 %v504
  %v506 = vpop.xlane.xlu0 %505
  %v507 = vsel %vm455, %v491, 0.0
  %508 = vadd.xlane.f32.xlu0 %v507
  %v509 = vpop.xlane.xlu0 %508
  %v510 = vrcp.pop %v494
  %v511 = vrcp.pop %v497
  %v512 = vrcp.pop %v500
  %v513 = vrcp.pop %v503
  %v514 = vrcp.pop %v506
  %v515 = vrcp.pop %v509
  %v516 = vmul.f32 %v481, %v510
  %v517 = vmul.f32 %v483, %v511
  %v518 = vmul.f32 %v485, %v512
  %v519 = vmul.f32 %v487, %v513
  %v520 = vmul.f32 %v489, %v514
  %v521 = vmul.f32 %v491, %v515
  %v522 = vpack.c.bf16 %v517, %v516
  %v523 = vpack.c.bf16 %v518, %v518
  %v524 = vpack.c.bf16 %v520, %v519
  %v525 = vpack.c.bf16 %v521, %v521
  %v527 = vsel %vm455, %v522, 0
  %v530 = vsel %vm455, %v523, 0
  %vm532 = vcmask 1043456
  %v534 = vsel %vm532, %v301, 0
  %536 = vmatprep.subr.bf16.mxu0 0
  %537 = vmatpush1.bf16.msra.mxu0 %v300
  %538 = vmatprep.subr.bf16.mxu0 0
  %539 = vmatpush1.bf16.msra.mxu0 %v534
  %540 = vmatprep.subr.bf16.mxu0 0
  %541 = vmatpush1.bf16.msra.mxu0 0
  %542 = vmatprep.subr.bf16.mxu0 0
  %543 = vmatpush1.bf16.msra.mxu0 0
  %544 = vmatprep.subr.bf16.mxu0 0
  %545 = vmatpush1.bf16.msra.mxu0 0
  %546 = vmatprep.subr.bf16.mxu0 0
  %547 = vmatpush1.bf16.msra.mxu0 0
  %548 = vmatprep.subr.bf16.mxu0 0
  %549 = vmatpush1.bf16.msra.mxu0 0
  %550 = vmatprep.subr.bf16.mxu0 0
  %551 = vmatpush1.bf16.msra.mxu0 0
  %552 = vmatprep.subr.bf16.mxu0 0
  %553 = vmatpush1.bf16.msra.mxu0 0
  %554 = vmatprep.subr.bf16.mxu0 0
  %555 = vmatpush1.bf16.msra.mxu0 0
  %556 = vmatprep.subr.bf16.mxu0 0
  %557 = vmatpush1.bf16.msra.mxu0 0
  %558 = vmatprep.subr.bf16.mxu0 0
  %559 = vmatpush1.bf16.msra.mxu0 0
  %560 = vmatprep.subr.bf16.mxu0 0
  %561 = vmatpush1.bf16.msra.mxu0 0
  %562 = vmatprep.subr.bf16.mxu0 0
  %563 = vmatpush1.bf16.msra.mxu0 0
  %564 = vmatprep.subr.bf16.mxu0 0
  %565 = vmatpush1.bf16.msra.mxu0 0
  %566 = vmatprep.subr.bf16.mxu0 0
  %567 = vmatpush1.bf16.msra.mxu0 0
  %568 = vmatprep.mubr.bf16.mxu0 0
  %569 = vmatmul.mubr.bf16.gmra.mrb[0].mxu0 %v527
  %v570 = vpop.f32.mrb[0].mxu0
  %v571 = vadd.f32 0.0, %v570
  %v572 = vpop.f32.mrb[0].mxu0
  %v573 = vpop.f32.mrb[0].mxu0
  %v574 = vadd.f32 0.0, %v573
  %v575 = vpop.f32.mrb[0].mxu0
  %576 = vmatprep.mubr.bf16.mxu0 0
  %577 = vmatmul.mubr.bf16.gmra.mrb[0].mxu0 %v530
  %v578 = vpop.f32.mrb[0].mxu0
  %v579 = vadd.f32 0.0, %v578
  %v580 = vpop.f32.mrb[0].mxu0
  %v581 = vpop.f32.mrb[0].mxu0
  %v582 = vpop.f32.mrb[0].mxu0
  %583 = vdwg.mxu0
  %v585 = vsel %vm455, %v524, 0
  %v588 = vsel %vm455, %v525, 0
  %v591 = vsel %vm532, %v303, 0
  %593 = vmatprep.subr.bf16.mxu0 0
  %594 = vmatpush1.bf16.msra.mxu0 %v302
  %595 = vmatprep.subr.bf16.mxu0 0
  %596 = vmatpush1.bf16.msra.mxu0 %v591
  %597 = vmatprep.subr.bf16.mxu0 0
  %598 = vmatpush1.bf16.msra.mxu0 0
  %599 = vmatprep.subr.bf16.mxu0 0
  %600 = vmatpush1.bf16.msra.mxu0 0
  %601 = vmatprep.subr.bf16.mxu0 0
  %602 = vmatpush1.bf16.msra.mxu0 0
  %603 = vmatprep.subr.bf16.mxu0 0
  %604 = vmatpush1.bf16.msra.mxu0 0
  %605 = vmatprep.subr.bf16.mxu0 0
  %606 = vmatpush1.bf16.msra.mxu0 0
  %607 = vmatprep.subr.bf16.mxu0 0
  %608 = vmatpush1.bf16.msra.mxu0 0
  %609 = vmatprep.subr.bf16.mxu0 0
  %610 = vmatpush1.bf16.msra.mxu0 0
  %611 = vmatprep.subr.bf16.mxu0 0
  %612 = vmatpush1.bf16.msra.mxu0 0
  %613 = vmatprep.subr.bf16.mxu0 0
  %614 = vmatpush1.bf16.msra.mxu0 0
  %615 = vmatprep.subr.bf16.mxu0 0
  %616 = vmatpush1.bf16.msra.mxu0 0
  %617 = vmatprep.subr.bf16.mxu0 0
  %618 = vmatpush1.bf16.msra.mxu0 0
  %619 = vmatprep.subr.bf16.mxu0 0
  %620 = vmatpush1.bf16.msra.mxu0 0
  %621 = vmatprep.subr.bf16.mxu0 0
  %622 = vmatpush1.bf16.msra.mxu0 0
  %623 = vmatprep.subr.bf16.mxu0 0
  %624 = vmatpush1.bf16.msra.mxu0 0
  %625 = vmatprep.mubr.bf16.mxu0 0
  %626 = vmatmul.mubr.bf16.gmra.mrb[0].mxu0 %v585
  %v627 = vpop.f32.mrb[0].mxu0
  %v628 = vadd.f32 0.0, %v627
  %v629 = vpop.f32.mrb[0].mxu0
  %v630 = vpop.f32.mrb[0].mxu0
  %v631 = vadd.f32 0.0, %v630
  %v632 = vpop.f32.mrb[0].mxu0
  %633 = vmatprep.mubr.bf16.mxu0 0
  %634 = vmatmul.mubr.bf16.gmra.mrb[0].mxu0 %v588
  %v635 = vpop.f32.mrb[0].mxu0
  %v636 = vadd.f32 0.0, %v635
  %v637 = vpop.f32.mrb[0].mxu0
  %v638 = vpop.f32.mrb[0].mxu0
  %v639 = vpop.f32.mrb[0].mxu0
  %640 = vdwg.mxu0
  %641 = vst.msk [vmem:[#allocation2] sm:$0xff] %vm310, %v571
  %642 = vst.msk [vmem:[#allocation2 + $0x8] sm:$0xff] %vm310, %v574
  %643 = vst.msk [vmem:[#allocation2 + $0x10] sm:$0xff] %vm310, %v579
  %644 = vst.msk [vmem:[#allocation2 + $0x18] sm:$0xff] %vm310, %v628
  %645 = vst.msk [vmem:[#allocation2 + $0x20] sm:$0xff] %vm310, %v631
  %646 = vst.msk [vmem:[#allocation2 + $0x28] sm:$0xff] %vm310, %v636
  %647 = vrot.lane.b32.xlu0 %v296, 112
  %v648 = vpop.permute.xlu0 %647
  %649 = vrot.lane.b32.xlu0 %v297, 112
  %v650 = vpop.permute.xlu0 %649
  %651 = vrot.lane.b32.xlu0 %v296, 48
  %v652 = vpop.permute.xlu0 %651
  %653 = vrot.lane.b32.xlu0 %v297, 48
  %v654 = vpop.permute.xlu0 %653
  %v656 = vsel %vm310, %v648, 0
  %v659 = vsel %vm310, %v650, 0
  %v662 = vsel %vm310, %v652, 0
  %v665 = vsel %vm310, %v654, 0
  %667 = vmatprep.subr.bf16.mxu0 0
  %668 = vmatpush1.bf16.xpose.msra.mxu0 %v662
  %669 = vmatprep.subr.bf16.mxu0 0
  %670 = vmatpush1.bf16.xpose.msra.mxu0 %v665
  %671 = vmatprep.subr.bf16.mxu0 0
  %672 = vmatpush1.bf16.xpose.msra.mxu0 0
  %673 = vmatprep.subr.bf16.mxu0 0
  %674 = vmatpush1.bf16.xpose.msra.mxu0 0
  %675 = vmatprep.subr.bf16.mxu0 0
  %676 = vmatpush1.bf16.xpose.msra.mxu0 0
  %677 = vmatprep.subr.bf16.mxu0 0
  %678 = vmatpush1.bf16.xpose.msra.mxu0 0
  %679 = vmatprep.subr.bf16.mxu0 0
  %680 = vmatpush1.bf16.xpose.msra.mxu0 0
  %681 = vmatprep.subr.bf16.mxu0 0
  %682 = vmatpush1.bf16.xpose.msra.mxu0 0
  %683 = vmatprep.subr.bf16.mxu0 0
  %684 = vmatpush1.bf16.xpose.msra.mxu0 0
  %685 = vmatprep.subr.bf16.mxu0 0
  %686 = vmatpush1.bf16.xpose.msra.mxu0 0
  %687 = vmatprep.subr.bf16.mxu0 0
  %688 = vmatpush1.bf16.xpose.msra.mxu0 0
  %689 = vmatprep.subr.bf16.mxu0 0
  %690 = vmatpush1.bf16.xpose.msra.mxu0 0
  %691 = vmatprep.subr.bf16.mxu0 0
  %692 = vmatpush1.bf16.xpose.msra.mxu0 0
  %693 = vmatprep.subr.bf16.mxu0 0
  %694 = vmatpush1.bf16.xpose.msra.mxu0 0
  %695 = vmatprep.subr.bf16.mxu0 0
  %696 = vmatpush1.bf16.xpose.msra.mxu0 0
  %697 = vmatprep.subr.bf16.mxu0 0
  %698 = vmatpush1.bf16.xpose.msra.mxu0 0
  %699 = vmatprep.mubr.bf16.mxu0 0
  %700 = vmatmul.mubr.bf16.gmra.mrb[0].mxu0 %v656
  %v701 = vpop.f32.mrb[0].mxu0
  %v702 = vadd.f32 0.0, %v701
  %v703 = vpop.f32.mrb[0].mxu0
  %v704 = vpop.f32.mrb[0].mxu0
  %v705 = vadd.f32 0.0, %v704
  %v706 = vpop.f32.mrb[0].mxu0
  %707 = vmatprep.mubr.bf16.mxu0 0
  %708 = vmatmul.mubr.bf16.gmra.mrb[0].mxu0 %v659
  %v709 = vpop.f32.mrb[0].mxu0
  %v710 = vadd.f32 0.0, %v709
  %v711 = vpop.f32.mrb[0].mxu0
  %v712 = vpop.f32.mrb[0].mxu0
  %v713 = vpop.f32.mrb[0].mxu0
  %714 = vdwg.mxu0
  %715 = vrot.lane.b32.xlu0 %v298, 112
  %v716 = vpop.permute.xlu0 %715
  %717 = vrot.lane.b32.xlu0 %v299, 112
  %v718 = vpop.permute.xlu0 %717
  %719 = vrot.lane.b32.xlu0 %v298, 48
  %v720 = vpop.permute.xlu0 %719
  %721 = vrot.lane.b32.xlu0 %v299, 48
  %v722 = vpop.permute.xlu0 %721
  %v724 = vsel %vm310, %v716, 0
  %v727 = vsel %vm310, %v718, 0
  %v730 = vsel %vm310, %v720, 0
  %v733 = vsel %vm310, %v722, 0
  %735 = vmatprep.subr.bf16.mxu0 0
  %736 = vmatpush1.bf16.xpose.msra.mxu0 %v730
  %737 = vmatprep.subr.bf16.mxu0 0
  %738 = vmatpush1.bf16.xpose.msra.mxu0 %v733
  %739 = vmatprep.subr.bf16.mxu0 0
  %740 = vmatpush1.bf16.xpose.msra.mxu0 0
  %741 = vmatprep.subr.bf16.mxu0 0
  %742 = vmatpush1.bf16.xpose.msra.mxu0 0
  %743 = vmatprep.subr.bf16.mxu0 0
  %744 = vmatpush1.bf16.xpose.msra.mxu0 0
  %745 = vmatprep.subr.bf16.mxu0 0
  %746 = vmatpush1.bf16.xpose.msra.mxu0 0
  %747 = vmatprep.subr.bf16.mxu0 0
  %748 = vmatpush1.bf16.xpose.msra.mxu0 0
  %749 = vmatprep.subr.bf16.mxu0 0
  %750 = vmatpush1.bf16.xpose.msra.mxu0 0
  %751 = vmatprep.subr.bf16.mxu0 0
  %752 = vmatpush1.bf16.xpose.msra.mxu0 0
  %753 = vmatprep.subr.bf16.mxu0 0
  %754 = vmatpush1.bf16.xpose.msra.mxu0 0
  %755 = vmatprep.subr.bf16.mxu0 0
  %756 = vmatpush1.bf16.xpose.msra.mxu0 0
  %757 = vmatprep.subr.bf16.mxu0 0
  %758 = vmatpush1.bf16.xpose.msra.mxu0 0
  %759 = vmatprep.subr.bf16.mxu0 0
  %760 = vmatpush1.bf16.xpose.msra.mxu0 0
  %761 = vmatprep.subr.bf16.mxu0 0
  %762 = vmatpush1.bf16.xpose.msra.mxu0 0
  %763 = vmatprep.subr.bf16.mxu0 0
  %764 = vmatpush1.bf16.xpose.msra.mxu0 0
  %765 = vmatprep.subr.bf16.mxu0 0
  %766 = vmatpush1.bf16.xpose.msra.mxu0 0
  %767 = vmatprep.mubr.bf16.mxu0 0
  %768 = vmatmul.mubr.bf16.gmra.mrb[0].mxu0 %v724
  %v769 = vpop.f32.mrb[0].mxu0
  %v770 = vadd.f32 0.0, %v769
  %v771 = vpop.f32.mrb[0].mxu0
  %v772 = vpop.f32.mrb[0].mxu0
  %v773 = vadd.f32 0.0, %v772
  %v774 = vpop.f32.mrb[0].mxu0
  %775 = vmatprep.mubr.bf16.mxu0 0
  %776 = vmatmul.mubr.bf16.gmra.mrb[0].mxu0 %v727
  %v777 = vpop.f32.mrb[0].mxu0
  %v778 = vadd.f32 0.0, %v777
  %v779 = vpop.f32.mrb[0].mxu0
  %v780 = vpop.f32.mrb[0].mxu0
  %v781 = vpop.f32.mrb[0].mxu0
  %782 = vdwg.mxu0
  %v783 = vmul.f32 %v702, 0.25
  %v784 = vmul.f32 %v705, 0.25
  %v785 = vmul.f32 %v710, 0.25
  %v786 = vmul.f32 %v770, 0.25
  %v787 = vmul.f32 %v773, 0.25
  %v788 = vmul.f32 %v778, 0.25
  %v789 = vadd.f32 %v783, %v447
  %v790 = vadd.f32 %v784, %v447
  %v791 = vadd.f32 %v785, %v447
  %v792 = vadd.f32 %v786, %v447
  %v793 = vadd.f32 %v787, %v447
  %v794 = vadd.f32 %v788, %v447
  %v795 = vsel %vm455, %v789, -inf
  %796 = vmax.xlane.f32.xlu0 %v795
  %v797 = vpop.xlane.xlu0 %796
  %v798 = vsel %vm455, %v790, -inf
  %799 = vmax.xlane.f32.xlu0 %v798
  %v800 = vpop.xlane.xlu0 %799
  %v801 = vsel %vm455, %v791, -inf
  %802 = vmax.xlane.f32.xlu0 %v801
  %v803 = vpop.xlane.xlu0 %802
  %v804 = vsel %vm455, %v792, -inf
  %805 = vmax.xlane.f32.xlu0 %v804
  %v806 = vpop.xlane.xlu0 %805
  %v807 = vsel %vm455, %v793, -inf
  %808 = vmax.xlane.f32.xlu0 %v807
  %v809 = vpop.xlane.xlu0 %808
  %v810 = vsel %vm455, %v794, -inf
  %811 = vmax.xlane.f32.xlu0 %v810
  %v812 = vpop.xlane.xlu0 %811
  %v813 = vsub.f32 %v789, %v797
  %v814 = vsub.f32 %v790, %v800
  %v815 = vsub.f32 %v791, %v803
  %v816 = vsub.f32 %v792, %v806
  %v817 = vsub.f32 %v793, %v809
  %v818 = vsub.f32 %v794, %v812
  %v819 = vmul.f32 %v813, 1.442695
  %v820 = vpow.pop %v819
  %v821 = vmul.f32 %v814, 1.442695
  %v822 = vpow.pop %v821
  %v823 = vmul.f32 %v815, 1.442695
  %v824 = vpow.pop %v823
  %v825 = vmul.f32 %v816, 1.442695
  %v826 = vpow.pop %v825
  %v827 = vmul.f32 %v817, 1.442695
  %v828 = vpow.pop %v827
  %v829 = vmul.f32 %v818, 1.442695
  %v830 = vpow.pop %v829
  %v831 = vsel %vm455, %v820, 0.0
  %832 = vadd.xlane.f32.xlu0 %v831
  %v833 = vpop.xlane.xlu0 %832
  %v834 = vsel %vm455, %v822, 0.0
  %835 = vadd.xlane.f32.xlu0 %v834
  %v836 = vpop.xlane.xlu0 %835
  %v837 = vsel %vm455, %v824, 0.0
  %838 = vadd.xlane.f32.xlu0 %v837
  %v839 = vpop.xlane.xlu0 %838
  %v840 = vsel %vm455, %v826, 0.0
  %841 = vadd.xlane.f32.xlu0 %v840
  %v842 = vpop.xlane.xlu0 %841
  %v843 = vsel %vm455, %v828, 0.0
  %844 = vadd.xlane.f32.xlu0 %v843
  %v845 = vpop.xlane.xlu0 %844
  %v846 = vsel %vm455, %v830, 0.0
  %847 = vadd.xlane.f32.xlu0 %v846
  %v848 = vpop.xlane.xlu0 %847
  %v849 = vrcp.pop %v833
  %v850 = vrcp.pop %v836
  %v851 = vrcp.pop %v839
  %v852 = vrcp.pop %v842
  %v853 = vrcp.pop %v845
  %v854 = vrcp.pop %v848
  %v855 = vmul.f32 %v820, %v849
  %v856 = vmul.f32 %v822, %v850
  %v857 = vmul.f32 %v824, %v851
  %v858 = vmul.f32 %v826, %v852
  %v859 = vmul.f32 %v828, %v853
  %v860 = vmul.f32 %v830, %v854
  %v861 = vpack.c.bf16 %v856, %v855
  %v862 = vpack.c.bf16 %v857, %v857
  %v863 = vpack.c.bf16 %v859, %v858
  %v864 = vpack.c.bf16 %v860, %v860
  %867 = vrot.lane.b32.xlu0 %v300, 112
  %v868 = vpop.permute.xlu0 %867
  %869 = vrot.lane.b32.xlu0 %v301, 112
  %v870 = vpop.permute.xlu0 %869
  %v873 = vsel %vm455, %v861, 0
  %v876 = vsel %vm455, %v862, 0
  %v879 = vsel %vm532, %v870, 0
  %881 = vmatprep.subr.bf16.mxu0 0
  %882 = vmatpush1.bf16.msra.mxu0 %v868
  %883 = vmatprep.subr.bf16.mxu0 0
  %884 = vmatpush1.bf16.msra.mxu0 %v879
  %885 = vmatprep.subr.bf16.mxu0 0
  %886 = vmatpush1.bf16.msra.mxu0 0
  %887 = vmatprep.subr.bf16.mxu0 0
  %888 = vmatpush1.bf16.msra.mxu0 0
  %889 = vmatprep.subr.bf16.mxu0 0
  %890 = vmatpush1.bf16.msra.mxu0 0
  %891 = vmatprep.subr.bf16.mxu0 0
  %892 = vmatpush1.bf16.msra.mxu0 0
  %893 = vmatprep.subr.bf16.mxu0 0
  %894 = vmatpush1.bf16.msra.mxu0 0
  %895 = vmatprep.subr.bf16.mxu0 0
  %896 = vmatpush1.bf16.msra.mxu0 0
  %897 = vmatprep.subr.bf16.mxu0 0
  %898 = vmatpush1.bf16.msra.mxu0 0
  %899 = vmatprep.subr.bf16.mxu0 0
  %900 = vmatpush1.bf16.msra.mxu0 0
  %901 = vmatprep.subr.bf16.mxu0 0
  %902 = vmatpush1.bf16.msra.mxu0 0
  %903 = vmatprep.subr.bf16.mxu0 0
  %904 = vmatpush1.bf16.msra.mxu0 0
  %905 = vmatprep.subr.bf16.mxu0 0
  %906 = vmatpush1.bf16.msra.mxu0 0
  %907 = vmatprep.subr.bf16.mxu0 0
  %908 = vmatpush1.bf16.msra.mxu0 0
  %909 = vmatprep.subr.bf16.mxu0 0
  %910 = vmatpush1.bf16.msra.mxu0 0
  %911 = vmatprep.subr.bf16.mxu0 0
  %912 = vmatpush1.bf16.msra.mxu0 0
  %913 = vmatprep.mubr.bf16.mxu0 0
  %914 = vmatmul.mubr.bf16.gmra.mrb[0].mxu0 %v873
  %v915 = vpop.f32.mrb[0].mxu0
  %v916 = vadd.f32 0.0, %v915
  %v917 = vpop.f32.mrb[0].mxu0
  %v918 = vpop.f32.mrb[0].mxu0
  %v919 = vadd.f32 0.0, %v918
  %v920 = vpop.f32.mrb[0].mxu0
  %921 = vmatprep.mubr.bf16.mxu0 0
  %922 = vmatmul.mubr.bf16.gmra.mrb[0].mxu0 %v876
  %v923 = vpop.f32.mrb[0].mxu0
  %v924 = vadd.f32 0.0, %v923
  %v925 = vpop.f32.mrb[0].mxu0
  %v926 = vpop.f32.mrb[0].mxu0
  %v927 = vpop.f32.mrb[0].mxu0
  %928 = vdwg.mxu0
  %931 = vrot.lane.b32.xlu0 %v302, 112
  %v932 = vpop.permute.xlu0 %931
  %933 = vrot.lane.b32.xlu0 %v303, 112
  %v934 = vpop.permute.xlu0 %933
  %v937 = vsel %vm455, %v863, 0
  %v940 = vsel %vm455, %v864, 0
  %v943 = vsel %vm532, %v934, 0
  %945 = vmatprep.subr.bf16.mxu0 0
  %946 = vmatpush1.bf16.msra.mxu0 %v932
  %947 = vmatprep.subr.bf16.mxu0 0
  %948 = vmatpush1.bf16.msra.mxu0 %v943
  %949 = vmatprep.subr.bf16.mxu0 0
  %950 = vmatpush1.bf16.msra.mxu0 0
  %951 = vmatprep.subr.bf16.mxu0 0
  %952 = vmatpush1.bf16.msra.mxu0 0
  %953 = vmatprep.subr.bf16.mxu0 0
  %954 = vmatpush1.bf16.msra.mxu0 0
  %955 = vmatprep.subr.bf16.mxu0 0
  %956 = vmatpush1.bf16.msra.mxu0 0
  %957 = vmatprep.subr.bf16.mxu0 0
  %958 = vmatpush1.bf16.msra.mxu0 0
  %959 = vmatprep.subr.bf16.mxu0 0
  %960 = vmatpush1.bf16.msra.mxu0 0
  %961 = vmatprep.subr.bf16.mxu0 0
  %962 = vmatpush1.bf16.msra.mxu0 0
  %963 = vmatprep.subr.bf16.mxu0 0
  %964 = vmatpush1.bf16.msra.mxu0 0
  %965 = vmatprep.subr.bf16.mxu0 0
  %966 = vmatpush1.bf16.msra.mxu0 0
  %967 = vmatprep.subr.bf16.mxu0 0
  %968 = vmatpush1.bf16.msra.mxu0 0
  %969 = vmatprep.subr.bf16.mxu0 0
  %970 = vmatpush1.bf16.msra.mxu0 0
  %971 = vmatprep.subr.bf16.mxu0 0
  %972 = vmatpush1.bf16.msra.mxu0 0
  %973 = vmatprep.subr.bf16.mxu0 0
  %974 = vmatpush1.bf16.msra.mxu0 0
  %975 = vmatprep.subr.bf16.mxu0 0
  %976 = vmatpush1.bf16.msra.mxu0 0
  %977 = vmatprep.mubr.bf16.mxu0 0
  %978 = vmatmul.mubr.bf16.gmra.mrb[0].mxu0 %v937
  %v979 = vpop.f32.mrb[0].mxu0
  %v980 = vadd.f32 0.0, %v979
  %v981 = vpop.f32.mrb[0].mxu0
  %v982 = vpop.f32.mrb[0].mxu0
  %v983 = vadd.f32 0.0, %v982
  %v984 = vpop.f32.mrb[0].mxu0
  %985 = vmatprep.mubr.bf16.mxu0 0
  %986 = vmatmul.mubr.bf16.gmra.mrb[0].mxu0 %v940
  %v987 = vpop.f32.mrb[0].mxu0
  %v988 = vadd.f32 0.0, %v987
  %v989 = vpop.f32.mrb[0].mxu0
  %v990 = vpop.f32.mrb[0].mxu0
  %v991 = vpop.f32.mrb[0].mxu0
  %992 = vdwg.mxu0
  %999 = vrot.lane.b32.xlu0 %v916, 16
  %v1000 = vpop.permute.xlu0 %999
  %1001 = vrot.lane.b32.xlu0 %v919, 16
  %v1002 = vpop.permute.xlu0 %1001
  %1003 = vrot.lane.b32.xlu0 %v924, 16
  %v1004 = vpop.permute.xlu0 %1003
  %1005 = vrot.lane.b32.xlu0 %v980, 16
  %v1006 = vpop.permute.xlu0 %1005
  %1007 = vrot.lane.b32.xlu0 %v983, 16
  %v1008 = vpop.permute.xlu0 %1007
  %1009 = vrot.lane.b32.xlu0 %v988, 16
  %v1010 = vpop.permute.xlu0 %1009
  %vm1017 = vcmask 261248
  %1018 = vst.msk [vmem:[#allocation2] sm:$0xff] %vm1017, %v1000
  %1019 = vst.msk [vmem:[#allocation2 + $0x8] sm:$0xff] %vm1017, %v1002
  %1020 = vst.msk [vmem:[#allocation2 + $0x10] sm:$0xff] %vm1017, %v1004
  %1021 = vst.msk [vmem:[#allocation2 + $0x18] sm:$0xff] %vm1017, %v1006
  %1022 = vst.msk [vmem:[#allocation2 + $0x20] sm:$0xff] %vm1017, %v1008
  %1023 = vst.msk [vmem:[#allocation2 + $0x28] sm:$0xff] %vm1017, %v1010
  %1024 = vrot.lane.b32.xlu0 %v296, 96
  %v1025 = vpop.permute.xlu0 %1024
  %1026 = vrot.lane.b32.xlu0 %v297, 96
  %v1027 = vpop.permute.xlu0 %1026
  %1028 = vrot.lane.b32.xlu0 %v296, 32
  %v1029 = vpop.permute.xlu0 %1028
  %1030 = vrot.lane.b32.xlu0 %v297, 32
  %v1031 = vpop.permute.xlu0 %1030
  %v1033 = vsel %vm310, %v1025, 0
  %v1036 = vsel %vm310, %v1027, 0
  %v1039 = vsel %vm310, %v1029, 0
  %v1042 = vsel %vm310, %v1031, 0
  %1044 = vmatprep.subr.bf16.mxu0 0
  %1045 = vmatpush1.bf16.xpose.msra.mxu0 %v1039
  %1046 = vmatprep.subr.bf16.mxu0 0
  %1047 = vmatpush1.bf16.xpose.msra.mxu0 %v1042
  %1048 = vmatprep.subr.bf16.mxu0 0
  %1049 = vmatpush1.bf16.xpose.msra.mxu0 0
  %1050 = vmatprep.subr.bf16.mxu0 0
  %1051 = vmatpush1.bf16.xpose.msra.mxu0 0
  %1052 = vmatprep.subr.bf16.mxu0 0
  %1053 = vmatpush1.bf16.xpose.msra.mxu0 0
  %1054 = vmatprep.subr.bf16.mxu0 0
  %1055 = vmatpush1.bf16.xpose.msra.mxu0 0
  %1056 = vmatprep.subr.bf16.mxu0 0
  %1057 = vmatpush1.bf16.xpose.msra.mxu0 0
  %1058 = vmatprep.subr.bf16.mxu0 0
  %1059 = vmatpush1.bf16.xpose.msra.mxu0 0
  %1060 = vmatprep.subr.bf16.mxu0 0
  %1061 = vmatpush1.bf16.xpose.msra.mxu0 0
  %1062 = vmatprep.subr.bf16.mxu0 0
  %1063 = vmatpush1.bf16.xpose.msra.mxu0 0
  %1064 = vmatprep.subr.bf16.mxu0 0
  %1065 = vmatpush1.bf16.xpose.msra.mxu0 0
  %1066 = vmatprep.subr.bf16.mxu0 0
  %1067 = vmatpush1.bf16.xpose.msra.mxu0 0
  %1068 = vmatprep.subr.bf16.mxu0 0
  %1069 = vmatpush1.bf16.xpose.msra.mxu0 0
  %1070 = vmatprep.subr.bf16.mxu0 0
  %1071 = vmatpush1.bf16.xpose.msra.mxu0 0
  %1072 = vmatprep.subr.bf16.mxu0 0
  %1073 = vmatpush1.bf16.xpose.msra.mxu0 0
  %1074 = vmatprep.subr.bf16.mxu0 0
  %1075 = vmatpush1.bf16.xpose.msra.mxu0 0
  %1076 = vmatprep.mubr.bf16.mxu0 0
  %1077 = vmatmul.mubr.bf16.gmra.mrb[0].mxu0 %v1033
  %v1078 = vpop.f32.mrb[0].mxu0
  %v1079 = vadd.f32 0.0, %v1078
  %v1080 = vpop.f32.mrb[0].mxu0
  %v1081 = vpop.f32.mrb[0].mxu0
  %v1082 = vadd.f32 0.0, %v1081
  %v1083 = vpop.f32.mrb[0].mxu0
  %1084 = vmatprep.mubr.bf16.mxu0 0
  %1085 = vmatmul.mubr.bf16.gmra.mrb[0].mxu0 %v1036
  %v1086 = vpop.f32.mrb[0].mxu0
  %v1087 = vadd.f32 0.0, %v1086
  %v1088 = vpop.f32.mrb[0].mxu0
  %v1089 = vpop.f32.mrb[0].mxu0
  %v1090 = vpop.f32.mrb[0].mxu0
  %1091 = vdwg.mxu0
  %1092 = vrot.lane.b32.xlu0 %v298, 96
  %v1093 = vpop.permute.xlu0 %1092
  %1094 = vrot.lane.b32.xlu0 %v299, 96
  %v1095 = vpop.permute.xlu0 %1094
  %1096 = vrot.lane.b32.xlu0 %v298, 32
  %v1097 = vpop.permute.xlu0 %1096
  %1098 = vrot.lane.b32.xlu0 %v299, 32
  %v1099 = vpop.permute.xlu0 %1098
  %v1101 = vsel %vm310, %v1093, 0
  %v1104 = vsel %vm310, %v1095, 0
  %v1107 = vsel %vm310, %v1097, 0
  %v1110 = vsel %vm310, %v1099, 0
  %1112 = vmatprep.subr.bf16.mxu0 0
  %1113 = vmatpush1.bf16.xpose.msra.mxu0 %v1107
  %1114 = vmatprep.subr.bf16.mxu0 0
  %1115 = vmatpush1.bf16.xpose.msra.mxu0 %v1110
  %1116 = vmatprep.subr.bf16.mxu0 0
  %1117 = vmatpush1.bf16.xpose.msra.mxu0 0
  %1118 = vmatprep.subr.bf16.mxu0 0
  %1119 = vmatpush1.bf16.xpose.msra.mxu0 0
  %1120 = vmatprep.subr.bf16.mxu0 0
  %1121 = vmatpush1.bf16.xpose.msra.mxu0 0
  %1122 = vmatprep.subr.bf16.mxu0 0
  %1123 = vmatpush1.bf16.xpose.msra.mxu0 0
  %1124 = vmatprep.subr.bf16.mxu0 0
  %1125 = vmatpush1.bf16.xpose.msra.mxu0 0
  %1126 = vmatprep.subr.bf16.mxu0 0
  %1127 = vmatpush1.bf16.xpose.msra.mxu0 0
  %1128 = vmatprep.subr.bf16.mxu0 0
  %1129 = vmatpush1.bf16.xpose.msra.mxu0 0
  %1130 = vmatprep.subr.bf16.mxu0 0
  %1131 = vmatpush1.bf16.xpose.msra.mxu0 0
  %1132 = vmatprep.subr.bf16.mxu0 0
  %1133 = vmatpush1.bf16.xpose.msra.mxu0 0
  %1134 = vmatprep.subr.bf16.mxu0 0
  %1135 = vmatpush1.bf16.xpose.msra.mxu0 0
  %1136 = vmatprep.subr.bf16.mxu0 0
  %1137 = vmatpush1.bf16.xpose.msra.mxu0 0
  %1138 = vmatprep.subr.bf16.mxu0 0
  %1139 = vmatpush1.bf16.xpose.msra.mxu0 0
  %1140 = vmatprep.subr.bf16.mxu0 0
  %1141 = vmatpush1.bf16.xpose.msra.mxu0 0
  %1142 = vmatprep.subr.bf16.mxu0 0
  %1143 = vmatpush1.bf16.xpose.msra.mxu0 0
  %1144 = vmatprep.mubr.bf16.mxu0 0
  %1145 = vmatmul.mubr.bf16.gmra.mrb[0].mxu0 %v1101
  %v1146 = vpop.f32.mrb[0].mxu0
  %v1147 = vadd.f32 0.0, %v1146
  %v1148 = vpop.f32.mrb[0].mxu0
  %v1149 = vpop.f32.mrb[0].mxu0
  %v1150 = vadd.f32 0.0, %v1149
  %v1151 = vpop.f32.mrb[0].mxu0
  %1152 = vmatprep.mubr.bf16.mxu0 0
  %1153 = vmatmul.mubr.bf16.gmra.mrb[0].mxu0 %v1104
  %v1154 = vpop.f32.mrb[0].mxu0
  %v1155 = vadd.f32 0.0, %v1154
  %v1156 = vpop.f32.mrb[0].mxu0
  %v1157 = vpop.f32.mrb[0].mxu0
  %v1158 = vpop.f32.mrb[0].mxu0
  %1159 = vdwg.mxu0
  %v1160 = vmul.f32 %v1079, 0.25
  %v1161 = vmul.f32 %v1082, 0.25
  %v1162 = vmul.f32 %v1087, 0.25
  %v1163 = vmul.f32 %v1147, 0.25
  %v1164 = vmul.f32 %v1150, 0.25
  %v1165 = vmul.f32 %v1155, 0.25
  %v1166 = vadd.f32 %v1160, %v447
  %v1167 = vadd.f32 %v1161, %v447
  %v1168 = vadd.f32 %v1162, %v447
  %v1169 = vadd.f32 %v1163, %v447
  %v1170 = vadd.f32 %v1164, %v447
  %v1171 = vadd.f32 %v1165, %v447
  %v1172 = vsel %vm455, %v1166, -inf
  %1173 = vmax.xlane.f32.xlu0 %v1172
  %v1174 = vpop.xlane.xlu0 %1173
  %v1175 = vsel %vm455, %v1167, -inf
  %1176 = vmax.xlane.f32.xlu0 %v1175
  %v1177 = vpop.xlane.xlu0 %1176
  %v1178 = vsel %vm455, %v1168, -inf
  %1179 = vmax.xlane.f32.xlu0 %v1178
  %v1180 = vpop.xlane.xlu0 %1179
  %v1181 = vsel %vm455, %v1169, -inf
  %1182 = vmax.xlane.f32.xlu0 %v1181
  %v1183 = vpop.xlane.xlu0 %1182
  %v1184 = vsel %vm455, %v1170, -inf
  %1185 = vmax.xlane.f32.xlu0 %v1184
  %v1186 = vpop.xlane.xlu0 %1185
  %v1187 = vsel %vm455, %v1171, -inf
  %1188 = vmax.xlane.f32.xlu0 %v1187
  %v1189 = vpop.xlane.xlu0 %1188
  %v1190 = vsub.f32 %v1166, %v1174
  %v1191 = vsub.f32 %v1167, %v1177
  %v1192 = vsub.f32 %v1168, %v1180
  %v1193 = vsub.f32 %v1169, %v1183
  %v1194 = vsub.f32 %v1170, %v1186
  %v1195 = vsub.f32 %v1171, %v1189
  %v1196 = vmul.f32 %v1190, 1.442695
  %v1197 = vpow.pop %v1196
  %v1198 = vmul.f32 %v1191, 1.442695
  %v1199 = vpow.pop %v1198
  %v1200 = vmul.f32 %v1192, 1.442695
  %v1201 = vpow.pop %v1200
  %v1202 = vmul.f32 %v1193, 1.442695
  %v1203 = vpow.pop %v1202
  %v1204 = vmul.f32 %v1194, 1.442695
  %v1205 = vpow.pop %v1204
  %v1206 = vmul.f32 %v1195, 1.442695
  %v1207 = vpow.pop %v1206
  %v1208 = vsel %vm455, %v1197, 0.0
  %1209 = vadd.xlane.f32.xlu0 %v1208
  %v1210 = vpop.xlane.xlu0 %1209
  %v1211 = vsel %vm455, %v1199, 0.0
  %1212 = vadd.xlane.f32.xlu0 %v1211
  %v1213 = vpop.xlane.xlu0 %1212
  %v1214 = vsel %vm455, %v1201, 0.0
  %1215 = vadd.xlane.f32.xlu0 %v1214
  %v1216 = vpop.xlane.xlu0 %1215
  %v1217 = vsel %vm455, %v1203, 0.0
  %1218 = vadd.xlane.f32.xlu0 %v1217
  %v1219 = vpop.xlane.xlu0 %1218
  %v1220 = vsel %vm455, %v1205, 0.0
  %1221 = vadd.xlane.f32.xlu0 %v1220
  %v1222 = vpop.xlane.xlu0 %1221
  %v1223 = vsel %vm455, %v1207, 0.0
  %1224 = vadd.xlane.f32.xlu0 %v1223
  %v1225 = vpop.xlane.xlu0 %1224
  %v1226 = vrcp.pop %v1210
  %v1227 = vrcp.pop %v1213
  %v1228 = vrcp.pop %v1216
  %v1229 = vrcp.pop %v1219
  %v1230 = vrcp.pop %v1222
  %v1231 = vrcp.pop %v1225
  %v1232 = vmul.f32 %v1197, %v1226
  %v1233 = vmul.f32 %v1199, %v1227
  %v1234 = vmul.f32 %v1201, %v1228
  %v1235 = vmul.f32 %v1203, %v1229
  %v1236 = vmul.f32 %v1205, %v1230
  %v1237 = vmul.f32 %v1207, %v1231
  %v1238 = vpack.c.bf16 %v1233, %v1232
  %v1239 = vpack.c.bf16 %v1234, %v1234
  %v1240 = vpack.c.bf16 %v1236, %v1235
  %v1241 = vpack.c.bf16 %v1237, %v1237
  %1242 = vrot.lane.b32.xlu0 %v300, 96
  %v1243 = vpop.permute.xlu0 %1242
  %1244 = vrot.lane.b32.xlu0 %v301, 96
  %v1245 = vpop.permute.xlu0 %1244
  %v1248 = vsel %vm455, %v1238, 0
  %v1251 = vsel %vm455, %v1239, 0
  %v1254 = vsel %vm532, %v1245, 0
  %1256 = vmatprep.subr.bf16.mxu0 0
  %1257 = vmatpush1.bf16.msra.mxu0 %v1243
  %1258 = vmatprep.subr.bf16.mxu0 0
  %1259 = vmatpush1.bf16.msra.mxu0 %v1254
  %1260 = vmatprep.subr.bf16.mxu0 0
  %1261 = vmatpush1.bf16.msra.mxu0 0
  %1262 = vmatprep.subr.bf16.mxu0 0
  %1263 = vmatpush1.bf16.msra.mxu0 0
  %1264 = vmatprep.subr.bf16.mxu0 0
  %1265 = vmatpush1.bf16.msra.mxu0 0
  %1266 = vmatprep.subr.bf16.mxu0 0
  %1267 = vmatpush1.bf16.msra.mxu0 0
  %1268 = vmatprep.subr.bf16.mxu0 0
  %1269 = vmatpush1.bf16.msra.mxu0 0
  %1270 = vmatprep.subr.bf16.mxu0 0
  %1271 = vmatpush1.bf16.msra.mxu0 0
  %1272 = vmatprep.subr.bf16.mxu0 0
  %1273 = vmatpush1.bf16.msra.mxu0 0
  %1274 = vmatprep.subr.bf16.mxu0 0
  %1275 = vmatpush1.bf16.msra.mxu0 0
  %1276 = vmatprep.subr.bf16.mxu0 0
  %1277 = vmatpush1.bf16.msra.mxu0 0
  %1278 = vmatprep.subr.bf16.mxu0 0
  %1279 = vmatpush1.bf16.msra.mxu0 0
  %1280 = vmatprep.subr.bf16.mxu0 0
  %1281 = vmatpush1.bf16.msra.mxu0 0
  %1282 = vmatprep.subr.bf16.mxu0 0
  %1283 = vmatpush1.bf16.msra.mxu0 0
  %1284 = vmatprep.subr.bf16.mxu0 0
  %1285 = vmatpush1.bf16.msra.mxu0 0
  %1286 = vmatprep.subr.bf16.mxu0 0
  %1287 = vmatpush1.bf16.msra.mxu0 0
  %1288 = vmatprep.mubr.bf16.mxu0 0
  %1289 = vmatmul.mubr.bf16.gmra.mrb[0].mxu0 %v1248
  %v1290 = vpop.f32.mrb[0].mxu0
  %v1291 = vadd.f32 0.0, %v1290
  %v1292 = vpop.f32.mrb[0].mxu0
  %v1293 = vpop.f32.mrb[0].mxu0
  %v1294 = vadd.f32 0.0, %v1293
  %v1295 = vpop.f32.mrb[0].mxu0
  %1296 = vmatprep.mubr.bf16.mxu0 0
  %1297 = vmatmul.mubr.bf16.gmra.mrb[0].mxu0 %v1251
  %v1298 = vpop.f32.mrb[0].mxu0
  %v1299 = vadd.f32 0.0, %v1298
  %v1300 = vpop.f32.mrb[0].mxu0
  %v1301 = vpop.f32.mrb[0].mxu0
  %v1302 = vpop.f32.mrb[0].mxu0
  %1303 = vdwg.mxu0
  %1304 = vrot.lane.b32.xlu0 %v302, 96
  %v1305 = vpop.permute.xlu0 %1304
  %1306 = vrot.lane.b32.xlu0 %v303, 96
  %v1307 = vpop.permute.xlu0 %1306
  %v1310 = vsel %vm455, %v1240, 0
  %v1313 = vsel %vm455, %v1241, 0
  %v1316 = vsel %vm532, %v1307, 0
  %1318 = vmatprep.subr.bf16.mxu0 0
  %1319 = vmatpush1.bf16.msra.mxu0 %v1305
  %1320 = vmatprep.subr.bf16.mxu0 0
  %1321 = vmatpush1.bf16.msra.mxu0 %v1316
  %1322 = vmatprep.subr.bf16.mxu0 0
  %1323 = vmatpush1.bf16.msra.mxu0 0
  %1324 = vmatprep.subr.bf16.mxu0 0
  %1325 = vmatpush1.bf16.msra.mxu0 0
  %1326 = vmatprep.subr.bf16.mxu0 0
  %1327 = vmatpush1.bf16.msra.mxu0 0
  %1328 = vmatprep.subr.bf16.mxu0 0
  %1329 = vmatpush1.bf16.msra.mxu0 0
  %1330 = vmatprep.subr.bf16.mxu0 0
  %1331 = vmatpush1.bf16.msra.mxu0 0
  %1332 = vmatprep.subr.bf16.mxu0 0
  %1333 = vmatpush1.bf16.msra.mxu0 0
  %1334 = vmatprep.subr.bf16.mxu0 0
  %1335 = vmatpush1.bf16.msra.mxu0 0
  %1336 = vmatprep.subr.bf16.mxu0 0
  %1337 = vmatpush1.bf16.msra.mxu0 0
  %1338 = vmatprep.subr.bf16.mxu0 0
  %1339 = vmatpush1.bf16.msra.mxu0 0
  %1340 = vmatprep.subr.bf16.mxu0 0
  %1341 = vmatpush1.bf16.msra.mxu0 0
  %1342 = vmatprep.subr.bf16.mxu0 0
  %1343 = vmatpush1.bf16.msra.mxu0 0
  %1344 = vmatprep.subr.bf16.mxu0 0
  %1345 = vmatpush1.bf16.msra.mxu0 0
  %1346 = vmatprep.subr.bf16.mxu0 0
  %1347 = vmatpush1.bf16.msra.mxu0 0
  %1348 = vmatprep.subr.bf16.mxu0 0
  %1349 = vmatpush1.bf16.msra.mxu0 0
  %1350 = vmatprep.mubr.bf16.mxu0 0
  %1351 = vmatmul.mubr.bf16.gmra.mrb[0].mxu0 %v1310
  %v1352 = vpop.f32.mrb[0].mxu0
  %v1353 = vadd.f32 0.0, %v1352
  %v1354 = vpop.f32.mrb[0].mxu0
  %v1355 = vpop.f32.mrb[0].mxu0
  %v1356 = vadd.f32 0.0, %v1355
  %v1357 = vpop.f32.mrb[0].mxu0
  %1358 = vmatprep.mubr.bf16.mxu0 0
  %1359 = vmatmul.mubr.bf16.gmra.mrb[0].mxu0 %v1313
  %v1360 = vpop.f32.mrb[0].mxu0
  %v1361 = vadd.f32 0.0, %v1360
  %v1362 = vpop.f32.mrb[0].mxu0
  %v1363 = vpop.f32.mrb[0].mxu0
  %v1364 = vpop.f32.mrb[0].mxu0
  %1365 = vdwg.mxu0
  %1372 = vrot.lane.b32.xlu0 %v1291, 32
  %v1373 = vpop.permute.xlu0 %1372
  %1374 = vrot.lane.b32.xlu0 %v1294, 32
  %v1375 = vpop.permute.xlu0 %1374
  %1376 = vrot.lane.b32.xlu0 %v1299, 32
  %v1377 = vpop.permute.xlu0 %1376
  %1378 = vrot.lane.b32.xlu0 %v1353, 32
  %v1379 = vpop.permute.xlu0 %1378
  %1380 = vrot.lane.b32.xlu0 %v1356, 32
  %v1381 = vpop.permute.xlu0 %1380
  %1382 = vrot.lane.b32.xlu0 %v1361, 32
  %v1383 = vpop.permute.xlu0 %1382
  %vm1390 = vcmask 392448
  %1391 = vst.msk [vmem:[#allocation2] sm:$0xff] %vm1390, %v1373
  %1392 = vst.msk [vmem:[#allocation2 + $0x8] sm:$0xff] %vm1390, %v1375
  %1393 = vst.msk [vmem:[#allocation2 + $0x10] sm:$0xff] %vm1390, %v1377
  %1394 = vst.msk [vmem:[#allocation2 + $0x18] sm:$0xff] %vm1390, %v1379
  %1395 = vst.msk [vmem:[#allocation2 + $0x20] sm:$0xff] %vm1390, %v1381
  %1396 = vst.msk [vmem:[#allocation2 + $0x28] sm:$0xff] %vm1390, %v1383
  %1397 = vrot.lane.b32.xlu0 %v296, 80
  %v1398 = vpop.permute.xlu0 %1397
  %1399 = vrot.lane.b32.xlu0 %v297, 80
  %v1400 = vpop.permute.xlu0 %1399
  %1401 = vrot.lane.b32.xlu0 %v296, 16
  %v1402 = vpop.permute.xlu0 %1401
  %1403 = vrot.lane.b32.xlu0 %v297, 16
  %v1404 = vpop.permute.xlu0 %1403
  %v1406 = vsel %vm310, %v1398, 0
  %v1409 = vsel %vm310, %v1400, 0
  %v1412 = vsel %vm310, %v1402, 0
  %v1415 = vsel %vm310, %v1404, 0
  %1417 = vmatprep.subr.bf16.mxu0 0
  %1418 = vmatpush1.bf16.xpose.msra.mxu0 %v1412
  %1419 = vmatprep.subr.bf16.mxu0 0
  %1420 = vmatpush1.bf16.xpose.msra.mxu0 %v1415
  %1421 = vmatprep.subr.bf16.mxu0 0
  %1422 = vmatpush1.bf16.xpose.msra.mxu0 0
  %1423 = vmatprep.subr.bf16.mxu0 0
  %1424 = vmatpush1.bf16.xpose.msra.mxu0 0
  %1425 = vmatprep.subr.bf16.mxu0 0
  %1426 = vmatpush1.bf16.xpose.msra.mxu0 0
  %1427 = vmatprep.subr.bf16.mxu0 0
  %1428 = vmatpush1.bf16.xpose.msra.mxu0 0
  %1429 = vmatprep.subr.bf16.mxu0 0
  %1430 = vmatpush1.bf16.xpose.msra.mxu0 0
  %1431 = vmatprep.subr.bf16.mxu0 0
  %1432 = vmatpush1.bf16.xpose.msra.mxu0 0
  %1433 = vmatprep.subr.bf16.mxu0 0
  %1434 = vmatpush1.bf16.xpose.msra.mxu0 0
  %1435 = vmatprep.subr.bf16.mxu0 0
  %1436 = vmatpush1.bf16.xpose.msra.mxu0 0
  %1437 = vmatprep.subr.bf16.mxu0 0
  %1438 = vmatpush1.bf16.xpose.msra.mxu0 0
  %1439 = vmatprep.subr.bf16.mxu0 0
  %1440 = vmatpush1.bf16.xpose.msra.mxu0 0
  %1441 = vmatprep.subr.bf16.mxu0 0
  %1442 = vmatpush1.bf16.xpose.msra.mxu0 0
  %1443 = vmatprep.subr.bf16.mxu0 0
  %1444 = vmatpush1.bf16.xpose.msra.mxu0 0
  %1445 = vmatprep.subr.bf16.mxu0 0
  %1446 = vmatpush1.bf16.xpose.msra.mxu0 0
  %1447 = vmatprep.subr.bf16.mxu0 0
  %1448 = vmatpush1.bf16.xpose.msra.mxu0 0
  %1449 = vmatprep.mubr.bf16.mxu0 0
  %1450 = vmatmul.mubr.bf16.gmra.mrb[0].mxu0 %v1406
  %v1451 = vpop.f32.mrb[0].mxu0
  %v1452 = vadd.f32 0.0, %v1451
  %v1453 = vpop.f32.mrb[0].mxu0
  %v1454 = vpop.f32.mrb[0].mxu0
  %v1455 = vadd.f32 0.0, %v1454
  %v1456 = vpop.f32.mrb[0].mxu0
  %1457 = vmatprep.mubr.bf16.mxu0 0
  %1458 = vmatmul.mubr.bf16.gmra.mrb[0].mxu0 %v1409
  %v1459 = vpop.f32.mrb[0].mxu0
  %v1460 = vadd.f32 0.0, %v1459
  %v1461 = vpop.f32.mrb[0].mxu0
  %v1462 = vpop.f32.mrb[0].mxu0
  %v1463 = vpop.f32.mrb[0].mxu0
  %1464 = vdwg.mxu0
  %1465 = vrot.lane.b32.xlu0 %v298, 80
  %v1466 = vpop.permute.xlu0 %1465
  %1467 = vrot.lane.b32.xlu0 %v299, 80
  %v1468 = vpop.permute.xlu0 %1467
  %1469 = vrot.lane.b32.xlu0 %v298, 16
  %v1470 = vpop.permute.xlu0 %1469
  %1471 = vrot.lane.b32.xlu0 %v299, 16
  %v1472 = vpop.permute.xlu0 %1471
  %v1474 = vsel %vm310, %v1466, 0
  %v1477 = vsel %vm310, %v1468, 0
  %v1480 = vsel %vm310, %v1470, 0
  %v1483 = vsel %vm310, %v1472, 0
  %1485 = vmatprep.subr.bf16.mxu0 0
  %1486 = vmatpush1.bf16.xpose.msra.mxu0 %v1480
  %1487 = vmatprep.subr.bf16.mxu0 0
  %1488 = vmatpush1.bf16.xpose.msra.mxu0 %v1483
  %1489 = vmatprep.subr.bf16.mxu0 0
  %1490 = vmatpush1.bf16.xpose.msra.mxu0 0
  %1491 = vmatprep.subr.bf16.mxu0 0
  %1492 = vmatpush1.bf16.xpose.msra.mxu0 0
  %1493 = vmatprep.subr.bf16.mxu0 0
  %1494 = vmatpush1.bf16.xpose.msra.mxu0 0
  %1495 = vmatprep.subr.bf16.mxu0 0
  %1496 = vmatpush1.bf16.xpose.msra.mxu0 0
  %1497 = vmatprep.subr.bf16.mxu0 0
  %1498 = vmatpush1.bf16.xpose.msra.mxu0 0
  %1499 = vmatprep.subr.bf16.mxu0 0
  %1500 = vmatpush1.bf16.xpose.msra.mxu0 0
  %1501 = vmatprep.subr.bf16.mxu0 0
  %1502 = vmatpush1.bf16.xpose.msra.mxu0 0
  %1503 = vmatprep.subr.bf16.mxu0 0
  %1504 = vmatpush1.bf16.xpose.msra.mxu0 0
  %1505 = vmatprep.subr.bf16.mxu0 0
  %1506 = vmatpush1.bf16.xpose.msra.mxu0 0
  %1507 = vmatprep.subr.bf16.mxu0 0
  %1508 = vmatpush1.bf16.xpose.msra.mxu0 0
  %1509 = vmatprep.subr.bf16.mxu0 0
  %1510 = vmatpush1.bf16.xpose.msra.mxu0 0
  %1511 = vmatprep.subr.bf16.mxu0 0
  %1512 = vmatpush1.bf16.xpose.msra.mxu0 0
  %1513 = vmatprep.subr.bf16.mxu0 0
  %1514 = vmatpush1.bf16.xpose.msra.mxu0 0
  %1515 = vmatprep.subr.bf16.mxu0 0
  %1516 = vmatpush1.bf16.xpose.msra.mxu0 0
  %1517 = vmatprep.mubr.bf16.mxu0 0
  %1518 = vmatmul.mubr.bf16.gmra.mrb[0].mxu0 %v1474
  %v1519 = vpop.f32.mrb[0].mxu0
  %v1520 = vadd.f32 0.0, %v1519
  %v1521 = vpop.f32.mrb[0].mxu0
  %v1522 = vpop.f32.mrb[0].mxu0
  %v1523 = vadd.f32 0.0, %v1522
  %v1524 = vpop.f32.mrb[0].mxu0
  %1525 = vmatprep.mubr.bf16.mxu0 0
  %1526 = vmatmul.mubr.bf16.gmra.mrb[0].mxu0 %v1477
  %v1527 = vpop.f32.mrb[0].mxu0
  %v1528 = vadd.f32 0.0, %v1527
  %v1529 = vpop.f32.mrb[0].mxu0
  %v1530 = vpop.f32.mrb[0].mxu0
  %v1531 = vpop.f32.mrb[0].mxu0
  %1532 = vdwg.mxu0
  %v1533 = vmul.f32 %v1452, 0.25
  %v1534 = vmul.f32 %v1455, 0.25
  %v1535 = vmul.f32 %v1460, 0.25
  %v1536 = vmul.f32 %v1520, 0.25
  %v1537 = vmul.f32 %v1523, 0.25
  %v1538 = vmul.f32 %v1528, 0.25
  %v1539 = vadd.f32 %v1533, %v447
  %v1540 = vadd.f32 %v1534, %v447
  %v1541 = vadd.f32 %v1535, %v447
  %v1542 = vadd.f32 %v1536, %v447
  %v1543 = vadd.f32 %v1537, %v447
  %v1544 = vadd.f32 %v1538, %v447
  %v1545 = vsel %vm455, %v1539, -inf
  %1546 = vmax.xlane.f32.xlu0 %v1545
  %v1547 = vpop.xlane.xlu0 %1546
  %v1548 = vsel %vm455, %v1540, -inf
  %1549 = vmax.xlane.f32.xlu0 %v1548
  %v1550 = vpop.xlane.xlu0 %1549
  %v1551 = vsel %vm455, %v1541, -inf
  %1552 = vmax.xlane.f32.xlu0 %v1551
  %v1553 = vpop.xlane.xlu0 %1552
  %v1554 = vsel %vm455, %v1542, -inf
  %1555 = vmax.xlane.f32.xlu0 %v1554
  %v1556 = vpop.xlane.xlu0 %1555
  %v1557 = vsel %vm455, %v1543, -inf
  %1558 = vmax.xlane.f32.xlu0 %v1557
  %v1559 = vpop.xlane.xlu0 %1558
  %v1560 = vsel %vm455, %v1544, -inf
  %1561 = vmax.xlane.f32.xlu0 %v1560
  %v1562 = vpop.xlane.xlu0 %1561
  %v1563 = vsub.f32 %v1539, %v1547
  %v1564 = vsub.f32 %v1540, %v1550
  %v1565 = vsub.f32 %v1541, %v1553
  %v1566 = vsub.f32 %v1542, %v1556
  %v1567 = vsub.f32 %v1543, %v1559
  %v1568 = vsub.f32 %v1544, %v1562
  %v1569 = vmul.f32 %v1563, 1.442695
  %v1570 = vpow.pop %v1569
  %v1571 = vmul.f32 %v1564, 1.442695
  %v1572 = vpow.pop %v1571
  %v1573 = vmul.f32 %v1565, 1.442695
  %v1574 = vpow.pop %v1573
  %v1575 = vmul.f32 %v1566, 1.442695
  %v1576 = vpow.pop %v1575
  %v1577 = vmul.f32 %v1567, 1.442695
  %v1578 = vpow.pop %v1577
  %v1579 = vmul.f32 %v1568, 1.442695
  %v1580 = vpow.pop %v1579
  %v1581 = vsel %vm455, %v1570, 0.0
  %1582 = vadd.xlane.f32.xlu0 %v1581
  %v1583 = vpop.xlane.xlu0 %1582
  %v1584 = vsel %vm455, %v1572, 0.0
  %1585 = vadd.xlane.f32.xlu0 %v1584
  %v1586 = vpop.xlane.xlu0 %1585
  %v1587 = vsel %vm455, %v1574, 0.0
  %1588 = vadd.xlane.f32.xlu0 %v1587
  %v1589 = vpop.xlane.xlu0 %1588
  %v1590 = vsel %vm455, %v1576, 0.0
  %1591 = vadd.xlane.f32.xlu0 %v1590
  %v1592 = vpop.xlane.xlu0 %1591
  %v1593 = vsel %vm455, %v1578, 0.0
  %1594 = vadd.xlane.f32.xlu0 %v1593
  %v1595 = vpop.xlane.xlu0 %1594
  %v1596 = vsel %vm455, %v1580, 0.0
  %1597 = vadd.xlane.f32.xlu0 %v1596
  %v1598 = vpop.xlane.xlu0 %1597
  %v1599 = vrcp.pop %v1583
  %v1600 = vrcp.pop %v1586
  %v1601 = vrcp.pop %v1589
  %v1602 = vrcp.pop %v1592
  %v1603 = vrcp.pop %v1595
  %v1604 = vrcp.pop %v1598
  %v1605 = vmul.f32 %v1570, %v1599
  %v1606 = vmul.f32 %v1572, %v1600
  %v1607 = vmul.f32 %v1574, %v1601
  %v1608 = vmul.f32 %v1576, %v1602
  %v1609 = vmul.f32 %v1578, %v1603
  %v1610 = vmul.f32 %v1580, %v1604
  %v1611 = vpack.c.bf16 %v1606, %v1605
  %v1612 = vpack.c.bf16 %v1607, %v1607
  %v1613 = vpack.c.bf16 %v1609, %v1608
  %v1614 = vpack.c.bf16 %v1610, %v1610
  %1615 = vrot.lane.b32.xlu0 %v300, 80
  %v1616 = vpop.permute.xlu0 %1615
  %1617 = vrot.lane.b32.xlu0 %v301, 80
  %v1618 = vpop.permute.xlu0 %1617
  %v1621 = vsel %vm455, %v1611, 0
  %v1624 = vsel %vm455, %v1612, 0
  %v1627 = vsel %vm532, %v1618, 0
  %1629 = vmatprep.subr.bf16.mxu0 0
  %1630 = vmatpush1.bf16.msra.mxu0 %v1616
  %1631 = vmatprep.subr.bf16.mxu0 0
  %1632 = vmatpush1.bf16.msra.mxu0 %v1627
  %1633 = vmatprep.subr.bf16.mxu0 0
  %1634 = vmatpush1.bf16.msra.mxu0 0
  %1635 = vmatprep.subr.bf16.mxu0 0
  %1636 = vmatpush1.bf16.msra.mxu0 0
  %1637 = vmatprep.subr.bf16.mxu0 0
  %1638 = vmatpush1.bf16.msra.mxu0 0
  %1639 = vmatprep.subr.bf16.mxu0 0
  %1640 = vmatpush1.bf16.msra.mxu0 0
  %1641 = vmatprep.subr.bf16.mxu0 0
  %1642 = vmatpush1.bf16.msra.mxu0 0
  %1643 = vmatprep.subr.bf16.mxu0 0
  %1644 = vmatpush1.bf16.msra.mxu0 0
  %1645 = vmatprep.subr.bf16.mxu0 0
  %1646 = vmatpush1.bf16.msra.mxu0 0
  %1647 = vmatprep.subr.bf16.mxu0 0
  %1648 = vmatpush1.bf16.msra.mxu0 0
  %1649 = vmatprep.subr.bf16.mxu0 0
  %1650 = vmatpush1.bf16.msra.mxu0 0
  %1651 = vmatprep.subr.bf16.mxu0 0
  %1652 = vmatpush1.bf16.msra.mxu0 0
  %1653 = vmatprep.subr.bf16.mxu0 0
  %1654 = vmatpush1.bf16.msra.mxu0 0
  %1655 = vmatprep.subr.bf16.mxu0 0
  %1656 = vmatpush1.bf16.msra.mxu0 0
  %1657 = vmatprep.subr.bf16.mxu0 0
  %1658 = vmatpush1.bf16.msra.mxu0 0
  %1659 = vmatprep.subr.bf16.mxu0 0
  %1660 = vmatpush1.bf16.msra.mxu0 0
  %1661 = vmatprep.mubr.bf16.mxu0 0
  %1662 = vmatmul.mubr.bf16.gmra.mrb[0].mxu0 %v1621
  %v1663 = vpop.f32.mrb[0].mxu0
  %v1664 = vadd.f32 0.0, %v1663
  %v1665 = vpop.f32.mrb[0].mxu0
  %v1666 = vpop.f32.mrb[0].mxu0
  %v1667 = vadd.f32 0.0, %v1666
  %v1668 = vpop.f32.mrb[0].mxu0
  %1669 = vmatprep.mubr.bf16.mxu0 0
  %1670 = vmatmul.mubr.bf16.gmra.mrb[0].mxu0 %v1624
  %v1671 = vpop.f32.mrb[0].mxu0
  %v1672 = vadd.f32 0.0, %v1671
  %v1673 = vpop.f32.mrb[0].mxu0
  %v1674 = vpop.f32.mrb[0].mxu0
  %v1675 = vpop.f32.mrb[0].mxu0
  %1676 = vdwg.mxu0
  %1677 = vrot.lane.b32.xlu0 %v302, 80
  %v1678 = vpop.permute.xlu0 %1677
  %1679 = vrot.lane.b32.xlu0 %v303, 80
  %v1680 = vpop.permute.xlu0 %1679
  %v1683 = vsel %vm455, %v1613, 0
  %v1686 = vsel %vm455, %v1614, 0
  %v1689 = vsel %vm532, %v1680, 0
  %1691 = vmatprep.subr.bf16.mxu0 0
  %1692 = vmatpush1.bf16.msra.mxu0 %v1678
  %1693 = vmatprep.subr.bf16.mxu0 0
  %1694 = vmatpush1.bf16.msra.mxu0 %v1689
  %1695 = vmatprep.subr.bf16.mxu0 0
  %1696 = vmatpush1.bf16.msra.mxu0 0
  %1697 = vmatprep.subr.bf16.mxu0 0
  %1698 = vmatpush1.bf16.msra.mxu0 0
  %1699 = vmatprep.subr.bf16.mxu0 0
  %1700 = vmatpush1.bf16.msra.mxu0 0
  %1701 = vmatprep.subr.bf16.mxu0 0
  %1702 = vmatpush1.bf16.msra.mxu0 0
  %1703 = vmatprep.subr.bf16.mxu0 0
  %1704 = vmatpush1.bf16.msra.mxu0 0
  %1705 = vmatprep.subr.bf16.mxu0 0
  %1706 = vmatpush1.bf16.msra.mxu0 0
  %1707 = vmatprep.subr.bf16.mxu0 0
  %1708 = vmatpush1.bf16.msra.mxu0 0
  %1709 = vmatprep.subr.bf16.mxu0 0
  %1710 = vmatpush1.bf16.msra.mxu0 0
  %1711 = vmatprep.subr.bf16.mxu0 0
  %1712 = vmatpush1.bf16.msra.mxu0 0
  %1713 = vmatprep.subr.bf16.mxu0 0
  %1714 = vmatpush1.bf16.msra.mxu0 0
  %1715 = vmatprep.subr.bf16.mxu0 0
  %1716 = vmatpush1.bf16.msra.mxu0 0
  %1717 = vmatprep.subr.bf16.mxu0 0
  %1718 = vmatpush1.bf16.msra.mxu0 0
  %1719 = vmatprep.subr.bf16.mxu0 0
  %1720 = vmatpush1.bf16.msra.mxu0 0
  %1721 = vmatprep.subr.bf16.mxu0 0
  %1722 = vmatpush1.bf16.msra.mxu0 0
  %1723 = vmatprep.mubr.bf16.mxu0 0
  %1724 = vmatmul.mubr.bf16.gmra.mrb[0].mxu0 %v1683
  %v1725 = vpop.f32.mrb[0].mxu0
  %v1726 = vadd.f32 0.0, %v1725
  %v1727 = vpop.f32.mrb[0].mxu0
  %v1728 = vpop.f32.mrb[0].mxu0
  %v1729 = vadd.f32 0.0, %v1728
  %v1730 = vpop.f32.mrb[0].mxu0
  %1731 = vmatprep.mubr.bf16.mxu0 0
  %1732 = vmatmul.mubr.bf16.gmra.mrb[0].mxu0 %v1686
  %v1733 = vpop.f32.mrb[0].mxu0
  %v1734 = vadd.f32 0.0, %v1733
  %v1735 = vpop.f32.mrb[0].mxu0
  %v1736 = vpop.f32.mrb[0].mxu0
  %v1737 = vpop.f32.mrb[0].mxu0
  %1738 = vdwg.mxu0
  %1745 = vrot.lane.b32.xlu0 %v1664, 48
  %v1746 = vpop.permute.xlu0 %1745
  %1747 = vrot.lane.b32.xlu0 %v1667, 48
  %v1748 = vpop.permute.xlu0 %1747
  %1749 = vrot.lane.b32.xlu0 %v1672, 48
  %v1750 = vpop.permute.xlu0 %1749
  %1751 = vrot.lane.b32.xlu0 %v1726, 48
  %v1752 = vpop.permute.xlu0 %1751
  %1753 = vrot.lane.b32.xlu0 %v1729, 48
  %v1754 = vpop.permute.xlu0 %1753
  %1755 = vrot.lane.b32.xlu0 %v1734, 48
  %v1756 = vpop.permute.xlu0 %1755
  %vm1763 = vcmask 523648
  %1764 = vst.msk [vmem:[#allocation2] sm:$0xff] %vm1763, %v1746
  %1765 = vst.msk [vmem:[#allocation2 + $0x8] sm:$0xff] %vm1763, %v1748
  %1766 = vst.msk [vmem:[#allocation2 + $0x10] sm:$0xff] %vm1763, %v1750
  %1767 = vst.msk [vmem:[#allocation2 + $0x18] sm:$0xff] %vm1763, %v1752
  %1768 = vst.msk [vmem:[#allocation2 + $0x20] sm:$0xff] %vm1763, %v1754
  %1769 = vst.msk [vmem:[#allocation2 + $0x28] sm:$0xff] %vm1763, %v1756
  %v1770 = vld [vmem:[#allocation2] sm:$0xff]
  %v1771 = vld [vmem:[#allocation2 + $0x8] sm:$0xff]
  %v1772 = vld [vmem:[#allocation2 + $0x10] sm:$0xff]
  %v1773 = vld [vmem:[#allocation2 + $0x18] sm:$0xff]
  %v1774 = vld [vmem:[#allocation2 + $0x20] sm:$0xff]
  %v1775 = vld [vmem:[#allocation2 + $0x28] sm:$0xff]
  %v1776 = vpack.c.bf16 %v1771, %v1770
  %v1777 = vpack.c.bf16 %v1773, %v1772
  %v1778 = vpack.c.bf16 %v1775, %v1774
  %v1779 = vld [vmem:[%s6] sm:$0xf]
  %v1780 = vld [vmem:[%s6 + $0x4] sm:$0xf]
  %v1781 = vld [vmem:[%s6 + $0x8] sm:$0xf]
  %v1782 = vld [vmem:[%s6 + $0xc] sm:$0xf]
  %v1783 = vld [vmem:[%s6 + $0x10] sm:$0xf]
  %v1784 = vld [vmem:[%s6 + $0x14] sm:$0xf]
  %v1785 = vld [vmem:[%s6 + $0x18] sm:$0xf]
  %v1786 = vld [vmem:[%s6 + $0x1c] sm:$0xf]
  %v1787 = vld [vmem:[%s7] sm:$0x1]
  %v1789 = vlaneseq
  %v1790 = vshrl.u32 %v1789, 7
  %v1791 = vsub.s32 0, %v1790
  %v1792 = vrot.slane %v1787, %v1791
  %v1802 = vunpack.c.l.b16 %v1779
  %v1803 = vunpack.c.l.b16 %v1780
  %v1804 = vunpack.c.l.b16 %v1781
  %v1805 = vunpack.c.l.b16 %v1782
  %v1806 = vunpack.c.l.b16 %v1783
  %v1807 = vunpack.c.l.b16 %v1784
  %v1808 = vunpack.c.l.b16 %v1785
  %v1809 = vunpack.c.l.b16 %v1786
  %v1810 = vpack.c.b16 %v1803, %v1802
  %v1811 = vpack.c.b16 %v1805, %v1804
  %v1812 = vpack.c.b16 %v1807, %v1806
  %v1813 = vpack.c.b16 %v1809, %v1808
  %v1819 = vsel %vm56, %v1776, 0
  %v1822 = vsel %vm56, %v1777, 0
  %v1825 = vsel %vm56, %v1778, 0
  %1827 = vmatprep.subr.bf16.mxu0 0
  %1828 = vmatpush1.bf16.msra.mxu0 %v1810
  %1829 = vmatprep.subr.bf16.mxu0 0
  %1830 = vmatpush1.bf16.msra.mxu0 %v1811
  %1831 = vmatprep.subr.bf16.mxu0 0
  %1832 = vmatpush1.bf16.msra.mxu0 %v1812
  %1833 = vmatprep.subr.bf16.mxu0 0
  %1834 = vmatpush1.bf16.msra.mxu0 %v1813
  %1835 = vmatprep.subr.bf16.mxu0 0
  %1836 = vmatpush1.bf16.msra.mxu0 0
  %1837 = vmatprep.subr.bf16.mxu0 0
  %1838 = vmatpush1.bf16.msra.mxu0 0
  %1839 = vmatprep.subr.bf16.mxu0 0
  %1840 = vmatpush1.bf16.msra.mxu0 0
  %1841 = vmatprep.subr.bf16.mxu0 0
  %1842 = vmatpush1.bf16.msra.mxu0 0
  %1843 = vmatprep.subr.bf16.mxu0 0
  %1844 = vmatpush1.bf16.msra.mxu0 0
  %1845 = vmatprep.subr.bf16.mxu0 0
  %1846 = vmatpush1.bf16.msra.mxu0 0
  %1847 = vmatprep.subr.bf16.mxu0 0
  %1848 = vmatpush1.bf16.msra.mxu0 0
  %1849 = vmatprep.subr.bf16.mxu0 0
  %1850 = vmatpush1.bf16.msra.mxu0 0
  %1851 = vmatprep.subr.bf16.mxu0 0
  %1852 = vmatpush1.bf16.msra.mxu0 0
  %1853 = vmatprep.subr.bf16.mxu0 0
  %1854 = vmatpush1.bf16.msra.mxu0 0
  %1855 = vmatprep.subr.bf16.mxu0 0
  %1856 = vmatpush1.bf16.msra.mxu0 0
  %1857 = vmatprep.subr.bf16.mxu0 0
  %1858 = vmatpush1.bf16.msra.mxu0 0
  %1859 = vmatprep.mubr.bf16.mxu0 0
  %1860 = vmatmul.mubr.bf16.gmra.mrb[0].mxu0 %v1819
  %v1861 = vpop.f32.mrb[0].mxu0
  %v1862 = vadd.f32 %v1792, %v1861
  %v1863 = vpop.f32.mrb[0].mxu0
  %v1864 = vpop.f32.mrb[0].mxu0
  %v1865 = vadd.f32 %v1792, %v1864
  %v1866 = vpop.f32.mrb[0].mxu0
  %1867 = vmatprep.mubr.bf16.mxu0 0
  %1868 = vmatmul.mubr.bf16.gmra.mrb[0].mxu0 %v1822
  %v1869 = vpop.f32.mrb[0].mxu0
  %v1870 = vadd.f32 %v1792, %v1869
  %v1871 = vpop.f32.mrb[0].mxu0
  %v1872 = vpop.f32.mrb[0].mxu0
  %v1873 = vadd.f32 %v1792, %v1872
  %v1874 = vpop.f32.mrb[0].mxu0
  %1875 = vmatprep.mubr.bf16.mxu0 0
  %1876 = vmatmul.mubr.bf16.gmra.mrb[0].mxu0 %v1825
  %v1877 = vpop.f32.mrb[0].mxu0
  %v1878 = vadd.f32 %v1792, %v1877
  %v1879 = vpop.f32.mrb[0].mxu0
  %v1880 = vpop.f32.mrb[0].mxu0
  %v1881 = vadd.f32 %v1792, %v1880
  %v1882 = vpop.f32.mrb[0].mxu0
  %1883 = vdwg.mxu0
  %v1884 = vadd.f32 %v48, %v1862
  %v1885 = vadd.f32 %v49, %v1865
  %v1886 = vadd.f32 %v50, %v1870
  %v1887 = vadd.f32 %v51, %v1873
  %v1888 = vadd.f32 %v52, %v1878
  %v1889 = vadd.f32 %v53, %v1881
  %v1890 = vld [vmem:[%s8] sm:$0x1]
  %v1891 = vld [vmem:[%s9] sm:$0x1]
  %v1892 = vsel %vm56, %v1884, 0.0
  %1893 = vadd.xlane.f32.xlu0 %v1892
  %v1894 = vpop.xlane.xlu0 %1893
  %v1895 = vsel %vm56, %v1885, 0.0
  %1896 = vadd.xlane.f32.xlu0 %v1895
  %v1897 = vpop.xlane.xlu0 %1896
  %v1898 = vsel %vm56, %v1886, 0.0
  %1899 = vadd.xlane.f32.xlu0 %v1898
  %v1900 = vpop.xlane.xlu0 %1899
  %v1901 = vsel %vm56, %v1887, 0.0
  %1902 = vadd.xlane.f32.xlu0 %v1901
  %v1903 = vpop.xlane.xlu0 %1902
  %v1904 = vsel %vm56, %v1888, 0.0
  %1905 = vadd.xlane.f32.xlu0 %v1904
  %v1906 = vpop.xlane.xlu0 %1905
  %v1907 = vsel %vm56, %v1889, 0.0
  %1908 = vadd.xlane.f32.xlu0 %v1907
  %v1909 = vpop.xlane.xlu0 %1908
  %v1910 = vmul.f32 %v1894, %v75
  %v1911 = vmul.f32 %v1897, %v75
  %v1912 = vmul.f32 %v1900, %v75
  %v1913 = vmul.f32 %v1903, %v75
  %v1914 = vmul.f32 %v1906, %v75
  %v1915 = vmul.f32 %v1909, %v75
  %v1916 = vsub.f32 %v1884, %v1910
  %v1917 = vsub.f32 %v1885, %v1911
  %v1918 = vsub.f32 %v1886, %v1912
  %v1919 = vsub.f32 %v1887, %v1913
  %v1920 = vsub.f32 %v1888, %v1914
  %v1921 = vsub.f32 %v1889, %v1915
  %v1922 = vmul.f32 %v1916, %v1916
  %v1923 = vmul.f32 %v1917, %v1917
  %v1924 = vmul.f32 %v1918, %v1918
  %v1925 = vmul.f32 %v1919, %v1919
  %v1926 = vmul.f32 %v1920, %v1920
  %v1927 = vmul.f32 %v1921, %v1921
  %v1928 = vsel %vm56, %v1922, 0.0
  %1929 = vadd.xlane.f32.xlu0 %v1928
  %v1930 = vpop.xlane.xlu0 %1929
  %v1931 = vsel %vm56, %v1923, 0.0
  %1932 = vadd.xlane.f32.xlu0 %v1931
  %v1933 = vpop.xlane.xlu0 %1932
  %v1934 = vsel %vm56, %v1924, 0.0
  %1935 = vadd.xlane.f32.xlu0 %v1934
  %v1936 = vpop.xlane.xlu0 %1935
  %v1937 = vsel %vm56, %v1925, 0.0
  %1938 = vadd.xlane.f32.xlu0 %v1937
  %v1939 = vpop.xlane.xlu0 %1938
  %v1940 = vsel %vm56, %v1926, 0.0
  %1941 = vadd.xlane.f32.xlu0 %v1940
  %v1942 = vpop.xlane.xlu0 %1941
  %v1943 = vsel %vm56, %v1927, 0.0
  %1944 = vadd.xlane.f32.xlu0 %v1943
  %v1945 = vpop.xlane.xlu0 %1944
  %v1946 = vmul.f32 %v1930, %v75
  %v1947 = vmul.f32 %v1933, %v75
  %v1948 = vmul.f32 %v1936, %v75
  %v1949 = vmul.f32 %v1939, %v75
  %v1950 = vmul.f32 %v1942, %v75
  %v1951 = vmul.f32 %v1945, %v75
  %v1952 = vadd.f32 %v1946, 1e-06
  %v1953 = vadd.f32 %v1947, 1e-06
  %v1954 = vadd.f32 %v1948, 1e-06
  %v1955 = vadd.f32 %v1949, 1e-06
  %v1956 = vadd.f32 %v1950, 1e-06
  %v1957 = vadd.f32 %v1951, 1e-06
  %v1958 = vrsqrt.pop %v1952
  %v1959 = vrsqrt.pop %v1953
  %v1960 = vrsqrt.pop %v1954
  %v1961 = vrsqrt.pop %v1955
  %v1962 = vrsqrt.pop %v1956
  %v1963 = vrsqrt.pop %v1957
  %v1964 = vmul.f32 %v1916, %v1958
  %v1965 = vmul.f32 %v1917, %v1959
  %v1966 = vmul.f32 %v1918, %v1960
  %v1967 = vmul.f32 %v1919, %v1961
  %v1968 = vmul.f32 %v1920, %v1962
  %v1969 = vmul.f32 %v1921, %v1963
  %v1971 = vlaneseq
  %v1972 = vshrl.u32 %v1971, 7
  %v1973 = vsub.s32 0, %v1972
  %v1974 = vrot.slane %v1890, %v1973
  %v1976 = vmul.f32 %v1964, %v1974
  %v1977 = vmul.f32 %v1965, %v1974
  %v1978 = vmul.f32 %v1966, %v1974
  %v1979 = vmul.f32 %v1967, %v1974
  %v1980 = vmul.f32 %v1968, %v1974
  %v1981 = vmul.f32 %v1969, %v1974
  %v1983 = vlaneseq
  %v1984 = vshrl.u32 %v1983, 7
  %v1985 = vsub.s32 0, %v1984
  %v1986 = vrot.slane %v1891, %v1985
  %v1988 = vadd.f32 %v1976, %v1986
  %v1989 = vadd.f32 %v1977, %v1986
  %v1990 = vadd.f32 %v1978, %v1986
  %v1991 = vadd.f32 %v1979, %v1986
  %v1992 = vadd.f32 %v1980, %v1986
  %v1993 = vadd.f32 %v1981, %v1986
  %v1994 = vpack.c.bf16 %v1989, %v1988
  %v1995 = vpack.c.bf16 %v1991, %v1990
  %v1996 = vpack.c.bf16 %v1993, %v1992
  %v1997 = vld [vmem:[%s10] sm:$0xf]
  %v1998 = vld [vmem:[%s10 + $0x4] sm:$0xf]
  %v1999 = vld [vmem:[%s10 + $0x8] sm:$0xf]
  %v2000 = vld [vmem:[%s10 + $0xc] sm:$0xf]
  %v2001 = vld [vmem:[%s10 + $0x10] sm:$0xf]
  %v2002 = vld [vmem:[%s10 + $0x14] sm:$0xf]
  %v2003 = vld [vmem:[%s10 + $0x18] sm:$0xf]
  %v2004 = vld [vmem:[%s10 + $0x1c] sm:$0xf]
  %v2005 = vld [vmem:[%s11] sm:$0x1]
  %v2007 = vlaneseq
  %v2008 = vshrl.u32 %v2007, 7
  %v2009 = vsub.s32 0, %v2008
  %v2010 = vrot.slane %v2005, %v2009
  %v2020 = vunpack.c.l.b16 %v1997
  %v2021 = vunpack.c.l.b16 %v1998
  %v2022 = vunpack.c.l.b16 %v1999
  %v2023 = vunpack.c.l.b16 %v2000
  %v2024 = vunpack.c.l.b16 %v2001
  %v2025 = vunpack.c.l.b16 %v2002
  %v2026 = vunpack.c.l.b16 %v2003
  %v2027 = vunpack.c.l.b16 %v2004
  %v2028 = vpack.c.b16 %v2021, %v2020
  %v2029 = vpack.c.b16 %v2023, %v2022
  %v2030 = vpack.c.b16 %v2025, %v2024
  %v2031 = vpack.c.b16 %v2027, %v2026
  %v2037 = vsel %vm56, %v1994, 0
  %v2040 = vsel %vm56, %v1995, 0
  %v2043 = vsel %vm56, %v1996, 0
  %2045 = vmatprep.subr.bf16.mxu0 0
  %2046 = vmatpush1.bf16.msra.mxu0 %v2028
  %2047 = vmatprep.subr.bf16.mxu0 0
  %2048 = vmatpush1.bf16.msra.mxu0 %v2029
  %2049 = vmatprep.subr.bf16.mxu0 0
  %2050 = vmatpush1.bf16.msra.mxu0 %v2030
  %2051 = vmatprep.subr.bf16.mxu0 0
  %2052 = vmatpush1.bf16.msra.mxu0 %v2031
  %2053 = vmatprep.subr.bf16.mxu0 0
  %2054 = vmatpush1.bf16.msra.mxu0 0
  %2055 = vmatprep.subr.bf16.mxu0 0
  %2056 = vmatpush1.bf16.msra.mxu0 0
  %2057 = vmatprep.subr.bf16.mxu0 0
  %2058 = vmatpush1.bf16.msra.mxu0 0
  %2059 = vmatprep.subr.bf16.mxu0 0
  %2060 = vmatpush1.bf16.msra.mxu0 0
  %2061 = vmatprep.subr.bf16.mxu0 0
  %2062 = vmatpush1.bf16.msra.mxu0 0
  %2063 = vmatprep.subr.bf16.mxu0 0
  %2064 = vmatpush1.bf16.msra.mxu0 0
  %2065 = vmatprep.subr.bf16.mxu0 0
  %2066 = vmatpush1.bf16.msra.mxu0 0
  %2067 = vmatprep.subr.bf16.mxu0 0
  %2068 = vmatpush1.bf16.msra.mxu0 0
  %2069 = vmatprep.subr.bf16.mxu0 0
  %2070 = vmatpush1.bf16.msra.mxu0 0
  %2071 = vmatprep.subr.bf16.mxu0 0
  %2072 = vmatpush1.bf16.msra.mxu0 0
  %2073 = vmatprep.subr.bf16.mxu0 0
  %2074 = vmatpush1.bf16.msra.mxu0 0
  %2075 = vmatprep.subr.bf16.mxu0 0
  %2076 = vmatpush1.bf16.msra.mxu0 0
  %2077 = vmatprep.mubr.bf16.mxu0 0
  %2078 = vmatmul.mubr.bf16.gmra.mrb[0].mxu0 %v2037
  %v2079 = vpop.f32.mrb[0].mxu0
  %v2080 = vadd.f32 %v2010, %v2079
  %v2081 = vpop.f32.mrb[0].mxu0
  %v2082 = vpop.f32.mrb[0].mxu0
  %v2083 = vadd.f32 %v2010, %v2082
  %v2084 = vpop.f32.mrb[0].mxu0
  %2085 = vmatprep.mubr.bf16.mxu0 0
  %2086 = vmatmul.mubr.bf16.gmra.mrb[0].mxu0 %v2040
  %v2087 = vpop.f32.mrb[0].mxu0
  %v2088 = vadd.f32 %v2010, %v2087
  %v2089 = vpop.f32.mrb[0].mxu0
  %v2090 = vpop.f32.mrb[0].mxu0
  %v2091 = vadd.f32 %v2010, %v2090
  %v2092 = vpop.f32.mrb[0].mxu0
  %2093 = vmatprep.mubr.bf16.mxu0 0
  %2094 = vmatmul.mubr.bf16.gmra.mrb[0].mxu0 %v2043
  %v2095 = vpop.f32.mrb[0].mxu0
  %v2096 = vadd.f32 %v2010, %v2095
  %v2097 = vpop.f32.mrb[0].mxu0
  %v2098 = vpop.f32.mrb[0].mxu0
  %v2099 = vadd.f32 %v2010, %v2098
  %v2100 = vpop.f32.mrb[0].mxu0
  %2101 = vdwg.mxu0
  %v2102 = vmul.f32 %v2080, 0.5
  %v2103 = vmul.f32 %v2083, 0.5
  %v2104 = vmul.f32 %v2088, 0.5
  %v2105 = vmul.f32 %v2091, 0.5
  %v2106 = vmul.f32 %v2096, 0.5
  %v2107 = vmul.f32 %v2099, 0.5
  %v2108 = vmul.f32 %v2080, 0.70710677
  %v2109 = vmul.f32 %v2083, 0.70710677
  %v2110 = vmul.f32 %v2088, 0.70710677
  %v2111 = vmul.f32 %v2091, 0.70710677
  %v2112 = vmul.f32 %v2096, 0.70710677
  %v2113 = vmul.f32 %v2099, 0.70710677
  %v2114 = verf.f32.pop %v2108
  %v2115 = verf.f32.pop %v2109
  %v2116 = verf.f32.pop %v2110
  %v2117 = verf.f32.pop %v2111
  %v2118 = verf.f32.pop %v2112
  %v2119 = verf.f32.pop %v2113
  %v2120 = vadd.f32 %v2114, 1.0
  %v2121 = vadd.f32 %v2115, 1.0
  %v2122 = vadd.f32 %v2116, 1.0
  %v2123 = vadd.f32 %v2117, 1.0
  %v2124 = vadd.f32 %v2118, 1.0
  %v2125 = vadd.f32 %v2119, 1.0
  %v2126 = vmul.f32 %v2102, %v2120
  %v2127 = vmul.f32 %v2103, %v2121
  %v2128 = vmul.f32 %v2104, %v2122
  %v2129 = vmul.f32 %v2105, %v2123
  %v2130 = vmul.f32 %v2106, %v2124
  %v2131 = vmul.f32 %v2107, %v2125
  %v2132 = vpack.c.bf16 %v2127, %v2126
  %v2133 = vpack.c.bf16 %v2129, %v2128
  %v2134 = vpack.c.bf16 %v2131, %v2130
  %v2135 = vld [vmem:[%s12] sm:$0xf]
  %v2136 = vld [vmem:[%s12 + $0x4] sm:$0xf]
  %v2137 = vld [vmem:[%s12 + $0x8] sm:$0xf]
  %v2138 = vld [vmem:[%s12 + $0xc] sm:$0xf]
  %v2139 = vld [vmem:[%s12 + $0x10] sm:$0xf]
  %v2140 = vld [vmem:[%s12 + $0x14] sm:$0xf]
  %v2141 = vld [vmem:[%s12 + $0x18] sm:$0xf]
  %v2142 = vld [vmem:[%s12 + $0x1c] sm:$0xf]
  %v2143 = vld [vmem:[%s12 + $0x20] sm:$0xf]
  %v2144 = vld [vmem:[%s12 + $0x24] sm:$0xf]
  %v2145 = vld [vmem:[%s12 + $0x28] sm:$0xf]
  %v2146 = vld [vmem:[%s12 + $0x2c] sm:$0xf]
  %v2147 = vld [vmem:[%s12 + $0x30] sm:$0xf]
  %v2148 = vld [vmem:[%s12 + $0x34] sm:$0xf]
  %v2149 = vld [vmem:[%s12 + $0x38] sm:$0xf]
  %v2150 = vld [vmem:[%s12 + $0x3c] sm:$0xf]
  %v2151 = vld [vmem:[%s13] sm:$0x1]
  %v2153 = vlaneseq
  %v2154 = vshrl.u32 %v2153, 7
  %v2155 = vsub.s32 0, %v2154
  %v2156 = vrot.slane %v2151, %v2155
  %v2174 = vunpack.c.l.b16 %v2135
  %v2175 = vunpack.c.l.b16 %v2136
  %v2176 = vunpack.c.l.b16 %v2137
  %v2177 = vunpack.c.l.b16 %v2138
  %v2178 = vunpack.c.l.b16 %v2139
  %v2179 = vunpack.c.l.b16 %v2140
  %v2180 = vunpack.c.l.b16 %v2141
  %v2181 = vunpack.c.l.b16 %v2142
  %v2182 = vunpack.c.l.b16 %v2143
  %v2183 = vunpack.c.l.b16 %v2144
  %v2184 = vunpack.c.l.b16 %v2145
  %v2185 = vunpack.c.l.b16 %v2146
  %v2186 = vunpack.c.l.b16 %v2147
  %v2187 = vunpack.c.l.b16 %v2148
  %v2188 = vunpack.c.l.b16 %v2149
  %v2189 = vunpack.c.l.b16 %v2150
  %v2190 = vpack.c.b16 %v2175, %v2174
  %v2191 = vpack.c.b16 %v2177, %v2176
  %v2192 = vpack.c.b16 %v2179, %v2178
  %v2193 = vpack.c.b16 %v2181, %v2180
  %v2194 = vpack.c.b16 %v2183, %v2182
  %v2195 = vpack.c.b16 %v2185, %v2184
  %v2196 = vpack.c.b16 %v2187, %v2186
  %v2197 = vpack.c.b16 %v2189, %v2188
  %2206 = vmatprep.subr.bf16.mxu0 0
  %2207 = vmatpush1.bf16.msra.mxu0 %v2190
  %2208 = vmatprep.subr.bf16.mxu0 0
  %2209 = vmatpush1.bf16.msra.mxu0 %v2191
  %2210 = vmatprep.subr.bf16.mxu0 0
  %2211 = vmatpush1.bf16.msra.mxu0 %v2192
  %2212 = vmatprep.subr.bf16.mxu0 0
  %2213 = vmatpush1.bf16.msra.mxu0 %v2193
  %2214 = vmatprep.subr.bf16.mxu0 0
  %2215 = vmatpush1.bf16.msra.mxu0 %v2194
  %2216 = vmatprep.subr.bf16.mxu0 0
  %2217 = vmatpush1.bf16.msra.mxu0 %v2195
  %2218 = vmatprep.subr.bf16.mxu0 0
  %2219 = vmatpush1.bf16.msra.mxu0 %v2196
  %2220 = vmatprep.subr.bf16.mxu0 0
  %2221 = vmatpush1.bf16.msra.mxu0 %v2197
  %2222 = vmatprep.subr.bf16.mxu0 0
  %2223 = vmatpush1.bf16.msra.mxu0 0
  %2224 = vmatprep.subr.bf16.mxu0 0
  %2225 = vmatpush1.bf16.msra.mxu0 0
  %2226 = vmatprep.subr.bf16.mxu0 0
  %2227 = vmatpush1.bf16.msra.mxu0 0
  %2228 = vmatprep.subr.bf16.mxu0 0
  %2229 = vmatpush1.bf16.msra.mxu0 0
  %2230 = vmatprep.subr.bf16.mxu0 0
  %2231 = vmatpush1.bf16.msra.mxu0 0
  %2232 = vmatprep.subr.bf16.mxu0 0
  %2233 = vmatpush1.bf16.msra.mxu0 0
  %2234 = vmatprep.subr.bf16.mxu0 0
  %2235 = vmatpush1.bf16.msra.mxu0 0
  %2236 = vmatprep.subr.bf16.mxu0 0
  %2237 = vmatpush1.bf16.msra.mxu0 0
  %2238 = vmatprep.mubr.bf16.mxu0 0
  %2239 = vmatmul.mubr.bf16.gmra.mrb[0].mxu0 %v2132
  %v2240 = vpop.f32.mrb[0].mxu0
  %v2241 = vadd.f32 %v2156, %v2240
  %v2242 = vpop.f32.mrb[0].mxu0
  %v2243 = vpop.f32.mrb[0].mxu0
  %v2244 = vadd.f32 %v2156, %v2243
  %v2245 = vpop.f32.mrb[0].mxu0
  %2246 = vmatprep.mubr.bf16.mxu0 0
  %2247 = vmatmul.mubr.bf16.gmra.mrb[0].mxu0 %v2133
  %v2248 = vpop.f32.mrb[0].mxu0
  %v2249 = vadd.f32 %v2156, %v2248
  %v2250 = vpop.f32.mrb[0].mxu0
  %v2251 = vpop.f32.mrb[0].mxu0
  %v2252 = vadd.f32 %v2156, %v2251
  %v2253 = vpop.f32.mrb[0].mxu0
  %2254 = vmatprep.mubr.bf16.mxu0 0
  %2255 = vmatmul.mubr.bf16.gmra.mrb[0].mxu0 %v2134
  %v2256 = vpop.f32.mrb[0].mxu0
  %v2257 = vadd.f32 %v2156, %v2256
  %v2258 = vpop.f32.mrb[0].mxu0
  %v2259 = vpop.f32.mrb[0].mxu0
  %v2260 = vadd.f32 %v2156, %v2259
  %v2261 = vpop.f32.mrb[0].mxu0
  %2262 = vdwg.mxu0
  %v2263 = vadd.f32 %v1884, %v2241
  %v2264 = vadd.f32 %v1885, %v2244
  %v2265 = vadd.f32 %v1886, %v2249
  %v2266 = vadd.f32 %v1887, %v2252
  %v2267 = vadd.f32 %v1888, %v2257
  %v2268 = vadd.f32 %v1889, %v2260
  %2269 = vst.msk [vmem:[%s14] sm:$0xff] %vm56, %v2263
  %2270 = vst.msk [vmem:[%s14 + $0x8] sm:$0xff] %vm56, %v2264
  %2271 = vst.msk [vmem:[%s14 + $0x10] sm:$0xff] %vm56, %v2265
  %2272 = vst.msk [vmem:[%s14 + $0x18] sm:$0xff] %vm56, %v2266
  %2273 = vst.msk [vmem:[%s14 + $0x20] sm:$0xff] %vm56, %v2267
  %2274 = vst.msk [vmem:[%s14 + $0x28] sm:$0xff] %vm56, %v2268
  // Predicated region
  $region58: #{vit_forward.7} parent=0 // pred_check
    _
  $region59: #{vit_forward.7} parent=0 // pred_check_branch
    %2276 = sbr.rel (0) target = $region61
  $region60: #{vit_forward.7} parent=0 // pred_region
    _
  $region61: #{vit_forward.7} parent=0 // pred_fallthru
    _
  // Predicated region
  $region62: #{vit_forward.7} parent=0 // pred_check
    _
  $region63: #{vit_forward.7} parent=0 // pred_check_branch
    %2278 = sbr.rel (0) target = $region65
  $region64: #{vit_forward.7} parent=0 // pred_region
    _
  $region65: #{vit_forward.7} parent=0 // pred_fallthru
    _

</llo_original>
